<compile_context>
chip_gen: v7x
topology: tpu7x:2x2x1
jax: 0.10.0
libtpu: 0.0.40
codegen_flags: <defaults>
</compile_context>

<pallas_src>
import functools
import math

import jax
import jax.numpy as jnp
from jax.experimental import pallas as pl
from jax.experimental.pallas import tpu as pltpu

NEG_INF = -1e30
EPS = 1e-5  # torch.nn.LayerNorm default eps


def _layernorm(v, gamma, beta):
    mu = jnp.mean(v, axis=-1, keepdims=True)
    var = jnp.mean((v - mu) ** 2, axis=-1, keepdims=True)
    return (v - mu) * jax.lax.rsqrt(var + EPS) * gamma + beta


def _perceiver_ca_kernel(H, C,
                         q_lens_ref, k_lens_ref,             # scalar prefetch (SMEM)
                         x_ref, lat_ref, temb_ref,           # per-batch activations
                         g_kv_ref, b_kv_ref, g_q_ref, b_q_ref,
                         wq_ref, bq_ref, wk_ref, bk_ref, wv_ref, bv_ref,
                         wout_ref, bout_ref, ssg_ref,
                         out_ref,
                         q_sc, m_sc, l_sc, acc_sc):
    b = pl.program_id(0)
    kc = pl.program_id(1)
    nk = pl.num_programs(1)

    Lq = lat_ref.shape[0]
    TK = x_ref.shape[0]

    q_len = q_lens_ref[b]
    k_len = k_lens_ref[b]
    sm_scale = 1.0 / math.sqrt(C)

    # ---- once per batch element: reset online-softmax state, compute scaled queries
    @pl.when(kc == 0)
    def _init():
        m_sc[...] = jnp.full_like(m_sc, NEG_INF)
        l_sc[...] = jnp.zeros_like(l_sc)
        acc_sc[...] = jnp.zeros_like(acc_sc)

        ssg = temb_ref[...] + ssg_ref[...]            # (3, D)
        shift = ssg[0:1, :]
        scale = ssg[1:2, :]

        lat_n = _layernorm(lat_ref[...], g_q_ref[...], b_q_ref[...])
        lat_m = (lat_n * (1.0 + scale) + shift).astype(jnp.bfloat16)
        for h in range(H):                            # head-major weight: free slice
            qh = jnp.dot(lat_m, wq_ref[h], preferred_element_type=jnp.float32)
            qh = (qh + bq_ref[h]) * sm_scale
            q_sc[h] = qh.astype(jnp.bfloat16)

    # ---- every (batch, key-chunk): kv projection + online-softmax attention
    x_n = _layernorm(x_ref[...], g_kv_ref[...], b_kv_ref[...]).astype(jnp.bfloat16)

    kpos = kc * TK + jax.lax.broadcasted_iota(jnp.int32, (1, TK), 1)
    kmask = kpos < k_len                              # (1, TK), key-length mask

    for h in range(H):
        kh = jnp.dot(x_n, wk_ref[h], preferred_element_type=jnp.float32) + bk_ref[h]
        vh = jnp.dot(x_n, wv_ref[h], preferred_element_type=jnp.float32) + bv_ref[h]

        s = jax.lax.dot_general(q_sc[h], kh.astype(jnp.bfloat16),
                                (((1,), (1,)), ((), ())),
                                preferred_element_type=jnp.float32)   # (Lq, TK)
        s = jnp.where(kmask, s, NEG_INF)

        m_prev = m_sc[h]                              # (Lq, 1)
        m_new = jnp.maximum(m_prev, jnp.max(s, axis=-1, keepdims=True))
        alpha = jnp.exp(m_prev - m_new)
        p = jnp.exp(s - m_new)
        l_sc[h] = alpha * l_sc[h] + jnp.sum(p, axis=-1, keepdims=True)
        acc_sc[h] = alpha * acc_sc[h] + jnp.dot(
            p.astype(jnp.bfloat16), vh.astype(jnp.bfloat16),
            preferred_element_type=jnp.float32)
        m_sc[h] = m_new

    # ---- finalize: normalize, fused output projection, gate, query-length mask
    @pl.when(kc == nk - 1)
    def _finalize():
        out_ref[...] = jnp.zeros_like(out_ref)
        for h in range(H):
            inv_l = pl.reciprocal(l_sc[h], approx=True)        # EUP slot
            oh = (acc_sc[h] * inv_l).astype(jnp.bfloat16)      # (Lq, C)
            out_ref[...] += jnp.dot(oh, wout_ref[h],
                                    preferred_element_type=jnp.float32)
        gate = (temb_ref[...] + ssg_ref[...])[2:3, :]          # (1, D)
        o = (out_ref[...] + bout_ref[...]) * gate
        # TODO(synk): exact flash_attn_varlen output packing assumes q_lens[b] == Lq;
        # rows past q_len are zeroed as the padded-layout interpretation.
        qidx = jax.lax.broadcasted_iota(jnp.int32, (Lq, 1), 0)
        out_ref[...] = jnp.where(qidx < q_len, o, 0.0)


def _round_up(v, m):
    return (v + m - 1) // m * m


def _head_major_params(params, heads, dim_head):
    """Host-side prep: head-major weight layout (leading head axis) + bf16 cast."""
    H, C = heads, dim_head
    D = H * C
    wkv = params["w_kv"]
    Kd = wkv.shape[0]
    bf16 = jnp.bfloat16
    wq_hm = params["w_q"].reshape(D, H, C).transpose(1, 0, 2).astype(bf16)     # (H, D, C)
    wk_hm = wkv[:, :D].reshape(Kd, H, C).transpose(1, 0, 2).astype(bf16)       # (H, Kd, C)
    wv_hm = wkv[:, D:].reshape(Kd, H, C).transpose(1, 0, 2).astype(bf16)       # (H, Kd, C)
    wout_hm = params["w_out"].reshape(H, C, D).astype(bf16)                    # (H, C, D)
    bq_hm = params["b_q_lin"].reshape(1, H, C).transpose(1, 0, 2)              # (H, 1, C)
    bk_hm = params["b_kv_lin"][:, :D].reshape(1, H, C).transpose(1, 0, 2)
    bv_hm = params["b_kv_lin"][:, D:].reshape(1, H, C).transpose(1, 0, 2)
    return wq_hm, bq_hm, wk_hm, bk_hm, wv_hm, bv_hm, wout_hm


def perceiver_attention_ca(x, latents, t_emb, q_lens, k_lens, params,
                           heads, dim_head, *, k_chunk=512):
    B, T, La, Kd = x.shape
    Sk = T * La
    _, Lq, D = latents.shape
    H, C = heads, dim_head
    assert D == H * C

    x2 = x.reshape(B, Sk, Kd)                       # glue reshape outside the kernel

    # key-axis tile: multiple of 8 sublanes; pad Sk so it divides evenly
    tk = min(_round_up(k_chunk, 8), _round_up(Sk, 8))
    sk_pad = _round_up(Sk, tk)
    if sk_pad != Sk:
        x2 = jnp.pad(x2, ((0, 0), (0, sk_pad - Sk), (0, 0)))   # padded keys are masked
    nk = sk_pad // tk

    wq_hm, bq_hm, wk_hm, bk_hm, wv_hm, bv_hm, wout_hm = _head_major_params(
        params, heads, dim_head)

    kernel = functools.partial(_perceiver_ca_kernel, H, C)

    grid_spec = pltpu.PrefetchScalarGridSpec(
        num_scalar_prefetch=2,
        grid=(B, nk),
        in_specs=[
            pl.BlockSpec((None, tk, Kd), lambda b, kc, ql, kl: (b, kc, 0)),   # x chunk
            pl.BlockSpec((None, Lq, D), lambda b, kc, ql, kl: (b, 0, 0)),     # latents
            pl.BlockSpec((None, 3, D), lambda b, kc, ql, kl: (b, 0, 0)),      # t_emb
            pl.BlockSpec((1, Kd), lambda b, kc, ql, kl: (0, 0)),              # norm_kv gamma
            pl.BlockSpec((1, Kd), lambda b, kc, ql, kl: (0, 0)),              # norm_kv beta
            pl.BlockSpec((1, D), lambda b, kc, ql, kl: (0, 0)),               # norm_q gamma
            pl.BlockSpec((1, D), lambda b, kc, ql, kl: (0, 0)),               # norm_q beta
            pl.BlockSpec((H, D, C), lambda b, kc, ql, kl: (0, 0, 0)),         # W_q (bf16)
            pl.BlockSpec((H, 1, C), lambda b, kc, ql, kl: (0, 0, 0)),         # b_q
            pl.BlockSpec((H, Kd, C), lambda b, kc, ql, kl: (0, 0, 0)),        # W_k (bf16)
            pl.BlockSpec((H, 1, C), lambda b, kc, ql, kl: (0, 0, 0)),         # b_k
            pl.BlockSpec((H, Kd, C), lambda b, kc, ql, kl: (0, 0, 0)),        # W_v (bf16)
            pl.BlockSpec((H, 1, C), lambda b, kc, ql, kl: (0, 0, 0)),         # b_v
            pl.BlockSpec((H, C, D), lambda b, kc, ql, kl: (0, 0, 0)),         # W_out (bf16)
            pl.BlockSpec((1, D), lambda b, kc, ql, kl: (0, 0)),               # b_out
            pl.BlockSpec((3, D), lambda b, kc, ql, kl: (0, 0)),               # shift_scale_gate
        ],
        out_specs=pl.BlockSpec((None, Lq, D), lambda b, kc, ql, kl: (b, 0, 0)),
        scratch_shapes=[
            pltpu.VMEM((H, Lq, C), jnp.bfloat16),   # scaled queries (per batch element)
            pltpu.VMEM((H, Lq, 1), jnp.float32),    # online-softmax running max
            pltpu.VMEM((H, Lq, 1), jnp.float32),    # online-softmax running denom
            pltpu.VMEM((H, Lq, C), jnp.float32),    # online-softmax running numerator
        ],
    )

    # NOTE: constant-index weight blocks are still double-buffered by the default
    # pipeline; bf16 already halves that footprint (pipeline_mode=pl.Buffered(1)
    # could halve it again at production D).
    return pl.pallas_call(
        kernel,
        out_shape=jax.ShapeDtypeStruct((B, Lq, D), jnp.float32),
        grid_spec=grid_spec,
        compiler_params=pltpu.CompilerParams(
            dimension_semantics=("parallel", "arbitrary"),
            vmem_limit_bytes=64 * 1024 * 1024,
        ),
    )(q_lens.astype(jnp.int32), k_lens.astype(jnp.int32),
      x2, latents, t_emb,
      params["g_kv"], params["b_kv"], params["g_q"], params["b_q"],
      wq_hm, bq_hm, wk_hm, bk_hm, wv_hm, bv_hm,
      wout_hm, params["b_out"], params["ssg"])


def init_params(key, heads, dim_head, kv_dim):
    D = heads * dim_head
    ks = jax.random.split(key, 10)
    s = 0.02
    ssg = jnp.zeros((3, D), jnp.float32).at[2].set(1.0)   # adaLN=False buffer
    return {
        "g_kv": 1.0 + 0.1 * jax.random.normal(ks[6], (1, kv_dim), jnp.float32),
        "b_kv": 0.1 * jax.random.normal(ks[7], (1, kv_dim), jnp.float32),
        "g_q": 1.0 + 0.1 * jax.random.normal(ks[8], (1, D), jnp.float32),
        "b_q": 0.1 * jax.random.normal(ks[9], (1, D), jnp.float32),
        "w_q": jax.random.normal(ks[0], (D, D), jnp.float32) * s,
        "b_q_lin": jax.random.normal(ks[1], (1, D), jnp.float32) * s,
        "w_kv": jax.random.normal(ks[2], (kv_dim, 2 * D), jnp.float32) * s,
        "b_kv_lin": jax.random.normal(ks[3], (1, 2 * D), jnp.float32) * s,
        "w_out": jax.random.normal(ks[4], (D, D), jnp.float32) * s,
        "b_out": jax.random.normal(ks[5], (1, D), jnp.float32) * s,
        "ssg": ssg,
    }


def reference(x, latents, t_emb, q_lens, k_lens, params, heads, dim_head):
    """Pure-JAX f32 reference of the same forward pass (for correctness check)."""
    B, T, La, Kd = x.shape
    Sk = T * La
    _, Lq, D = latents.shape
    C = dim_head
    xf = x.reshape(B, Sk, Kd)
    x_n = _layernorm(xf, params["g_kv"][0], params["b_kv"][0])
    ssg = t_emb + params["ssg"][None]                     # (B, 3, D)
    shift, scale, gate = ssg[:, 0:1], ssg[:, 1:2], ssg[:, 2:3]
    lat_n = _layernorm(latents, params["g_q"][0], params["b_q"][0]) * (1.0 + scale) + shift
    q = lat_n @ params["w_q"] + params["b_q_lin"][0]
    kv = x_n @ params["w_kv"] + params["b_kv_lin"][0]
    k, v = kv[..., :D], kv[..., D:]
    qh = q.reshape(B, Lq, heads, C)
    kh = k.reshape(B, Sk, heads, C)
    vh = v.reshape(B, Sk, heads, C)
    s = jnp.einsum("bqhc,bkhc->bhqk", qh, kh) / math.sqrt(C)
    kmask = (jnp.arange(Sk)[None, :] < k_lens[:, None])[:, None, None, :]
    s = jnp.where(kmask, s, NEG_INF)
    p = jax.nn.softmax(s, axis=-1)
    o = jnp.einsum("bhqk,bkhc->bqhc", p, vh).reshape(B, Lq, D)
    o = (o @ params["w_out"] + params["b_out"][0]) * gate
    qmask = (jnp.arange(Lq)[None, :] < q_lens[:, None])[:, :, None]
    return jnp.where(qmask, o, 0.0)


if __name__ == "__main__":
    key = jax.random.PRNGKey(0)
    # small but lane-aligned shapes (dim_head=128 matches the module default)
    B, T, La, Lq = 2, 2, 16, 16
    heads, dim_head, kv_dim = 2, 128, 256
    D = heads * dim_head

    k1, k2, k3, kp = jax.random.split(key, 4)
    x = jax.random.normal(k1, (B, T, La, kv_dim), jnp.float32)
    latents = jax.random.normal(k2, (B, Lq, D), jnp.float32)
    t_emb = jax.random.normal(k3, (B, 3, D), jnp.float32) * 0.1
    q_lens = jnp.array([Lq, Lq], dtype=jnp.int32)             # full query segments
    k_lens = jnp.array([T * La, T * La - 7], dtype=jnp.int32)  # ragged key lengths

    params = init_params(kp, heads, dim_head, kv_dim)

    # k_chunk=16 -> 2 key chunks: exercises the online-softmax path + chunk-crossing mask
    out = perceiver_attention_ca(x, latents, t_emb, q_lens, k_lens,
                                 params, heads, dim_head, k_chunk=16)
    out = jax.block_until_ready(out)

    ref = reference(x, latents, t_emb, q_lens, k_lens, params, heads, dim_head)
    assert out.shape == (B, Lq, D), out.shape
    # bf16 MXU + approx reciprocal => loosened tolerance vs the f32 reference
    if not jnp.allclose(out, ref, atol=2e-2, rtol=2e-2):
        err = float(jnp.max(jnp.abs(out - ref)))
        raise ValueError(f"Pallas kernel output does not match JAX reference (max err {err})")
    print("KERNEL_OK")
</pallas_src>

<mosaic_0001>
module attributes {stable_mosaic.version = 11 : i64} {
  func.func @_perceiver_ca_kernel(%arg0: i32, %arg1: i32, %arg2: memref<2xi32, #tpu.memory_space<smem>>, %arg3: memref<2xi32, #tpu.memory_space<smem>>, %arg4: memref<1x16x256xf32, #tpu.memory_space<vmem>>, %arg5: memref<1x16x256xf32, #tpu.memory_space<vmem>>, %arg6: memref<1x3x256xf32, #tpu.memory_space<vmem>>, %arg7: memref<1x256xf32, #tpu.memory_space<vmem>>, %arg8: memref<1x256xf32, #tpu.memory_space<vmem>>, %arg9: memref<1x256xf32, #tpu.memory_space<vmem>>, %arg10: memref<1x256xf32, #tpu.memory_space<vmem>>, %arg11: memref<2x256x128xbf16, #tpu.memory_space<vmem>>, %arg12: memref<2x1x128xf32, #tpu.memory_space<vmem>>, %arg13: memref<2x256x128xbf16, #tpu.memory_space<vmem>>, %arg14: memref<2x1x128xf32, #tpu.memory_space<vmem>>, %arg15: memref<2x256x128xbf16, #tpu.memory_space<vmem>>, %arg16: memref<2x1x128xf32, #tpu.memory_space<vmem>>, %arg17: memref<2x128x256xbf16, #tpu.memory_space<vmem>>, %arg18: memref<1x256xf32, #tpu.memory_space<vmem>>, %arg19: memref<3x256xf32, #tpu.memory_space<vmem>>, %arg20: memref<1x16x256xf32, #tpu.memory_space<vmem>>, %arg21: memref<2x16x128xbf16, #tpu.memory_space<vmem>>, %arg22: memref<2x16x1xf32, #tpu.memory_space<vmem>>, %arg23: memref<2x16x1xf32, #tpu.memory_space<vmem>>, %arg24: memref<2x16x128xf32, #tpu.memory_space<vmem>>) attributes {dimension_semantics = [#tpu.dimension_semantics<parallel>, #tpu.dimension_semantics<arbitrary>], iteration_bounds = array<i64: 2, 2>, scalar_prefetch = 2 : i64, scratch_operands = 4 : i64, tpu.core_type = #tpu.core_type<tc>, window_params = [{transform_indices = @transform_0, window_bounds = array<i64: 1, 16, 256>}, {transform_indices = @transform_1, window_bounds = array<i64: 1, 16, 256>}, {transform_indices = @transform_2, window_bounds = array<i64: 1, 3, 256>}, {pipeline_mode = #tpu.pipeline_mode<synchronous>, transform_indices = @transform_3, window_bounds = array<i64: 1, 256>}, {pipeline_mode = #tpu.pipeline_mode<synchronous>, transform_indices = @transform_4, window_bounds = array<i64: 1, 256>}, {pipeline_mode = #tpu.pipeline_mode<synchronous>, transform_indices = @transform_5, window_bounds = array<i64: 1, 256>}, {pipeline_mode = #tpu.pipeline_mode<synchronous>, transform_indices = @transform_6, window_bounds = array<i64: 1, 256>}, {pipeline_mode = #tpu.pipeline_mode<synchronous>, transform_indices = @transform_7, window_bounds = array<i64: 2, 256, 128>}, {pipeline_mode = #tpu.pipeline_mode<synchronous>, transform_indices = @transform_8, window_bounds = array<i64: 2, 1, 128>}, {pipeline_mode = #tpu.pipeline_mode<synchronous>, transform_indices = @transform_9, window_bounds = array<i64: 2, 256, 128>}, {pipeline_mode = #tpu.pipeline_mode<synchronous>, transform_indices = @transform_10, window_bounds = array<i64: 2, 1, 128>}, {pipeline_mode = #tpu.pipeline_mode<synchronous>, transform_indices = @transform_11, window_bounds = array<i64: 2, 256, 128>}, {pipeline_mode = #tpu.pipeline_mode<synchronous>, transform_indices = @transform_12, window_bounds = array<i64: 2, 1, 128>}, {pipeline_mode = #tpu.pipeline_mode<synchronous>, transform_indices = @transform_13, window_bounds = array<i64: 2, 128, 256>}, {pipeline_mode = #tpu.pipeline_mode<synchronous>, transform_indices = @transform_14, window_bounds = array<i64: 1, 256>}, {pipeline_mode = #tpu.pipeline_mode<synchronous>, transform_indices = @transform_15, window_bounds = array<i64: 3, 256>}, {transform_indices = @transform_16, window_bounds = array<i64: 1, 16, 256>}]} {
    %0 = arith.index_cast %arg0 : i32 to index
    %1 = memref.load %arg2[%0] : memref<2xi32, #tpu.memory_space<smem>>
    %2 = arith.index_cast %arg0 : i32 to index
    %3 = memref.load %arg3[%2] : memref<2xi32, #tpu.memory_space<smem>>
    %c0_i32 = arith.constant 0 : i32
    %4 = arith.cmpi eq, %arg1, %c0_i32 : i32
    %5 = arith.extui %4 : i1 to i32
    %c0_i32_0 = arith.constant 0 : i32
    %6 = arith.cmpi ne, %5, %c0_i32_0 : i32
    scf.if %6 {
      %cst_91 = arith.constant -1.000000e+30 : f32
      %153 = vector.broadcast %cst_91 : f32 to vector<2x16x1xf32>
      %c0_92 = arith.constant 0 : index
      %c0_93 = arith.constant 0 : index
      %c0_94 = arith.constant 0 : index
      %154 = vector.load %arg22[%c0_92, %c0_93, %c0_94] : memref<2x16x1xf32, #tpu.memory_space<vmem>>, vector<2x16x1xf32>
      tpu.vector_store %arg22[%c0_92, %c0_93, %c0_94], %153 {strides = array<i32>} : memref<2x16x1xf32, #tpu.memory_space<vmem>>, vector<2x16x1xf32>,
      %cst_95 = arith.constant 0.000000e+00 : f32
      %155 = vector.broadcast %cst_95 : f32 to vector<2x16x1xf32>
      %c0_96 = arith.constant 0 : index
      %c0_97 = arith.constant 0 : index
      %c0_98 = arith.constant 0 : index
      %156 = vector.load %arg23[%c0_96, %c0_97, %c0_98] : memref<2x16x1xf32, #tpu.memory_space<vmem>>, vector<2x16x1xf32>
      tpu.vector_store %arg23[%c0_96, %c0_97, %c0_98], %155 {strides = array<i32>} : memref<2x16x1xf32, #tpu.memory_space<vmem>>, vector<2x16x1xf32>,
      %cst_99 = arith.constant 0.000000e+00 : f32
      %157 = vector.broadcast %cst_99 : f32 to vector<2x16x128xf32>
      %c0_100 = arith.constant 0 : index
      %c0_101 = arith.constant 0 : index
      %c0_102 = arith.constant 0 : index
      %158 = vector.load %arg24[%c0_100, %c0_101, %c0_102] : memref<2x16x128xf32, #tpu.memory_space<vmem>>, vector<2x16x128xf32>
      tpu.vector_store %arg24[%c0_100, %c0_101, %c0_102], %157 {strides = array<i32>} : memref<2x16x128xf32, #tpu.memory_space<vmem>>, vector<2x16x128xf32>,
      %c0_103 = arith.constant 0 : index
      %c0_104 = arith.constant 0 : index
      %c0_105 = arith.constant 0 : index
      %159 = vector.load %arg6[%c0_103, %c0_104, %c0_105] : memref<1x3x256xf32, #tpu.memory_space<vmem>>, vector<1x3x256xf32>
      %160 = vector.shape_cast %159 : vector<1x3x256xf32> to vector<3x256xf32>
      %c0_106 = arith.constant 0 : index
      %c0_107 = arith.constant 0 : index
      %161 = vector.load %arg19[%c0_106, %c0_107] : memref<3x256xf32, #tpu.memory_space<vmem>>, vector<3x256xf32>
      %162 = arith.addf %160, %161 : vector<3x256xf32>
      %163 = vector.extract_strided_slice %162 {offsets = [0, 0], sizes = [1, 256], strides = [1, 1]} : vector<3x256xf32> to vector<1x256xf32>
      %164 = vector.extract_strided_slice %162 {offsets = [1, 0], sizes = [1, 256], strides = [1, 1]} : vector<3x256xf32> to vector<1x256xf32>
      %c0_108 = arith.constant 0 : index
      %c0_109 = arith.constant 0 : index
      %c0_110 = arith.constant 0 : index
      %165 = vector.load %arg5[%c0_108, %c0_109, %c0_110] : memref<1x16x256xf32, #tpu.memory_space<vmem>>, vector<1x16x256xf32>
      %166 = vector.shape_cast %165 : vector<1x16x256xf32> to vector<16x256xf32>
      %c0_111 = arith.constant 0 : index
      %c0_112 = arith.constant 0 : index
      %167 = vector.load %arg9[%c0_111, %c0_112] : memref<1x256xf32, #tpu.memory_space<vmem>>, vector<1x256xf32>
      %c0_113 = arith.constant 0 : index
      %c0_114 = arith.constant 0 : index
      %168 = vector.load %arg10[%c0_113, %c0_114] : memref<1x256xf32, #tpu.memory_space<vmem>>, vector<1x256xf32>
      %cst_115 = arith.constant dense<0.000000e+00> : vector<16xf32>
      %169 = vector.multi_reduction <add>, %166, %cst_115 [1] : vector<16x256xf32> to vector<16xf32>
      %170 = vector.shape_cast %169 : vector<16xf32> to vector<16x1xf32>
      %cst_116 = arith.constant 2.560000e+02 : f32
      %171 = vector.broadcast %cst_116 : f32 to vector<16x1xf32>
      %172 = arith.divf %170, %171 : vector<16x1xf32>
      %173 = vector.broadcast %172 : vector<16x1xf32> to vector<16x256xf32>
      %174 = arith.subf %166, %173 : vector<16x256xf32>
      %175 = arith.mulf %174, %174 : vector<16x256xf32>
      %cst_117 = arith.constant dense<0.000000e+00> : vector<16xf32>
      %176 = vector.multi_reduction <add>, %175, %cst_117 [1] : vector<16x256xf32> to vector<16xf32>
      %177 = vector.shape_cast %176 : vector<16xf32> to vector<16x1xf32>
      %cst_118 = arith.constant 2.560000e+02 : f32
      %178 = vector.broadcast %cst_118 : f32 to vector<16x1xf32>
      %179 = arith.divf %177, %178 : vector<16x1xf32>
      %180 = vector.broadcast %172 : vector<16x1xf32> to vector<16x256xf32>
      %181 = arith.subf %166, %180 : vector<16x256xf32>
      %cst_119 = arith.constant 9.99999974E-6 : f32
      %182 = vector.broadcast %cst_119 : f32 to vector<16x1xf32>
      %183 = arith.addf %179, %182 : vector<16x1xf32>
      %184 = math.rsqrt %183 : vector<16x1xf32>
      %185 = vector.broadcast %184 : vector<16x1xf32> to vector<16x256xf32>
      %186 = arith.mulf %181, %185 : vector<16x256xf32>
      %187 = vector.broadcast %167 : vector<1x256xf32> to vector<16x256xf32>
      %188 = arith.mulf %186, %187 : vector<16x256xf32>
      %189 = vector.broadcast %168 : vector<1x256xf32> to vector<16x256xf32>
      %190 = arith.addf %188, %189 : vector<16x256xf32>
      %cst_120 = arith.constant 1.000000e+00 : f32
      %191 = vector.broadcast %cst_120 : f32 to vector<1x256xf32>
      %192 = arith.addf %191, %164 : vector<1x256xf32>
      %193 = vector.broadcast %192 : vector<1x256xf32> to vector<16x256xf32>
      %194 = arith.mulf %190, %193 : vector<16x256xf32>
      %195 = vector.broadcast %163 : vector<1x256xf32> to vector<16x256xf32>
      %196 = arith.addf %194, %195 : vector<16x256xf32>
      %197 = arith.truncf %196 : vector<16x256xf32> to vector<16x256xbf16>
      %c0_121 = arith.constant 0 : index
      %c0_122 = arith.constant 0 : index
      %c0_123 = arith.constant 0 : index
      %198 = vector.load %arg11[%c0_121, %c0_122, %c0_123] : memref<2x256x128xbf16, #tpu.memory_space<vmem>>, vector<1x256x128xbf16>
      %199 = vector.shape_cast %198 : vector<1x256x128xbf16> to vector<256x128xbf16>
      %cst_124 = arith.constant dense<0.000000e+00> : vector<16x128xf32>
      %200 = tpu.matmul %197, %199, %cst_124 {dimension_numbers = #tpu.dot_dimension_numbers<[1], [0], [0], [1], [0, 0, 1, 1], [], []>} : vector<16x256xbf16>, vector<256x128xbf16>, vector<16x128xf32> -> vector<16x128xf32>
      %c0_125 = arith.constant 0 : index
      %c0_126 = arith.constant 0 : index
      %c0_127 = arith.constant 0 : index
      %201 = vector.load %arg12[%c0_125, %c0_126, %c0_127] : memref<2x1x128xf32, #tpu.memory_space<vmem>>, vector<1x1x128xf32>
      %202 = vector.shape_cast %201 : vector<1x1x128xf32> to vector<1x128xf32>
      %203 = vector.broadcast %202 : vector<1x128xf32> to vector<16x128xf32>
      %204 = arith.addf %200, %203 : vector<16x128xf32>
      %cst_128 = arith.constant 0.0883883461 : f32
      %205 = vector.broadcast %cst_128 : f32 to vector<16x128xf32>
      %206 = arith.mulf %204, %205 : vector<16x128xf32>
      %207 = arith.truncf %206 : vector<16x128xf32> to vector<16x128xbf16>
      %c0_129 = arith.constant 0 : index
      %c0_130 = arith.constant 0 : index
      %c0_131 = arith.constant 0 : index
      %208 = vector.load %arg21[%c0_129, %c0_130, %c0_131] : memref<2x16x128xbf16, #tpu.memory_space<vmem>>, vector<1x16x128xbf16>
      %209 = vector.shape_cast %208 : vector<1x16x128xbf16> to vector<16x128xbf16>
      %210 = vector.shape_cast %207 : vector<16x128xbf16> to vector<1x16x128xbf16>
      tpu.vector_store %arg21[%c0_129, %c0_130, %c0_131], %210 {strides = array<i32>} : memref<2x16x128xbf16, #tpu.memory_space<vmem>>, vector<1x16x128xbf16>,
      %c1_132 = arith.constant 1 : index
      %c0_133 = arith.constant 0 : index
      %c0_134 = arith.constant 0 : index
      %211 = vector.load %arg11[%c1_132, %c0_133, %c0_134] : memref<2x256x128xbf16, #tpu.memory_space<vmem>>, vector<1x256x128xbf16>
      %212 = vector.shape_cast %211 : vector<1x256x128xbf16> to vector<256x128xbf16>
      %cst_135 = arith.constant dense<0.000000e+00> : vector<16x128xf32>
      %213 = tpu.matmul %197, %212, %cst_135 {dimension_numbers = #tpu.dot_dimension_numbers<[1], [0], [0], [1], [0, 0, 1, 1], [], []>} : vector<16x256xbf16>, vector<256x128xbf16>, vector<16x128xf32> -> vector<16x128xf32>
      %c1_136 = arith.constant 1 : index
      %c0_137 = arith.constant 0 : index
      %c0_138 = arith.constant 0 : index
      %214 = vector.load %arg12[%c1_136, %c0_137, %c0_138] : memref<2x1x128xf32, #tpu.memory_space<vmem>>, vector<1x1x128xf32>
      %215 = vector.shape_cast %214 : vector<1x1x128xf32> to vector<1x128xf32>
      %216 = vector.broadcast %215 : vector<1x128xf32> to vector<16x128xf32>
      %217 = arith.addf %213, %216 : vector<16x128xf32>
      %cst_139 = arith.constant 0.0883883461 : f32
      %218 = vector.broadcast %cst_139 : f32 to vector<16x128xf32>
      %219 = arith.mulf %217, %218 : vector<16x128xf32>
      %220 = arith.truncf %219 : vector<16x128xf32> to vector<16x128xbf16>
      %c1_140 = arith.constant 1 : index
      %c0_141 = arith.constant 0 : index
      %c0_142 = arith.constant 0 : index
      %221 = vector.load %arg21[%c1_140, %c0_141, %c0_142] : memref<2x16x128xbf16, #tpu.memory_space<vmem>>, vector<1x16x128xbf16>
      %222 = vector.shape_cast %221 : vector<1x16x128xbf16> to vector<16x128xbf16>
      %223 = vector.shape_cast %220 : vector<16x128xbf16> to vector<1x16x128xbf16>
      tpu.vector_store %arg21[%c1_140, %c0_141, %c0_142], %223 {strides = array<i32>} : memref<2x16x128xbf16, #tpu.memory_space<vmem>>, vector<1x16x128xbf16>,
    } else {
    }
    %c0 = arith.constant 0 : index
    %c0_1 = arith.constant 0 : index
    %c0_2 = arith.constant 0 : index
    %7 = vector.load %arg4[%c0, %c0_1, %c0_2] : memref<1x16x256xf32, #tpu.memory_space<vmem>>, vector<1x16x256xf32>
    %8 = vector.shape_cast %7 : vector<1x16x256xf32> to vector<16x256xf32>
    %c0_3 = arith.constant 0 : index
    %c0_4 = arith.constant 0 : index
    %9 = vector.load %arg7[%c0_3, %c0_4] : memref<1x256xf32, #tpu.memory_space<vmem>>, vector<1x256xf32>
    %c0_5 = arith.constant 0 : index
    %c0_6 = arith.constant 0 : index
    %10 = vector.load %arg8[%c0_5, %c0_6] : memref<1x256xf32, #tpu.memory_space<vmem>>, vector<1x256xf32>
    %cst = arith.constant dense<0.000000e+00> : vector<16xf32>
    %11 = vector.multi_reduction <add>, %8, %cst [1] : vector<16x256xf32> to vector<16xf32>
    %12 = vector.shape_cast %11 : vector<16xf32> to vector<16x1xf32>
    %cst_7 = arith.constant 2.560000e+02 : f32
    %13 = vector.broadcast %cst_7 : f32 to vector<16x1xf32>
    %14 = arith.divf %12, %13 : vector<16x1xf32>
    %15 = vector.broadcast %14 : vector<16x1xf32> to vector<16x256xf32>
    %16 = arith.subf %8, %15 : vector<16x256xf32>
    %17 = arith.mulf %16, %16 : vector<16x256xf32>
    %cst_8 = arith.constant dense<0.000000e+00> : vector<16xf32>
    %18 = vector.multi_reduction <add>, %17, %cst_8 [1] : vector<16x256xf32> to vector<16xf32>
    %19 = vector.shape_cast %18 : vector<16xf32> to vector<16x1xf32>
    %cst_9 = arith.constant 2.560000e+02 : f32
    %20 = vector.broadcast %cst_9 : f32 to vector<16x1xf32>
    %21 = arith.divf %19, %20 : vector<16x1xf32>
    %22 = vector.broadcast %14 : vector<16x1xf32> to vector<16x256xf32>
    %23 = arith.subf %8, %22 : vector<16x256xf32>
    %cst_10 = arith.constant 9.99999974E-6 : f32
    %24 = vector.broadcast %cst_10 : f32 to vector<16x1xf32>
    %25 = arith.addf %21, %24 : vector<16x1xf32>
    %26 = math.rsqrt %25 : vector<16x1xf32>
    %27 = vector.broadcast %26 : vector<16x1xf32> to vector<16x256xf32>
    %28 = arith.mulf %23, %27 : vector<16x256xf32>
    %29 = vector.broadcast %9 : vector<1x256xf32> to vector<16x256xf32>
    %30 = arith.mulf %28, %29 : vector<16x256xf32>
    %31 = vector.broadcast %10 : vector<1x256xf32> to vector<16x256xf32>
    %32 = arith.addf %30, %31 : vector<16x256xf32>
    %33 = arith.truncf %32 : vector<16x256xf32> to vector<16x256xbf16>
    %c16_i32 = arith.constant 16 : i32
    %34 = arith.muli %arg1, %c16_i32 : i32
    %35 = tpu.iota {dimensions = array<i32: 1>} : vector<1x16xi32>
    %36 = vector.broadcast %34 : i32 to vector<1x16xi32>
    %37 = arith.addi %36, %35 : vector<1x16xi32>
    %38 = vector.broadcast %3 : i32 to vector<1x16xi32>
    %39 = arith.cmpi slt, %37, %38 : vector<1x16xi32>
    %c0_11 = arith.constant 0 : index
    %c0_12 = arith.constant 0 : index
    %c0_13 = arith.constant 0 : index
    %40 = vector.load %arg13[%c0_11, %c0_12, %c0_13] : memref<2x256x128xbf16, #tpu.memory_space<vmem>>, vector<1x256x128xbf16>
    %41 = vector.shape_cast %40 : vector<1x256x128xbf16> to vector<256x128xbf16>
    %cst_14 = arith.constant dense<0.000000e+00> : vector<16x128xf32>
    %42 = tpu.matmul %33, %41, %cst_14 {dimension_numbers = #tpu.dot_dimension_numbers<[1], [0], [0], [1], [0, 0, 1, 1], [], []>} : vector<16x256xbf16>, vector<256x128xbf16>, vector<16x128xf32> -> vector<16x128xf32>
    %c0_15 = arith.constant 0 : index
    %c0_16 = arith.constant 0 : index
    %c0_17 = arith.constant 0 : index
    %43 = vector.load %arg14[%c0_15, %c0_16, %c0_17] : memref<2x1x128xf32, #tpu.memory_space<vmem>>, vector<1x1x128xf32>
    %44 = vector.shape_cast %43 : vector<1x1x128xf32> to vector<1x128xf32>
    %45 = vector.broadcast %44 : vector<1x128xf32> to vector<16x128xf32>
    %46 = arith.addf %42, %45 : vector<16x128xf32>
    %c0_18 = arith.constant 0 : index
    %c0_19 = arith.constant 0 : index
    %c0_20 = arith.constant 0 : index
    %47 = vector.load %arg15[%c0_18, %c0_19, %c0_20] : memref<2x256x128xbf16, #tpu.memory_space<vmem>>, vector<1x256x128xbf16>
    %48 = vector.shape_cast %47 : vector<1x256x128xbf16> to vector<256x128xbf16>
    %cst_21 = arith.constant dense<0.000000e+00> : vector<16x128xf32>
    %49 = tpu.matmul %33, %48, %cst_21 {dimension_numbers = #tpu.dot_dimension_numbers<[1], [0], [0], [1], [0, 0, 1, 1], [], []>} : vector<16x256xbf16>, vector<256x128xbf16>, vector<16x128xf32> -> vector<16x128xf32>
    %c0_22 = arith.constant 0 : index
    %c0_23 = arith.constant 0 : index
    %c0_24 = arith.constant 0 : index
    %50 = vector.load %arg16[%c0_22, %c0_23, %c0_24] : memref<2x1x128xf32, #tpu.memory_space<vmem>>, vector<1x1x128xf32>
    %51 = vector.shape_cast %50 : vector<1x1x128xf32> to vector<1x128xf32>
    %52 = vector.broadcast %51 : vector<1x128xf32> to vector<16x128xf32>
    %53 = arith.addf %49, %52 : vector<16x128xf32>
    %c0_25 = arith.constant 0 : index
    %c0_26 = arith.constant 0 : index
    %c0_27 = arith.constant 0 : index
    %54 = vector.load %arg21[%c0_25, %c0_26, %c0_27] : memref<2x16x128xbf16, #tpu.memory_space<vmem>>, vector<1x16x128xbf16>
    %55 = vector.shape_cast %54 : vector<1x16x128xbf16> to vector<16x128xbf16>
    %56 = arith.truncf %46 : vector<16x128xf32> to vector<16x128xbf16>
    %cst_28 = arith.constant dense<0.000000e+00> : vector<16x16xf32>
    %57 = tpu.matmul %55, %56, %cst_28 {dimension_numbers = #tpu.dot_dimension_numbers<[1], [1], [0], [0], [0, 0, 1, 0], [], []>} : vector<16x128xbf16>, vector<16x128xbf16>, vector<16x16xf32> -> vector<16x16xf32>
    %cst_29 = arith.constant -1.000000e+30 : f32
    %58 = vector.shape_cast %39 : vector<1x16xi1> to vector<1x16xi1>
    %59 = vector.broadcast %58 : vector<1x16xi1> to vector<16x16xi1>
    %60 = vector.broadcast %cst_29 : f32 to vector<16x16xf32>
    %61 = arith.select %59, %57, %60 : vector<16x16xi1>, vector<16x16xf32>
    %c0_30 = arith.constant 0 : index
    %c0_31 = arith.constant 0 : index
    %c0_32 = arith.constant 0 : index
    %62 = vector.load %arg22[%c0_30, %c0_31, %c0_32] : memref<2x16x1xf32, #tpu.memory_space<vmem>>, vector<1x16x1xf32>
    %63 = vector.shape_cast %62 : vector<1x16x1xf32> to vector<16x1xf32>
    %cst_33 = arith.constant dense<0xFF800000> : vector<16xf32>
    %64 = vector.multi_reduction <maximumf>, %61, %cst_33 [1] : vector<16x16xf32> to vector<16xf32>
    %65 = vector.shape_cast %64 : vector<16xf32> to vector<16x1xf32>
    %66 = arith.maximumf %63, %65 : vector<16x1xf32>
    %67 = arith.subf %63, %66 : vector<16x1xf32>
    %68 = math.exp %67 : vector<16x1xf32>
    %69 = vector.broadcast %66 : vector<16x1xf32> to vector<16x16xf32>
    %70 = arith.subf %61, %69 : vector<16x16xf32>
    %71 = math.exp %70 : vector<16x16xf32>
    %c0_34 = arith.constant 0 : index
    %c0_35 = arith.constant 0 : index
    %c0_36 = arith.constant 0 : index
    %72 = vector.load %arg23[%c0_34, %c0_35, %c0_36] : memref<2x16x1xf32, #tpu.memory_space<vmem>>, vector<1x16x1xf32>
    %73 = vector.shape_cast %72 : vector<1x16x1xf32> to vector<16x1xf32>
    %74 = arith.mulf %68, %73 : vector<16x1xf32>
    %cst_37 = arith.constant dense<0.000000e+00> : vector<16xf32>
    %75 = vector.multi_reduction <add>, %71, %cst_37 [1] : vector<16x16xf32> to vector<16xf32>
    %76 = vector.shape_cast %75 : vector<16xf32> to vector<16x1xf32>
    %77 = arith.addf %74, %76 : vector<16x1xf32>
    %c0_38 = arith.constant 0 : index
    %c0_39 = arith.constant 0 : index
    %c0_40 = arith.constant 0 : index
    %78 = vector.load %arg23[%c0_38, %c0_39, %c0_40] : memref<2x16x1xf32, #tpu.memory_space<vmem>>, vector<1x16x1xf32>
    %79 = vector.shape_cast %78 : vector<1x16x1xf32> to vector<16x1xf32>
    %80 = vector.shape_cast %77 : vector<16x1xf32> to vector<1x16x1xf32>
    tpu.vector_store %arg23[%c0_38, %c0_39, %c0_40], %80 {strides = array<i32>} : memref<2x16x1xf32, #tpu.memory_space<vmem>>, vector<1x16x1xf32>,
    %c0_41 = arith.constant 0 : index
    %c0_42 = arith.constant 0 : index
    %c0_43 = arith.constant 0 : index
    %81 = vector.load %arg24[%c0_41, %c0_42, %c0_43] : memref<2x16x128xf32, #tpu.memory_space<vmem>>, vector<1x16x128xf32>
    %82 = vector.shape_cast %81 : vector<1x16x128xf32> to vector<16x128xf32>
    %83 = vector.broadcast %68 : vector<16x1xf32> to vector<16x128xf32>
    %84 = arith.mulf %83, %82 : vector<16x128xf32>
    %85 = arith.truncf %71 : vector<16x16xf32> to vector<16x16xbf16>
    %86 = arith.truncf %53 : vector<16x128xf32> to vector<16x128xbf16>
    %cst_44 = arith.constant dense<0.000000e+00> : vector<16x128xf32>
    %87 = tpu.matmul %85, %86, %cst_44 {dimension_numbers = #tpu.dot_dimension_numbers<[1], [0], [0], [1], [0, 0, 1, 1], [], []>} : vector<16x16xbf16>, vector<16x128xbf16>, vector<16x128xf32> -> vector<16x128xf32>
    %88 = arith.addf %84, %87 : vector<16x128xf32>
    %c0_45 = arith.constant 0 : index
    %c0_46 = arith.constant 0 : index
    %c0_47 = arith.constant 0 : index
    %89 = vector.load %arg24[%c0_45, %c0_46, %c0_47] : memref<2x16x128xf32, #tpu.memory_space<vmem>>, vector<1x16x128xf32>
    %90 = vector.shape_cast %89 : vector<1x16x128xf32> to vector<16x128xf32>
    %91 = vector.shape_cast %88 : vector<16x128xf32> to vector<1x16x128xf32>
    tpu.vector_store %arg24[%c0_45, %c0_46, %c0_47], %91 {strides = array<i32>} : memref<2x16x128xf32, #tpu.memory_space<vmem>>, vector<1x16x128xf32>,
    %c0_48 = arith.constant 0 : index
    %c0_49 = arith.constant 0 : index
    %c0_50 = arith.constant 0 : index
    %92 = vector.load %arg22[%c0_48, %c0_49, %c0_50] : memref<2x16x1xf32, #tpu.memory_space<vmem>>, vector<1x16x1xf32>
    %93 = vector.shape_cast %92 : vector<1x16x1xf32> to vector<16x1xf32>
    %94 = vector.shape_cast %66 : vector<16x1xf32> to vector<1x16x1xf32>
    tpu.vector_store %arg22[%c0_48, %c0_49, %c0_50], %94 {strides = array<i32>} : memref<2x16x1xf32, #tpu.memory_space<vmem>>, vector<1x16x1xf32>,
    %c1 = arith.constant 1 : index
    %c0_51 = arith.constant 0 : index
    %c0_52 = arith.constant 0 : index
    %95 = vector.load %arg13[%c1, %c0_51, %c0_52] : memref<2x256x128xbf16, #tpu.memory_space<vmem>>, vector<1x256x128xbf16>
    %96 = vector.shape_cast %95 : vector<1x256x128xbf16> to vector<256x128xbf16>
    %cst_53 = arith.constant dense<0.000000e+00> : vector<16x128xf32>
    %97 = tpu.matmul %33, %96, %cst_53 {dimension_numbers = #tpu.dot_dimension_numbers<[1], [0], [0], [1], [0, 0, 1, 1], [], []>} : vector<16x256xbf16>, vector<256x128xbf16>, vector<16x128xf32> -> vector<16x128xf32>
    %c1_54 = arith.constant 1 : index
    %c0_55 = arith.constant 0 : index
    %c0_56 = arith.constant 0 : index
    %98 = vector.load %arg14[%c1_54, %c0_55, %c0_56] : memref<2x1x128xf32, #tpu.memory_space<vmem>>, vector<1x1x128xf32>
    %99 = vector.shape_cast %98 : vector<1x1x128xf32> to vector<1x128xf32>
    %100 = vector.broadcast %99 : vector<1x128xf32> to vector<16x128xf32>
    %101 = arith.addf %97, %100 : vector<16x128xf32>
    %c1_57 = arith.constant 1 : index
    %c0_58 = arith.constant 0 : index
    %c0_59 = arith.constant 0 : index
    %102 = vector.load %arg15[%c1_57, %c0_58, %c0_59] : memref<2x256x128xbf16, #tpu.memory_space<vmem>>, vector<1x256x128xbf16>
    %103 = vector.shape_cast %102 : vector<1x256x128xbf16> to vector<256x128xbf16>
    %cst_60 = arith.constant dense<0.000000e+00> : vector<16x128xf32>
    %104 = tpu.matmul %33, %103, %cst_60 {dimension_numbers = #tpu.dot_dimension_numbers<[1], [0], [0], [1], [0, 0, 1, 1], [], []>} : vector<16x256xbf16>, vector<256x128xbf16>, vector<16x128xf32> -> vector<16x128xf32>
    %c1_61 = arith.constant 1 : index
    %c0_62 = arith.constant 0 : index
    %c0_63 = arith.constant 0 : index
    %105 = vector.load %arg16[%c1_61, %c0_62, %c0_63] : memref<2x1x128xf32, #tpu.memory_space<vmem>>, vector<1x1x128xf32>
    %106 = vector.shape_cast %105 : vector<1x1x128xf32> to vector<1x128xf32>
    %107 = vector.broadcast %106 : vector<1x128xf32> to vector<16x128xf32>
    %108 = arith.addf %104, %107 : vector<16x128xf32>
    %c1_64 = arith.constant 1 : index
    %c0_65 = arith.constant 0 : index
    %c0_66 = arith.constant 0 : index
    %109 = vector.load %arg21[%c1_64, %c0_65, %c0_66] : memref<2x16x128xbf16, #tpu.memory_space<vmem>>, vector<1x16x128xbf16>
    %110 = vector.shape_cast %109 : vector<1x16x128xbf16> to vector<16x128xbf16>
    %111 = arith.truncf %101 : vector<16x128xf32> to vector<16x128xbf16>
    %cst_67 = arith.constant dense<0.000000e+00> : vector<16x16xf32>
    %112 = tpu.matmul %110, %111, %cst_67 {dimension_numbers = #tpu.dot_dimension_numbers<[1], [1], [0], [0], [0, 0, 1, 0], [], []>} : vector<16x128xbf16>, vector<16x128xbf16>, vector<16x16xf32> -> vector<16x16xf32>
    %cst_68 = arith.constant -1.000000e+30 : f32
    %113 = vector.shape_cast %39 : vector<1x16xi1> to vector<1x16xi1>
    %114 = vector.broadcast %113 : vector<1x16xi1> to vector<16x16xi1>
    %115 = vector.broadcast %cst_68 : f32 to vector<16x16xf32>
    %116 = arith.select %114, %112, %115 : vector<16x16xi1>, vector<16x16xf32>
    %c1_69 = arith.constant 1 : index
    %c0_70 = arith.constant 0 : index
    %c0_71 = arith.constant 0 : index
    %117 = vector.load %arg22[%c1_69, %c0_70, %c0_71] : memref<2x16x1xf32, #tpu.memory_space<vmem>>, vector<1x16x1xf32>
    %118 = vector.shape_cast %117 : vector<1x16x1xf32> to vector<16x1xf32>
    %cst_72 = arith.constant dense<0xFF800000> : vector<16xf32>
    %119 = vector.multi_reduction <maximumf>, %116, %cst_72 [1] : vector<16x16xf32> to vector<16xf32>
    %120 = vector.shape_cast %119 : vector<16xf32> to vector<16x1xf32>
    %121 = arith.maximumf %118, %120 : vector<16x1xf32>
    %122 = arith.subf %118, %121 : vector<16x1xf32>
    %123 = math.exp %122 : vector<16x1xf32>
    %124 = vector.broadcast %121 : vector<16x1xf32> to vector<16x16xf32>
    %125 = arith.subf %116, %124 : vector<16x16xf32>
    %126 = math.exp %125 : vector<16x16xf32>
    %c1_73 = arith.constant 1 : index
    %c0_74 = arith.constant 0 : index
    %c0_75 = arith.constant 0 : index
    %127 = vector.load %arg23[%c1_73, %c0_74, %c0_75] : memref<2x16x1xf32, #tpu.memory_space<vmem>>, vector<1x16x1xf32>
    %128 = vector.shape_cast %127 : vector<1x16x1xf32> to vector<16x1xf32>
    %129 = arith.mulf %123, %128 : vector<16x1xf32>
    %cst_76 = arith.constant dense<0.000000e+00> : vector<16xf32>
    %130 = vector.multi_reduction <add>, %126, %cst_76 [1] : vector<16x16xf32> to vector<16xf32>
    %131 = vector.shape_cast %130 : vector<16xf32> to vector<16x1xf32>
    %132 = arith.addf %129, %131 : vector<16x1xf32>
    %c1_77 = arith.constant 1 : index
    %c0_78 = arith.constant 0 : index
    %c0_79 = arith.constant 0 : index
    %133 = vector.load %arg23[%c1_77, %c0_78, %c0_79] : memref<2x16x1xf32, #tpu.memory_space<vmem>>, vector<1x16x1xf32>
    %134 = vector.shape_cast %133 : vector<1x16x1xf32> to vector<16x1xf32>
    %135 = vector.shape_cast %132 : vector<16x1xf32> to vector<1x16x1xf32>
    tpu.vector_store %arg23[%c1_77, %c0_78, %c0_79], %135 {strides = array<i32>} : memref<2x16x1xf32, #tpu.memory_space<vmem>>, vector<1x16x1xf32>,
    %c1_80 = arith.constant 1 : index
    %c0_81 = arith.constant 0 : index
    %c0_82 = arith.constant 0 : index
    %136 = vector.load %arg24[%c1_80, %c0_81, %c0_82] : memref<2x16x128xf32, #tpu.memory_space<vmem>>, vector<1x16x128xf32>
    %137 = vector.shape_cast %136 : vector<1x16x128xf32> to vector<16x128xf32>
    %138 = vector.broadcast %123 : vector<16x1xf32> to vector<16x128xf32>
    %139 = arith.mulf %138, %137 : vector<16x128xf32>
    %140 = arith.truncf %126 : vector<16x16xf32> to vector<16x16xbf16>
    %141 = arith.truncf %108 : vector<16x128xf32> to vector<16x128xbf16>
    %cst_83 = arith.constant dense<0.000000e+00> : vector<16x128xf32>
    %142 = tpu.matmul %140, %141, %cst_83 {dimension_numbers = #tpu.dot_dimension_numbers<[1], [0], [0], [1], [0, 0, 1, 1], [], []>} : vector<16x16xbf16>, vector<16x128xbf16>, vector<16x128xf32> -> vector<16x128xf32>
    %143 = arith.addf %139, %142 : vector<16x128xf32>
    %c1_84 = arith.constant 1 : index
    %c0_85 = arith.constant 0 : index
    %c0_86 = arith.constant 0 : index
    %144 = vector.load %arg24[%c1_84, %c0_85, %c0_86] : memref<2x16x128xf32, #tpu.memory_space<vmem>>, vector<1x16x128xf32>
    %145 = vector.shape_cast %144 : vector<1x16x128xf32> to vector<16x128xf32>
    %146 = vector.shape_cast %143 : vector<16x128xf32> to vector<1x16x128xf32>
    tpu.vector_store %arg24[%c1_84, %c0_85, %c0_86], %146 {strides = array<i32>} : memref<2x16x128xf32, #tpu.memory_space<vmem>>, vector<1x16x128xf32>,
    %c1_87 = arith.constant 1 : index
    %c0_88 = arith.constant 0 : index
    %c0_89 = arith.constant 0 : index
    %147 = vector.load %arg22[%c1_87, %c0_88, %c0_89] : memref<2x16x1xf32, #tpu.memory_space<vmem>>, vector<1x16x1xf32>
    %148 = vector.shape_cast %147 : vector<1x16x1xf32> to vector<16x1xf32>
    %149 = vector.shape_cast %121 : vector<16x1xf32> to vector<1x16x1xf32>
    tpu.vector_store %arg22[%c1_87, %c0_88, %c0_89], %149 {strides = array<i32>} : memref<2x16x1xf32, #tpu.memory_space<vmem>>, vector<1x16x1xf32>,
    %c1_i32 = arith.constant 1 : i32
    %150 = arith.cmpi eq, %arg1, %c1_i32 : i32
    %151 = arith.extui %150 : i1 to i32
    %c0_i32_90 = arith.constant 0 : i32
    %152 = arith.cmpi ne, %151, %c0_i32_90 : i32
    scf.if %152 {
      %cst_91 = arith.constant 0.000000e+00 : f32
      %153 = vector.broadcast %cst_91 : f32 to vector<16x256xf32>
      %c0_92 = arith.constant 0 : index
      %c0_93 = arith.constant 0 : index
      %c0_94 = arith.constant 0 : index
      %154 = vector.load %arg20[%c0_92, %c0_93, %c0_94] : memref<1x16x256xf32, #tpu.memory_space<vmem>>, vector<1x16x256xf32>
      %155 = vector.shape_cast %154 : vector<1x16x256xf32> to vector<16x256xf32>
      %156 = vector.shape_cast %153 : vector<16x256xf32> to vector<1x16x256xf32>
      tpu.vector_store %arg20[%c0_92, %c0_93, %c0_94], %156 {strides = array<i32>} : memref<1x16x256xf32, #tpu.memory_space<vmem>>, vector<1x16x256xf32>,
      %c0_95 = arith.constant 0 : index
      %c0_96 = arith.constant 0 : index
      %c0_97 = arith.constant 0 : index
      %157 = vector.load %arg23[%c0_95, %c0_96, %c0_97] : memref<2x16x1xf32, #tpu.memory_space<vmem>>, vector<1x16x1xf32>
      %158 = vector.shape_cast %157 : vector<1x16x1xf32> to vector<16x1xf32>
      %159 = tpu.reciprocal %158 {approx = true} : vector<16x1xf32> -> vector<16x1xf32>
      %c0_98 = arith.constant 0 : index
      %c0_99 = arith.constant 0 : index
      %c0_100 = arith.constant 0 : index
      %160 = vector.load %arg24[%c0_98, %c0_99, %c0_100] : memref<2x16x128xf32, #tpu.memory_space<vmem>>, vector<1x16x128xf32>
      %161 = vector.shape_cast %160 : vector<1x16x128xf32> to vector<16x128xf32>
      %162 = vector.broadcast %159 : vector<16x1xf32> to vector<16x128xf32>
      %163 = arith.mulf %161, %162 : vector<16x128xf32>
      %164 = arith.truncf %163 : vector<16x128xf32> to vector<16x128xbf16>
      %c0_101 = arith.constant 0 : index
      %c0_102 = arith.constant 0 : index
      %c0_103 = arith.constant 0 : index
      %165 = vector.load %arg20[%c0_101, %c0_102, %c0_103] : memref<1x16x256xf32, #tpu.memory_space<vmem>>, vector<1x16x256xf32>
      %166 = vector.shape_cast %165 : vector<1x16x256xf32> to vector<16x256xf32>
      %c0_104 = arith.constant 0 : index
      %c0_105 = arith.constant 0 : index
      %c0_106 = arith.constant 0 : index
      %167 = vector.load %arg17[%c0_104, %c0_105, %c0_106] : memref<2x128x256xbf16, #tpu.memory_space<vmem>>, vector<1x128x256xbf16>
      %168 = vector.shape_cast %167 : vector<1x128x256xbf16> to vector<128x256xbf16>
      %cst_107 = arith.constant dense<0.000000e+00> : vector<16x256xf32>
      %169 = tpu.matmul %164, %168, %cst_107 {dimension_numbers = #tpu.dot_dimension_numbers<[1], [0], [0], [1], [0, 0, 1, 1], [], []>} : vector<16x128xbf16>, vector<128x256xbf16>, vector<16x256xf32> -> vector<16x256xf32>
      %170 = arith.addf %166, %169 : vector<16x256xf32>
      %c0_108 = arith.constant 0 : index
      %c0_109 = arith.constant 0 : index
      %c0_110 = arith.constant 0 : index
      %171 = vector.load %arg20[%c0_108, %c0_109, %c0_110] : memref<1x16x256xf32, #tpu.memory_space<vmem>>, vector<1x16x256xf32>
      %172 = vector.shape_cast %171 : vector<1x16x256xf32> to vector<16x256xf32>
      %173 = vector.shape_cast %170 : vector<16x256xf32> to vector<1x16x256xf32>
      tpu.vector_store %arg20[%c0_108, %c0_109, %c0_110], %173 {strides = array<i32>} : memref<1x16x256xf32, #tpu.memory_space<vmem>>, vector<1x16x256xf32>,
      %c1_111 = arith.constant 1 : index
      %c0_112 = arith.constant 0 : index
      %c0_113 = arith.constant 0 : index
      %174 = vector.load %arg23[%c1_111, %c0_112, %c0_113] : memref<2x16x1xf32, #tpu.memory_space<vmem>>, vector<1x16x1xf32>
      %175 = vector.shape_cast %174 : vector<1x16x1xf32> to vector<16x1xf32>
      %176 = tpu.reciprocal %175 {approx = true} : vector<16x1xf32> -> vector<16x1xf32>
      %c1_114 = arith.constant 1 : index
      %c0_115 = arith.constant 0 : index
      %c0_116 = arith.constant 0 : index
      %177 = vector.load %arg24[%c1_114, %c0_115, %c0_116] : memref<2x16x128xf32, #tpu.memory_space<vmem>>, vector<1x16x128xf32>
      %178 = vector.shape_cast %177 : vector<1x16x128xf32> to vector<16x128xf32>
      %179 = vector.broadcast %176 : vector<16x1xf32> to vector<16x128xf32>
      %180 = arith.mulf %178, %179 : vector<16x128xf32>
      %181 = arith.truncf %180 : vector<16x128xf32> to vector<16x128xbf16>
      %c0_117 = arith.constant 0 : index
      %c0_118 = arith.constant 0 : index
      %c0_119 = arith.constant 0 : index
      %182 = vector.load %arg20[%c0_117, %c0_118, %c0_119] : memref<1x16x256xf32, #tpu.memory_space<vmem>>, vector<1x16x256xf32>
      %183 = vector.shape_cast %182 : vector<1x16x256xf32> to vector<16x256xf32>
      %c1_120 = arith.constant 1 : index
      %c0_121 = arith.constant 0 : index
      %c0_122 = arith.constant 0 : index
      %184 = vector.load %arg17[%c1_120, %c0_121, %c0_122] : memref<2x128x256xbf16, #tpu.memory_space<vmem>>, vector<1x128x256xbf16>
      %185 = vector.shape_cast %184 : vector<1x128x256xbf16> to vector<128x256xbf16>
      %cst_123 = arith.constant dense<0.000000e+00> : vector<16x256xf32>
      %186 = tpu.matmul %181, %185, %cst_123 {dimension_numbers = #tpu.dot_dimension_numbers<[1], [0], [0], [1], [0, 0, 1, 1], [], []>} : vector<16x128xbf16>, vector<128x256xbf16>, vector<16x256xf32> -> vector<16x256xf32>
      %187 = arith.addf %183, %186 : vector<16x256xf32>
      %c0_124 = arith.constant 0 : index
      %c0_125 = arith.constant 0 : index
      %c0_126 = arith.constant 0 : index
      %188 = vector.load %arg20[%c0_124, %c0_125, %c0_126] : memref<1x16x256xf32, #tpu.memory_space<vmem>>, vector<1x16x256xf32>
      %189 = vector.shape_cast %188 : vector<1x16x256xf32> to vector<16x256xf32>
      %190 = vector.shape_cast %187 : vector<16x256xf32> to vector<1x16x256xf32>
      tpu.vector_store %arg20[%c0_124, %c0_125, %c0_126], %190 {strides = array<i32>} : memref<1x16x256xf32, #tpu.memory_space<vmem>>, vector<1x16x256xf32>,
      %c0_127 = arith.constant 0 : index
      %c0_128 = arith.constant 0 : index
      %c0_129 = arith.constant 0 : index
      %191 = vector.load %arg6[%c0_127, %c0_128, %c0_129] : memref<1x3x256xf32, #tpu.memory_space<vmem>>, vector<1x3x256xf32>
      %192 = vector.shape_cast %191 : vector<1x3x256xf32> to vector<3x256xf32>
      %c0_130 = arith.constant 0 : index
      %c0_131 = arith.constant 0 : index
      %193 = vector.load %arg19[%c0_130, %c0_131] : memref<3x256xf32, #tpu.memory_space<vmem>>, vector<3x256xf32>
      %194 = arith.addf %192, %193 : vector<3x256xf32>
      %195 = vector.extract_strided_slice %194 {offsets = [2, 0], sizes = [1, 256], strides = [1, 1]} : vector<3x256xf32> to vector<1x256xf32>
      %c0_132 = arith.constant 0 : index
      %c0_133 = arith.constant 0 : index
      %c0_134 = arith.constant 0 : index
      %196 = vector.load %arg20[%c0_132, %c0_133, %c0_134] : memref<1x16x256xf32, #tpu.memory_space<vmem>>, vector<1x16x256xf32>
      %197 = vector.shape_cast %196 : vector<1x16x256xf32> to vector<16x256xf32>
      %c0_135 = arith.constant 0 : index
      %c0_136 = arith.constant 0 : index
      %198 = vector.load %arg18[%c0_135, %c0_136] : memref<1x256xf32, #tpu.memory_space<vmem>>, vector<1x256xf32>
      %199 = vector.broadcast %198 : vector<1x256xf32> to vector<16x256xf32>
      %200 = arith.addf %197, %199 : vector<16x256xf32>
      %201 = vector.broadcast %195 : vector<1x256xf32> to vector<16x256xf32>
      %202 = arith.mulf %200, %201 : vector<16x256xf32>
      %203 = tpu.iota {dimensions = array<i32: 0>} : vector<16x1xi32>
      %204 = vector.broadcast %1 : i32 to vector<16x1xi32>
      %205 = arith.cmpi slt, %203, %204 : vector<16x1xi32>
      %cst_137 = arith.constant 0.000000e+00 : f32
      %206 = vector.shape_cast %205 : vector<16x1xi1> to vector<16x1xi1>
      %207 = vector.broadcast %206 : vector<16x1xi1> to vector<16x256xi1>
      %208 = vector.broadcast %cst_137 : f32 to vector<16x256xf32>
      %209 = arith.select %207, %202, %208 : vector<16x256xi1>, vector<16x256xf32>
      %c0_138 = arith.constant 0 : index
      %c0_139 = arith.constant 0 : index
      %c0_140 = arith.constant 0 : index
      %210 = vector.load %arg20[%c0_138, %c0_139, %c0_140] : memref<1x16x256xf32, #tpu.memory_space<vmem>>, vector<1x16x256xf32>
      %211 = vector.shape_cast %210 : vector<1x16x256xf32> to vector<16x256xf32>
      %212 = vector.shape_cast %209 : vector<16x256xf32> to vector<1x16x256xf32>
      tpu.vector_store %arg20[%c0_138, %c0_139, %c0_140], %212 {strides = array<i32>} : memref<1x16x256xf32, #tpu.memory_space<vmem>>, vector<1x16x256xf32>,
    } else {
    }
    return
  }
  func.func @transform_0(%arg0: i32, %arg1: i32, %arg2: memref<2xi32, #tpu.memory_space<smem>>, %arg3: memref<2xi32, #tpu.memory_space<smem>>) -> (i32, i32, i32) {
    %c0_i32 = arith.constant 0 : i32
    %c0_i32_0 = arith.constant 0 : i32
    return %arg0, %arg1, %c0_i32 : i32, i32, i32
  }
  func.func @transform_1(%arg0: i32, %arg1: i32, %arg2: memref<2xi32, #tpu.memory_space<smem>>, %arg3: memref<2xi32, #tpu.memory_space<smem>>) -> (i32, i32, i32) {
    %c0_i32 = arith.constant 0 : i32
    %c0_i32_0 = arith.constant 0 : i32
    %c0_i32_1 = arith.constant 0 : i32
    return %arg0, %c0_i32, %c0_i32_0 : i32, i32, i32
  }
  func.func @transform_2(%arg0: i32, %arg1: i32, %arg2: memref<2xi32, #tpu.memory_space<smem>>, %arg3: memref<2xi32, #tpu.memory_space<smem>>) -> (i32, i32, i32) {
    %c0_i32 = arith.constant 0 : i32
    %c0_i32_0 = arith.constant 0 : i32
    %c0_i32_1 = arith.constant 0 : i32
    return %arg0, %c0_i32, %c0_i32_0 : i32, i32, i32
  }
  func.func @transform_3(%arg0: i32, %arg1: i32, %arg2: memref<2xi32, #tpu.memory_space<smem>>, %arg3: memref<2xi32, #tpu.memory_space<smem>>) -> (i32, i32) {
    %c0_i32 = arith.constant 0 : i32
    %c0_i32_0 = arith.constant 0 : i32
    %c0_i32_1 = arith.constant 0 : i32
    return %c0_i32, %c0_i32_0 : i32, i32
  }
  func.func @transform_4(%arg0: i32, %arg1: i32, %arg2: memref<2xi32, #tpu.memory_space<smem>>, %arg3: memref<2xi32, #tpu.memory_space<smem>>) -> (i32, i32) {
    %c0_i32 = arith.constant 0 : i32
    %c0_i32_0 = arith.constant 0 : i32
    %c0_i32_1 = arith.constant 0 : i32
    return %c0_i32, %c0_i32_0 : i32, i32
  }
  func.func @transform_5(%arg0: i32, %arg1: i32, %arg2: memref<2xi32, #tpu.memory_space<smem>>, %arg3: memref<2xi32, #tpu.memory_space<smem>>) -> (i32, i32) {
    %c0_i32 = arith.constant 0 : i32
    %c0_i32_0 = arith.constant 0 : i32
    %c0_i32_1 = arith.constant 0 : i32
    return %c0_i32, %c0_i32_0 : i32, i32
  }
  func.func @transform_6(%arg0: i32, %arg1: i32, %arg2: memref<2xi32, #tpu.memory_space<smem>>, %arg3: memref<2xi32, #tpu.memory_space<smem>>) -> (i32, i32) {
    %c0_i32 = arith.constant 0 : i32
    %c0_i32_0 = arith.constant 0 : i32
    %c0_i32_1 = arith.constant 0 : i32
    return %c0_i32, %c0_i32_0 : i32, i32
  }
  func.func @transform_7(%arg0: i32, %arg1: i32, %arg2: memref<2xi32, #tpu.memory_space<smem>>, %arg3: memref<2xi32, #tpu.memory_space<smem>>) -> (i32, i32, i32) {
    %c0_i32 = arith.constant 0 : i32
    %c0_i32_0 = arith.constant 0 : i32
    %c0_i32_1 = arith.constant 0 : i32
    %c0_i32_2 = arith.constant 0 : i32
    return %c0_i32, %c0_i32_0, %c0_i32_1 : i32, i32, i32
  }
  func.func @transform_8(%arg0: i32, %arg1: i32, %arg2: memref<2xi32, #tpu.memory_space<smem>>, %arg3: memref<2xi32, #tpu.memory_space<smem>>) -> (i32, i32, i32) {
    %c0_i32 = arith.constant 0 : i32
    %c0_i32_0 = arith.constant 0 : i32
    %c0_i32_1 = arith.constant 0 : i32
    %c0_i32_2 = arith.constant 0 : i32
    return %c0_i32, %c0_i32_0, %c0_i32_1 : i32, i32, i32
  }
  func.func @transform_9(%arg0: i32, %arg1: i32, %arg2: memref<2xi32, #tpu.memory_space<smem>>, %arg3: memref<2xi32, #tpu.memory_space<smem>>) -> (i32, i32, i32) {
    %c0_i32 = arith.constant 0 : i32
    %c0_i32_0 = arith.constant 0 : i32
    %c0_i32_1 = arith.constant 0 : i32
    %c0_i32_2 = arith.constant 0 : i32
    return %c0_i32, %c0_i32_0, %c0_i32_1 : i32, i32, i32
  }
  func.func @transform_10(%arg0: i32, %arg1: i32, %arg2: memref<2xi32, #tpu.memory_space<smem>>, %arg3: memref<2xi32, #tpu.memory_space<smem>>) -> (i32, i32, i32) {
    %c0_i32 = arith.constant 0 : i32
    %c0_i32_0 = arith.constant 0 : i32
    %c0_i32_1 = arith.constant 0 : i32
    %c0_i32_2 = arith.constant 0 : i32
    return %c0_i32, %c0_i32_0, %c0_i32_1 : i32, i32, i32
  }
  func.func @transform_11(%arg0: i32, %arg1: i32, %arg2: memref<2xi32, #tpu.memory_space<smem>>, %arg3: memref<2xi32, #tpu.memory_space<smem>>) -> (i32, i32, i32) {
    %c0_i32 = arith.constant 0 : i32
    %c0_i32_0 = arith.constant 0 : i32
    %c0_i32_1 = arith.constant 0 : i32
    %c0_i32_2 = arith.constant 0 : i32
    return %c0_i32, %c0_i32_0, %c0_i32_1 : i32, i32, i32
  }
  func.func @transform_12(%arg0: i32, %arg1: i32, %arg2: memref<2xi32, #tpu.memory_space<smem>>, %arg3: memref<2xi32, #tpu.memory_space<smem>>) -> (i32, i32, i32) {
    %c0_i32 = arith.constant 0 : i32
    %c0_i32_0 = arith.constant 0 : i32
    %c0_i32_1 = arith.constant 0 : i32
    %c0_i32_2 = arith.constant 0 : i32
    return %c0_i32, %c0_i32_0, %c0_i32_1 : i32, i32, i32
  }
  func.func @transform_13(%arg0: i32, %arg1: i32, %arg2: memref<2xi32, #tpu.memory_space<smem>>, %arg3: memref<2xi32, #tpu.memory_space<smem>>) -> (i32, i32, i32) {
    %c0_i32 = arith.constant 0 : i32
    %c0_i32_0 = arith.constant 0 : i32
    %c0_i32_1 = arith.constant 0 : i32
    %c0_i32_2 = arith.constant 0 : i32
    return %c0_i32, %c0_i32_0, %c0_i32_1 : i32, i32, i32
  }
  func.func @transform_14(%arg0: i32, %arg1: i32, %arg2: memref<2xi32, #tpu.memory_space<smem>>, %arg3: memref<2xi32, #tpu.memory_space<smem>>) -> (i32, i32) {
    %c0_i32 = arith.constant 0 : i32
    %c0_i32_0 = arith.constant 0 : i32
    %c0_i32_1 = arith.constant 0 : i32
    return %c0_i32, %c0_i32_0 : i32, i32
  }
  func.func @transform_15(%arg0: i32, %arg1: i32, %arg2: memref<2xi32, #tpu.memory_space<smem>>, %arg3: memref<2xi32, #tpu.memory_space<smem>>) -> (i32, i32) {
    %c0_i32 = arith.constant 0 : i32
    %c0_i32_0 = arith.constant 0 : i32
    %c0_i32_1 = arith.constant 0 : i32
    return %c0_i32, %c0_i32_0 : i32, i32
  }
  func.func @transform_16(%arg0: i32, %arg1: i32, %arg2: memref<2xi32, #tpu.memory_space<smem>>, %arg3: memref<2xi32, #tpu.memory_space<smem>>) -> (i32, i32, i32) {
    %c0_i32 = arith.constant 0 : i32
    %c0_i32_0 = arith.constant 0 : i32
    %c0_i32_1 = arith.constant 0 : i32
    return %arg0, %c0_i32, %c0_i32_0 : i32, i32, i32
  }
}

</mosaic_0001>

<llo_original>
// kernel: tpu_custom_call.1
$region0: #{tpu_custom_call.1}
  #allocation0 [shape = 'u32[]', space=smem, size = 0x4, offset = 0x4, fixed_abs, tag = 'smem constant byte address 0x4 - core index']
  #allocation1 [shape = 'u32[144,128]{1,0:T(1,128)}', space=vmem, size = 0x12000, scoped, tag = 'internal scratch']
  #allocation2 [shape = 'bf16[2,16,128]{2,1,0:T(16,128)(2,1)}', space=vmem, size = 0x2000, scoped, tag = 'scratch operand']
  #allocation3 [shape = 'f32[2,16,1]{2,1,0:T(8,128)}', space=vmem, size = 0x4000, scoped, tag = 'scratch operand']
  #allocation4 [shape = 'f32[2,16,1]{2,1,0:T(8,128)}', space=vmem, size = 0x4000, scoped, tag = 'scratch operand']
  #allocation5 [shape = 'f32[2,16,128]{2,1,0:T(8,128)}', space=vmem, size = 0x4000, scoped, tag = 'scratch operand']
  #allocation6 [shape = 's32[1]{0}', space=sflag, size = 0x4, scoped, tag = 'scoped memory for tpu_custom_call.1']
  #allocation7 [shape = 'u8[512]{0}', space=smem, size = 0x200, scoped, tag = 'prefetched SMEM operand 0']
  #allocation8 [shape = 'u8[512]{0}', space=smem, size = 0x200, scoped, tag = 'prefetched SMEM operand 1']
  %s0 = inlined_call_operand.hbm [shape: s32[2], index: 0, kind: input, shape index: {}]
  %s1 = inlined_call_operand.hbm [shape: s32[2], index: 1, kind: input, shape index: {}]
  %s2 = inlined_call_operand.hbm [shape: f32[2,32,256], index: 2, kind: input, shape index: {}]
  %s3 = inlined_call_operand.hbm [shape: f32[2,16,256], index: 3, kind: input, shape index: {}]
  %s4 = inlined_call_operand.hbm [shape: f32[2,3,256], index: 4, kind: input, shape index: {}]
  %s5 = inlined_call_operand.hbm [shape: f32[1,256], index: 5, kind: input, shape index: {}]
  %s6 = inlined_call_operand.hbm [shape: f32[1,256], index: 6, kind: input, shape index: {}]
  %s7 = inlined_call_operand.hbm [shape: f32[1,256], index: 7, kind: input, shape index: {}]
  %s8 = inlined_call_operand.hbm [shape: f32[1,256], index: 8, kind: input, shape index: {}]
  %s9 = inlined_call_operand.hbm [shape: bf16[2,256,128], index: 9, kind: input, shape index: {}]
  %s10 = inlined_call_operand.hbm [shape: f32[2,1,128], index: 10, kind: input, shape index: {}]
  %s11 = inlined_call_operand.hbm [shape: bf16[2,256,128], index: 11, kind: input, shape index: {}]
  %s12 = inlined_call_operand.hbm [shape: f32[2,1,128], index: 12, kind: input, shape index: {}]
  %s13 = inlined_call_operand.hbm [shape: bf16[2,256,128], index: 13, kind: input, shape index: {}]
  %s14 = inlined_call_operand.hbm [shape: f32[2,1,128], index: 14, kind: input, shape index: {}]
  %s15 = inlined_call_operand.hbm [shape: bf16[2,128,256], index: 15, kind: input, shape index: {}]
  %s16 = inlined_call_operand.hbm [shape: f32[1,256], index: 16, kind: input, shape index: {}]
  %s17 = inlined_call_operand.hbm [shape: f32[3,256], index: 17, kind: input, shape index: {}]
  %s18 = inlined_call_operand.hbm [shape: f32[2,16,256], index: 18, kind: output, shape index: {}]
  %s19 = sld [smem:[#allocation0]]
  $region169: #{tpu_custom_call.1} parent=0
    _
  %s21 = ssub.s32 1, %s19
  %s22 = scalar_select 0, %s21, %s19
  %24 = dma.hbm_to_smem %s0, 16, [#allocation7], [#allocation6]
  %26 = dma.hbm_to_smem %s1, 16, [#allocation8], [#allocation6]
  %27 = dma.done [#allocation6], 32
  %28 = sfence
  $region1: #{tpu_custom_call.1} parent=0
    #allocation9 [shape = 'u8[32768]{0}', space=vmem, size = 0x8000, scoped, tag = 'input window, operand 2']
    #allocation10 [shape = 's32[2]{0}', space=sflag, size = 0x8, scoped, tag = 'scoped memory for tpu_custom_call.1']
    #allocation11 [shape = 's32[2]{0}', space=sflag, size = 0x8, scoped, tag = 'scoped memory for tpu_custom_call.1']
    #allocation12 [shape = 'u8[32768]{0}', space=vmem, size = 0x8000, scoped, tag = 'input window, operand 3']
    #allocation13 [shape = 's32[2]{0}', space=sflag, size = 0x8, scoped, tag = 'scoped memory for tpu_custom_call.1']
    #allocation14 [shape = 'u8[8192]{0}', space=vmem, size = 0x2000, scoped, tag = 'input window, operand 4']
    #allocation15 [shape = 'u8[1024]{0}', space=vmem, size = 0x400, scoped, tag = 'input window, operand 5, single buffered']
    #allocation16 [shape = 's32[1]{0}', space=sflag, size = 0x4, scoped, tag = 'scoped memory for tpu_custom_call.1']
    #allocation17 [shape = 'u8[1024]{0}', space=vmem, size = 0x400, scoped, tag = 'input window, operand 6, single buffered']
    #allocation18 [shape = 'u8[1024]{0}', space=vmem, size = 0x400, scoped, tag = 'input window, operand 7, single buffered']
    #allocation19 [shape = 's32[1]{0}', space=sflag, size = 0x4, scoped, tag = 'scoped memory for tpu_custom_call.1']
    #allocation20 [shape = 'u8[1024]{0}', space=vmem, size = 0x400, scoped, tag = 'input window, operand 8, single buffered']
    #allocation21 [shape = 'u8[131072]{0}', space=vmem, size = 0x20000, scoped, tag = 'input window, operand 9, single buffered']
    #allocation22 [shape = 's32[1]{0}', space=sflag, size = 0x4, scoped, tag = 'scoped memory for tpu_custom_call.1']
    #allocation23 [shape = 'u8[1024]{0}', space=vmem, size = 0x400, scoped, tag = 'input window, operand 10, single buffered']
    #allocation24 [shape = 'u8[131072]{0}', space=vmem, size = 0x20000, scoped, tag = 'input window, operand 11, single buffered']
    #allocation25 [shape = 's32[1]{0}', space=sflag, size = 0x4, scoped, tag = 'scoped memory for tpu_custom_call.1']
    #allocation26 [shape = 'u8[1024]{0}', space=vmem, size = 0x400, scoped, tag = 'input window, operand 12, single buffered']
    #allocation27 [shape = 'u8[131072]{0}', space=vmem, size = 0x20000, scoped, tag = 'input window, operand 13, single buffered']
    #allocation28 [shape = 's32[1]{0}', space=sflag, size = 0x4, scoped, tag = 'scoped memory for tpu_custom_call.1']
    #allocation29 [shape = 'u8[1024]{0}', space=vmem, size = 0x400, scoped, tag = 'input window, operand 14, single buffered']
    #allocation30 [shape = 'u8[131072]{0}', space=vmem, size = 0x20000, scoped, tag = 'input window, operand 15, single buffered']
    #allocation31 [shape = 's32[1]{0}', space=sflag, size = 0x4, scoped, tag = 'scoped memory for tpu_custom_call.1']
    #allocation32 [shape = 'u8[1024]{0}', space=vmem, size = 0x400, scoped, tag = 'input window, operand 16, single buffered']
    #allocation33 [shape = 'u8[4096]{0}', space=vmem, size = 0x1000, scoped, tag = 'input window, operand 17, single buffered']
    #allocation34 [shape = 's32[1]{0}', space=sflag, size = 0x4, scoped, tag = 'scoped memory for tpu_custom_call.1']
    #allocation35 [shape = 'u8[32768]{0}', space=vmem, size = 0x8000, scoped, tag = 'output window, operand 0']
    %29 = vsyncpa [#allocation10], 0
    %s30 = scalar_lea.sflag [#allocation10], 1
    %31 = vsyncpa %s30, 0
    %32 = vsyncpa [#allocation13], 0
    %s33 = scalar_lea.sflag [#allocation13], 1
    %34 = vsyncpa %s33, 0
    %35 = vsyncpa [#allocation16], 0
    %36 = vsyncpa [#allocation19], 0
    %37 = vsyncpa [#allocation22], 0
    %38 = vsyncpa [#allocation25], 0
    %39 = vsyncpa [#allocation28], 0
    %40 = vsyncpa [#allocation31], 0
    %41 = vsyncpa [#allocation34], 0
    %42 = vsyncpa [#allocation11], 0
    %s43 = scalar_lea.sflag [#allocation11], 1
    %44 = vsyncpa %s43, 0
    loop: start=0, step=1, limit=6
    $region2: #{tpu_custom_call.1} parent=1 // loop_pre_header
      _
    $region3: #{tpu_custom_call.1} parent=1 // loop_header
      %s46 = sphi 0, %s50
      %p47 = scmp.ge.s32.totalorder %s46, 6
      %s53 = sphi 0, %s65
      %s54 = sphi 0, %s61
      %s55 = sphi 0, %s53
      %s56 = sphi 0, %s54
      %s57 = sphi 0, %s55
      %s58 = sphi 0, %s56
      %s70 = sphi 0, %s72
      %s73 = sphi 0, %s70
      %s74 = sphi 0, %s73
      %s90 = sphi 0, %s74
      %s96 = sphi 0, %s98
      %s99 = sphi 0, %s96
      %s100 = sphi 0, %s99
      %s116 = sphi 0, %s100
      %s122 = sphi 0, %s124
      %s125 = sphi 0, %s122
      %s126 = sphi 0, %s125
      %s142 = sphi 0, %s126
      %s146 = sphi 0, %s146
      %s148 = sphi 0, %s146
      %s149 = sphi 0, %s148
      %s163 = sphi 0, %s149
      %s167 = sphi 0, %s167
      %s169 = sphi 0, %s167
      %s170 = sphi 0, %s169
      %s184 = sphi 0, %s170
      %s188 = sphi 0, %s188
      %s190 = sphi 0, %s188
      %s191 = sphi 0, %s190
      %s205 = sphi 0, %s191
      %s209 = sphi 0, %s209
      %s211 = sphi 0, %s209
      %s212 = sphi 0, %s211
      %s226 = sphi 0, %s212
      %s230 = sphi 0, %s230
      %s232 = sphi 0, %s230
      %s233 = sphi 0, %s232
      %s247 = sphi 0, %s233
      %s251 = sphi 0, %s251
      %s253 = sphi 0, %s251
      %s254 = sphi 0, %s253
      %s268 = sphi 0, %s254
      %s272 = sphi 0, %s272
      %s274 = sphi 0, %s272
      %s275 = sphi 0, %s274
      %s289 = sphi 0, %s275
      %s293 = sphi 0, %s293
      %s295 = sphi 0, %s293
      %s296 = sphi 0, %s295
      %s310 = sphi 0, %s296
      %s314 = sphi 0, %s314
      %s316 = sphi 0, %s314
      %s317 = sphi 0, %s316
      %s331 = sphi 0, %s317
      %s335 = sphi 0, %s335
      %s337 = sphi 0, %s335
      %s338 = sphi 0, %s337
      %s352 = sphi 0, %s338
      %s356 = sphi 0, %s356
      %s358 = sphi 0, %s356
      %s359 = sphi 0, %s358
      %s373 = sphi 0, %s359
      %s377 = sphi 0, %s377
      %s379 = sphi 0, %s377
      %s380 = sphi 0, %s379
      %s394 = sphi 0, %s380
      %s398 = sphi 0, %s398
      %s400 = sphi 0, %s398
      %s401 = sphi 0, %s400
      %s415 = sphi 0, %s401
      %s421 = sphi 0, %s423
      %s424 = sphi 0, %s421
      %s425 = sphi 0, %s424
      %s441 = sphi 0, %s425
    $region4: #{tpu_custom_call.1} parent=1 // loop_header_branch
      %49 = sbr.rel (%p47) target = $region8
    $region5: #{tpu_custom_call.1} parent=1 // loop_body
      %s51 = ssub.s32 %s46, 1
      %s52 = ssub.s32 %s46, 2
      %s59 = sadd.s32 1, %s54
      %p60 = scmp.ge.s32.totalorder %s59, 2
      %s61 = scalar_select %p60, 0, %s59
      %s62 = sadd.s32 1, %s53
      %s63 = scalar_select %p60, %s62, %s53
      %p64 = scmp.ge.s32.totalorder %s63, 2
      %s65 = scalar_select %p64, 0, %s63
      %s66 = ssub.s32 %s53, %s65
      %s67 = ssub.s32 %s54, %s61
      %s68 = sor.u32 %s66, %s67
      %p69 = scmp.eq.s32.totalorder %s68, 0
      %s71 = sadd.s32 %s70, 1
      %s72 = scalar_select %p69, %s70, %s71
      %p75 = pneg %p69
      %p76 = scmp.eq.s32.totalorder %s46, 3
      %p77 = por %p75, %p76
      %p78 = scmp.ne.s32.totalorder %s70, %s73
      %p79 = scmp.eq.s32.totalorder %s46, 0
      %p80 = por %p78, %p79
      %p81 = scmp.ne.s32.totalorder %s70, %s73
      %p82 = scmp.eq.s32.totalorder %s51, 3
      %p83 = por %p81, %p82
      %p84 = scmp.ne.s32.totalorder %s73, %s74
      %p85 = scmp.eq.s32.totalorder %s51, 0
      %p86 = por %p84, %p85
      %p87 = scmp.ne.s32.totalorder %s73, %s74
      %p88 = scmp.eq.s32.totalorder %s52, 3
      %p89 = por %p87, %p88
      %p91 = scmp.ne.s32.totalorder %s74, %s90
      %p92 = scmp.eq.s32.totalorder %s52, 0
      %p93 = por %p91, %p92
      %s94 = ssub.s32 %s53, %s65
      %p95 = scmp.eq.s32.totalorder %s94, 0
      %s97 = sadd.s32 %s96, 1
      %s98 = scalar_select %p95, %s96, %s97
      %p101 = pneg %p95
      %p102 = scmp.eq.s32.totalorder %s46, 3
      %p103 = por %p101, %p102
      %p104 = scmp.ne.s32.totalorder %s96, %s99
      %p105 = scmp.eq.s32.totalorder %s46, 0
      %p106 = por %p104, %p105
      %p107 = scmp.ne.s32.totalorder %s96, %s99
      %p108 = scmp.eq.s32.totalorder %s51, 3
      %p109 = por %p107, %p108
      %p110 = scmp.ne.s32.totalorder %s99, %s100
      %p111 = scmp.eq.s32.totalorder %s51, 0
      %p112 = por %p110, %p111
      %p113 = scmp.ne.s32.totalorder %s99, %s100
      %p114 = scmp.eq.s32.totalorder %s52, 3
      %p115 = por %p113, %p114
      %p117 = scmp.ne.s32.totalorder %s100, %s116
      %p118 = scmp.eq.s32.totalorder %s52, 0
      %p119 = por %p117, %p118
      %s120 = ssub.s32 %s53, %s65
      %p121 = scmp.eq.s32.totalorder %s120, 0
      %s123 = sadd.s32 %s122, 1
      %s124 = scalar_select %p121, %s122, %s123
      %p127 = pneg %p121
      %p128 = scmp.eq.s32.totalorder %s46, 3
      %p129 = por %p127, %p128
      %p130 = scmp.ne.s32.totalorder %s122, %s125
      %p131 = scmp.eq.s32.totalorder %s46, 0
      %p132 = por %p130, %p131
      %p133 = scmp.ne.s32.totalorder %s122, %s125
      %p134 = scmp.eq.s32.totalorder %s51, 3
      %p135 = por %p133, %p134
      %p136 = scmp.ne.s32.totalorder %s125, %s126
      %p137 = scmp.eq.s32.totalorder %s51, 0
      %p138 = por %p136, %p137
      %p139 = scmp.ne.s32.totalorder %s125, %s126
      %p140 = scmp.eq.s32.totalorder %s52, 3
      %p141 = por %p139, %p140
      %p143 = scmp.ne.s32.totalorder %s126, %s142
      %p144 = scmp.eq.s32.totalorder %s52, 0
      %p145 = por %p143, %p144
      %s147 = sadd.s32 %s146, 1
      %p150 = scmp.eq.s32.totalorder %s46, 3
      %p151 = scmp.ne.s32.totalorder %s146, %s148
      %p152 = scmp.eq.s32.totalorder %s46, 0
      %p153 = por %p151, %p152
      %p154 = scmp.ne.s32.totalorder %s146, %s148
      %p155 = scmp.eq.s32.totalorder %s51, 3
      %p156 = por %p154, %p155
      %p157 = scmp.ne.s32.totalorder %s148, %s149
      %p158 = scmp.eq.s32.totalorder %s51, 0
      %p159 = por %p157, %p158
      %p160 = scmp.ne.s32.totalorder %s148, %s149
      %p161 = scmp.eq.s32.totalorder %s52, 3
      %p162 = por %p160, %p161
      %p164 = scmp.ne.s32.totalorder %s149, %s163
      %p165 = scmp.eq.s32.totalorder %s52, 0
      %p166 = por %p164, %p165
      %s168 = sadd.s32 %s167, 1
      %p171 = scmp.eq.s32.totalorder %s46, 3
      %p172 = scmp.ne.s32.totalorder %s167, %s169
      %p173 = scmp.eq.s32.totalorder %s46, 0
      %p174 = por %p172, %p173
      %p175 = scmp.ne.s32.totalorder %s167, %s169
      %p176 = scmp.eq.s32.totalorder %s51, 3
      %p177 = por %p175, %p176
      %p178 = scmp.ne.s32.totalorder %s169, %s170
      %p179 = scmp.eq.s32.totalorder %s51, 0
      %p180 = por %p178, %p179
      %p181 = scmp.ne.s32.totalorder %s169, %s170
      %p182 = scmp.eq.s32.totalorder %s52, 3
      %p183 = por %p181, %p182
      %p185 = scmp.ne.s32.totalorder %s170, %s184
      %p186 = scmp.eq.s32.totalorder %s52, 0
      %p187 = por %p185, %p186
      %s189 = sadd.s32 %s188, 1
      %p192 = scmp.eq.s32.totalorder %s46, 3
      %p193 = scmp.ne.s32.totalorder %s188, %s190
      %p194 = scmp.eq.s32.totalorder %s46, 0
      %p195 = por %p193, %p194
      %p196 = scmp.ne.s32.totalorder %s188, %s190
      %p197 = scmp.eq.s32.totalorder %s51, 3
      %p198 = por %p196, %p197
      %p199 = scmp.ne.s32.totalorder %s190, %s191
      %p200 = scmp.eq.s32.totalorder %s51, 0
      %p201 = por %p199, %p200
      %p202 = scmp.ne.s32.totalorder %s190, %s191
      %p203 = scmp.eq.s32.totalorder %s52, 3
      %p204 = por %p202, %p203
      %p206 = scmp.ne.s32.totalorder %s191, %s205
      %p207 = scmp.eq.s32.totalorder %s52, 0
      %p208 = por %p206, %p207
      %s210 = sadd.s32 %s209, 1
      %p213 = scmp.eq.s32.totalorder %s46, 3
      %p214 = scmp.ne.s32.totalorder %s209, %s211
      %p215 = scmp.eq.s32.totalorder %s46, 0
      %p216 = por %p214, %p215
      %p217 = scmp.ne.s32.totalorder %s209, %s211
      %p218 = scmp.eq.s32.totalorder %s51, 3
      %p219 = por %p217, %p218
      %p220 = scmp.ne.s32.totalorder %s211, %s212
      %p221 = scmp.eq.s32.totalorder %s51, 0
      %p222 = por %p220, %p221
      %p223 = scmp.ne.s32.totalorder %s211, %s212
      %p224 = scmp.eq.s32.totalorder %s52, 3
      %p225 = por %p223, %p224
      %p227 = scmp.ne.s32.totalorder %s212, %s226
      %p228 = scmp.eq.s32.totalorder %s52, 0
      %p229 = por %p227, %p228
      %s231 = sadd.s32 %s230, 1
      %p234 = scmp.eq.s32.totalorder %s46, 3
      %p235 = scmp.ne.s32.totalorder %s230, %s232
      %p236 = scmp.eq.s32.totalorder %s46, 0
      %p237 = por %p235, %p236
      %p238 = scmp.ne.s32.totalorder %s230, %s232
      %p239 = scmp.eq.s32.totalorder %s51, 3
      %p240 = por %p238, %p239
      %p241 = scmp.ne.s32.totalorder %s232, %s233
      %p242 = scmp.eq.s32.totalorder %s51, 0
      %p243 = por %p241, %p242
      %p244 = scmp.ne.s32.totalorder %s232, %s233
      %p245 = scmp.eq.s32.totalorder %s52, 3
      %p246 = por %p244, %p245
      %p248 = scmp.ne.s32.totalorder %s233, %s247
      %p249 = scmp.eq.s32.totalorder %s52, 0
      %p250 = por %p248, %p249
      %s252 = sadd.s32 %s251, 1
      %p255 = scmp.eq.s32.totalorder %s46, 3
      %p256 = scmp.ne.s32.totalorder %s251, %s253
      %p257 = scmp.eq.s32.totalorder %s46, 0
      %p258 = por %p256, %p257
      %p259 = scmp.ne.s32.totalorder %s251, %s253
      %p260 = scmp.eq.s32.totalorder %s51, 3
      %p261 = por %p259, %p260
      %p262 = scmp.ne.s32.totalorder %s253, %s254
      %p263 = scmp.eq.s32.totalorder %s51, 0
      %p264 = por %p262, %p263
      %p265 = scmp.ne.s32.totalorder %s253, %s254
      %p266 = scmp.eq.s32.totalorder %s52, 3
      %p267 = por %p265, %p266
      %p269 = scmp.ne.s32.totalorder %s254, %s268
      %p270 = scmp.eq.s32.totalorder %s52, 0
      %p271 = por %p269, %p270
      %s273 = sadd.s32 %s272, 1
      %p276 = scmp.eq.s32.totalorder %s46, 3
      %p277 = scmp.ne.s32.totalorder %s272, %s274
      %p278 = scmp.eq.s32.totalorder %s46, 0
      %p279 = por %p277, %p278
      %p280 = scmp.ne.s32.totalorder %s272, %s274
      %p281 = scmp.eq.s32.totalorder %s51, 3
      %p282 = por %p280, %p281
      %p283 = scmp.ne.s32.totalorder %s274, %s275
      %p284 = scmp.eq.s32.totalorder %s51, 0
      %p285 = por %p283, %p284
      %p286 = scmp.ne.s32.totalorder %s274, %s275
      %p287 = scmp.eq.s32.totalorder %s52, 3
      %p288 = por %p286, %p287
      %p290 = scmp.ne.s32.totalorder %s275, %s289
      %p291 = scmp.eq.s32.totalorder %s52, 0
      %p292 = por %p290, %p291
      %s294 = sadd.s32 %s293, 1
      %p297 = scmp.eq.s32.totalorder %s46, 3
      %p298 = scmp.ne.s32.totalorder %s293, %s295
      %p299 = scmp.eq.s32.totalorder %s46, 0
      %p300 = por %p298, %p299
      %p301 = scmp.ne.s32.totalorder %s293, %s295
      %p302 = scmp.eq.s32.totalorder %s51, 3
      %p303 = por %p301, %p302
      %p304 = scmp.ne.s32.totalorder %s295, %s296
      %p305 = scmp.eq.s32.totalorder %s51, 0
      %p306 = por %p304, %p305
      %p307 = scmp.ne.s32.totalorder %s295, %s296
      %p308 = scmp.eq.s32.totalorder %s52, 3
      %p309 = por %p307, %p308
      %p311 = scmp.ne.s32.totalorder %s296, %s310
      %p312 = scmp.eq.s32.totalorder %s52, 0
      %p313 = por %p311, %p312
      %s315 = sadd.s32 %s314, 1
      %p318 = scmp.eq.s32.totalorder %s46, 3
      %p319 = scmp.ne.s32.totalorder %s314, %s316
      %p320 = scmp.eq.s32.totalorder %s46, 0
      %p321 = por %p319, %p320
      %p322 = scmp.ne.s32.totalorder %s314, %s316
      %p323 = scmp.eq.s32.totalorder %s51, 3
      %p324 = por %p322, %p323
      %p325 = scmp.ne.s32.totalorder %s316, %s317
      %p326 = scmp.eq.s32.totalorder %s51, 0
      %p327 = por %p325, %p326
      %p328 = scmp.ne.s32.totalorder %s316, %s317
      %p329 = scmp.eq.s32.totalorder %s52, 3
      %p330 = por %p328, %p329
      %p332 = scmp.ne.s32.totalorder %s317, %s331
      %p333 = scmp.eq.s32.totalorder %s52, 0
      %p334 = por %p332, %p333
      %s336 = sadd.s32 %s335, 1
      %p339 = scmp.eq.s32.totalorder %s46, 3
      %p340 = scmp.ne.s32.totalorder %s335, %s337
      %p341 = scmp.eq.s32.totalorder %s46, 0
      %p342 = por %p340, %p341
      %p343 = scmp.ne.s32.totalorder %s335, %s337
      %p344 = scmp.eq.s32.totalorder %s51, 3
      %p345 = por %p343, %p344
      %p346 = scmp.ne.s32.totalorder %s337, %s338
      %p347 = scmp.eq.s32.totalorder %s51, 0
      %p348 = por %p346, %p347
      %p349 = scmp.ne.s32.totalorder %s337, %s338
      %p350 = scmp.eq.s32.totalorder %s52, 3
      %p351 = por %p349, %p350
      %p353 = scmp.ne.s32.totalorder %s338, %s352
      %p354 = scmp.eq.s32.totalorder %s52, 0
      %p355 = por %p353, %p354
      %s357 = sadd.s32 %s356, 1
      %p360 = scmp.eq.s32.totalorder %s46, 3
      %p361 = scmp.ne.s32.totalorder %s356, %s358
      %p362 = scmp.eq.s32.totalorder %s46, 0
      %p363 = por %p361, %p362
      %p364 = scmp.ne.s32.totalorder %s356, %s358
      %p365 = scmp.eq.s32.totalorder %s51, 3
      %p366 = por %p364, %p365
      %p367 = scmp.ne.s32.totalorder %s358, %s359
      %p368 = scmp.eq.s32.totalorder %s51, 0
      %p369 = por %p367, %p368
      %p370 = scmp.ne.s32.totalorder %s358, %s359
      %p371 = scmp.eq.s32.totalorder %s52, 3
      %p372 = por %p370, %p371
      %p374 = scmp.ne.s32.totalorder %s359, %s373
      %p375 = scmp.eq.s32.totalorder %s52, 0
      %p376 = por %p374, %p375
      %s378 = sadd.s32 %s377, 1
      %p381 = scmp.eq.s32.totalorder %s46, 3
      %p382 = scmp.ne.s32.totalorder %s377, %s379
      %p383 = scmp.eq.s32.totalorder %s46, 0
      %p384 = por %p382, %p383
      %p385 = scmp.ne.s32.totalorder %s377, %s379
      %p386 = scmp.eq.s32.totalorder %s51, 3
      %p387 = por %p385, %p386
      %p388 = scmp.ne.s32.totalorder %s379, %s380
      %p389 = scmp.eq.s32.totalorder %s51, 0
      %p390 = por %p388, %p389
      %p391 = scmp.ne.s32.totalorder %s379, %s380
      %p392 = scmp.eq.s32.totalorder %s52, 3
      %p393 = por %p391, %p392
      %p395 = scmp.ne.s32.totalorder %s380, %s394
      %p396 = scmp.eq.s32.totalorder %s52, 0
      %p397 = por %p395, %p396
      %s399 = sadd.s32 %s398, 1
      %p402 = scmp.eq.s32.totalorder %s46, 3
      %p403 = scmp.ne.s32.totalorder %s398, %s400
      %p404 = scmp.eq.s32.totalorder %s46, 0
      %p405 = por %p403, %p404
      %p406 = scmp.ne.s32.totalorder %s398, %s400
      %p407 = scmp.eq.s32.totalorder %s51, 3
      %p408 = por %p406, %p407
      %p409 = scmp.ne.s32.totalorder %s400, %s401
      %p410 = scmp.eq.s32.totalorder %s51, 0
      %p411 = por %p409, %p410
      %p412 = scmp.ne.s32.totalorder %s400, %s401
      %p413 = scmp.eq.s32.totalorder %s52, 3
      %p414 = por %p412, %p413
      %p416 = scmp.ne.s32.totalorder %s401, %s415
      %p417 = scmp.eq.s32.totalorder %s52, 0
      %p418 = por %p416, %p417
      %s419 = ssub.s32 %s53, %s65
      %p420 = scmp.eq.s32.totalorder %s419, 0
      %s422 = sadd.s32 %s421, 1
      %s423 = scalar_select %p420, %s421, %s422
      %p426 = pneg %p420
      %p427 = scmp.eq.s32.totalorder %s46, 3
      %p428 = por %p426, %p427
      %p429 = scmp.ne.s32.totalorder %s421, %s424
      %p430 = scmp.eq.s32.totalorder %s46, 0
      %p431 = por %p429, %p430
      %p432 = scmp.ne.s32.totalorder %s421, %s424
      %p433 = scmp.eq.s32.totalorder %s51, 3
      %p434 = por %p432, %p433
      %p435 = scmp.ne.s32.totalorder %s424, %s425
      %p436 = scmp.eq.s32.totalorder %s51, 0
      %p437 = por %p435, %p436
      %p438 = scmp.ne.s32.totalorder %s424, %s425
      %p439 = scmp.eq.s32.totalorder %s52, 3
      %p440 = por %p438, %p439
      %p442 = scmp.ne.s32.totalorder %s425, %s441
      %p443 = scmp.eq.s32.totalorder %s52, 0
      %p444 = por %p442, %p443
      %p445 = scmp.le.s32.totalorder 1, %s46
      %p446 = scmp.lt.s32.totalorder %s46, 5
      %p447 = pnand %p445, %p446
      %p448 = pneg %p447
      // Predicated region
      $region9: #{tpu_custom_call.1} parent=5 // pred_check
        _
      $region10: #{tpu_custom_call.1} parent=5 // pred_check_branch
        %450 = sbr.rel (%p447) target = $region12
      $region11: #{tpu_custom_call.1} parent=5 // pred_region
        %s451 = ssub.s32 %s46, 1
        // Predicated region
        $region13: #{tpu_custom_call.1} parent=11 // pred_check
          %p452 = pneg %p159
        $region14: #{tpu_custom_call.1} parent=11 // pred_check_branch
          %454 = sbr.rel (%p452) target = $region16
        $region15: #{tpu_custom_call.1} parent=11 // pred_region
          %s456 = ssub.s32 32, 32
          %457 = vsyncadd [#allocation16], %s456
          %s459 = sshll.u32 [#allocation15], 4
          %s460 = int_to_ptr.vmem [resolvable:$true] %s459
          %462 = dma.hbm_to_vmem [thread:$0]  %s5, 32, %s460, [#allocation16]
        $region16: #{tpu_custom_call.1} parent=11 // pred_fallthru
          _
        // Predicated region
        $region17: #{tpu_custom_call.1} parent=11 // pred_check
          %p463 = pneg %p180
        $region18: #{tpu_custom_call.1} parent=11 // pred_check_branch
          %465 = sbr.rel (%p463) target = $region20
        $region19: #{tpu_custom_call.1} parent=11 // pred_region
          %s467 = ssub.s32 32, 32
          %468 = vsyncadd [#allocation16], %s467
          %s470 = sshll.u32 [#allocation17], 4
          %s471 = int_to_ptr.vmem [resolvable:$true] %s470
          %473 = dma.hbm_to_vmem [thread:$0]  %s6, 32, %s471, [#allocation16]
        $region20: #{tpu_custom_call.1} parent=11 // pred_fallthru
          _
        // Predicated region
        $region21: #{tpu_custom_call.1} parent=11 // pred_check
          %p474 = pneg %p201
        $region22: #{tpu_custom_call.1} parent=11 // pred_check_branch
          %476 = sbr.rel (%p474) target = $region24
        $region23: #{tpu_custom_call.1} parent=11 // pred_region
          %s478 = ssub.s32 32, 32
          %479 = vsyncadd [#allocation19], %s478
          %s481 = sshll.u32 [#allocation18], 4
          %s482 = int_to_ptr.vmem [resolvable:$true] %s481
          %484 = dma.hbm_to_vmem [thread:$0]  %s7, 32, %s482, [#allocation19]
        $region24: #{tpu_custom_call.1} parent=11 // pred_fallthru
          _
        // Predicated region
        $region25: #{tpu_custom_call.1} parent=11 // pred_check
          %p485 = pneg %p222
        $region26: #{tpu_custom_call.1} parent=11 // pred_check_branch
          %487 = sbr.rel (%p485) target = $region28
        $region27: #{tpu_custom_call.1} parent=11 // pred_region
          %s489 = ssub.s32 32, 32
          %490 = vsyncadd [#allocation19], %s489
          %s492 = sshll.u32 [#allocation20], 4
          %s493 = int_to_ptr.vmem [resolvable:$true] %s492
          %495 = dma.hbm_to_vmem [thread:$0]  %s8, 32, %s493, [#allocation19]
        $region28: #{tpu_custom_call.1} parent=11 // pred_fallthru
          _
        // Predicated region
        $region29: #{tpu_custom_call.1} parent=11 // pred_check
          %p496 = pneg %p243
        $region30: #{tpu_custom_call.1} parent=11 // pred_check_branch
          %498 = sbr.rel (%p496) target = $region32
        $region31: #{tpu_custom_call.1} parent=11 // pred_region
          %s500 = ssub.s32 4096, 4096
          %501 = vsyncadd [#allocation22], %s500
          %s502 = sshll.u32 [#allocation21], 4
          %s503 = int_to_ptr.vmem [resolvable:$true] %s502
          %508 = dma.hbm_to_vmem [thread:$0]  %s9, 4096, %s503, [#allocation22], 64, 64, 4
        $region32: #{tpu_custom_call.1} parent=11 // pred_fallthru
          _
        // Predicated region
        $region33: #{tpu_custom_call.1} parent=11 // pred_check
          %p509 = pneg %p264
        $region34: #{tpu_custom_call.1} parent=11 // pred_check_branch
          %511 = sbr.rel (%p509) target = $region36
        $region35: #{tpu_custom_call.1} parent=11 // pred_region
          %s513 = ssub.s32 32, 32
          %514 = vsyncadd [#allocation22], %s513
          %s515 = sshll.u32 [#allocation23], 4
          %s516 = int_to_ptr.vmem [resolvable:$true] %s515
          %521 = dma.hbm_to_vmem [thread:$0]  %s10, 32, %s516, [#allocation22], 16, 16, 1
        $region36: #{tpu_custom_call.1} parent=11 // pred_fallthru
          _
        // Predicated region
        $region37: #{tpu_custom_call.1} parent=11 // pred_check
          %p522 = pneg %p285
        $region38: #{tpu_custom_call.1} parent=11 // pred_check_branch
          %524 = sbr.rel (%p522) target = $region40
        $region39: #{tpu_custom_call.1} parent=11 // pred_region
          %s526 = ssub.s32 4096, 4096
          %527 = vsyncadd [#allocation25], %s526
          %s528 = sshll.u32 [#allocation24], 4
          %s529 = int_to_ptr.vmem [resolvable:$true] %s528
          %534 = dma.hbm_to_vmem [thread:$0]  %s11, 4096, %s529, [#allocation25], 64, 64, 4
        $region40: #{tpu_custom_call.1} parent=11 // pred_fallthru
          _
        // Predicated region
        $region41: #{tpu_custom_call.1} parent=11 // pred_check
          %p535 = pneg %p306
        $region42: #{tpu_custom_call.1} parent=11 // pred_check_branch
          %537 = sbr.rel (%p535) target = $region44
        $region43: #{tpu_custom_call.1} parent=11 // pred_region
          %s539 = ssub.s32 32, 32
          %540 = vsyncadd [#allocation25], %s539
          %s541 = sshll.u32 [#allocation26], 4
          %s542 = int_to_ptr.vmem [resolvable:$true] %s541
          %547 = dma.hbm_to_vmem [thread:$0]  %s12, 32, %s542, [#allocation25], 16, 16, 1
        $region44: #{tpu_custom_call.1} parent=11 // pred_fallthru
          _
        // Predicated region
        $region45: #{tpu_custom_call.1} parent=11 // pred_check
          %p548 = pneg %p327
        $region46: #{tpu_custom_call.1} parent=11 // pred_check_branch
          %550 = sbr.rel (%p548) target = $region48
        $region47: #{tpu_custom_call.1} parent=11 // pred_region
          %s552 = ssub.s32 4096, 4096
          %553 = vsyncadd [#allocation28], %s552
          %s554 = sshll.u32 [#allocation27], 4
          %s555 = int_to_ptr.vmem [resolvable:$true] %s554
          %560 = dma.hbm_to_vmem [thread:$0]  %s13, 4096, %s555, [#allocation28], 64, 64, 4
        $region48: #{tpu_custom_call.1} parent=11 // pred_fallthru
          _
        // Predicated region
        $region49: #{tpu_custom_call.1} parent=11 // pred_check
          %p561 = pneg %p348
        $region50: #{tpu_custom_call.1} parent=11 // pred_check_branch
          %563 = sbr.rel (%p561) target = $region52
        $region51: #{tpu_custom_call.1} parent=11 // pred_region
          %s565 = ssub.s32 32, 32
          %566 = vsyncadd [#allocation28], %s565
          %s567 = sshll.u32 [#allocation29], 4
          %s568 = int_to_ptr.vmem [resolvable:$true] %s567
          %573 = dma.hbm_to_vmem [thread:$0]  %s14, 32, %s568, [#allocation28], 16, 16, 1
        $region52: #{tpu_custom_call.1} parent=11 // pred_fallthru
          _
        // Predicated region
        $region53: #{tpu_custom_call.1} parent=11 // pred_check
          %p574 = pneg %p369
        $region54: #{tpu_custom_call.1} parent=11 // pred_check_branch
          %576 = sbr.rel (%p574) target = $region56
        $region55: #{tpu_custom_call.1} parent=11 // pred_region
          %s578 = ssub.s32 4096, 4096
          %579 = vsyncadd [#allocation31], %s578
          %s580 = sshll.u32 [#allocation30], 4
          %s581 = int_to_ptr.vmem [resolvable:$true] %s580
          %586 = dma.hbm_to_vmem [thread:$0]  %s15, 4096, %s581, [#allocation31], 128, 128, 8
        $region56: #{tpu_custom_call.1} parent=11 // pred_fallthru
          _
        // Predicated region
        $region57: #{tpu_custom_call.1} parent=11 // pred_check
          %p587 = pneg %p390
        $region58: #{tpu_custom_call.1} parent=11 // pred_check_branch
          %589 = sbr.rel (%p587) target = $region60
        $region59: #{tpu_custom_call.1} parent=11 // pred_region
          %s591 = ssub.s32 32, 32
          %592 = vsyncadd [#allocation31], %s591
          %s594 = sshll.u32 [#allocation32], 4
          %s595 = int_to_ptr.vmem [resolvable:$true] %s594
          %597 = dma.hbm_to_vmem [thread:$0]  %s16, 32, %s595, [#allocation31]
        $region60: #{tpu_custom_call.1} parent=11 // pred_fallthru
          _
        // Predicated region
        $region61: #{tpu_custom_call.1} parent=11 // pred_check
          %p598 = pneg %p411
        $region62: #{tpu_custom_call.1} parent=11 // pred_check_branch
          %600 = sbr.rel (%p598) target = $region64
        $region63: #{tpu_custom_call.1} parent=11 // pred_region
          %s602 = ssub.s32 128, 128
          %603 = vsyncadd [#allocation34], %s602
          %s605 = sshll.u32 [#allocation33], 4
          %s606 = int_to_ptr.vmem [resolvable:$true] %s605
          %608 = dma.hbm_to_vmem [thread:$0]  %s17, 128, %s606, [#allocation34]
        $region64: #{tpu_custom_call.1} parent=11 // pred_fallthru
          _
      $region12: #{tpu_custom_call.1} parent=5 // pred_fallthru
        _
      %p609 = scmp.lt.s32.totalorder %s46, 4
      // Predicated region
      $region65: #{tpu_custom_call.1} parent=5 // pred_check
        %p610 = pneg %p609
      $region66: #{tpu_custom_call.1} parent=5 // pred_check_branch
        %612 = sbr.rel (%p610) target = $region68
      $region67: #{tpu_custom_call.1} parent=5 // pred_region
        // Predicated region
        $region69: #{tpu_custom_call.1} parent=67 // pred_check
          %p613 = pneg %p80
        $region70: #{tpu_custom_call.1} parent=67 // pred_check_branch
          %615 = sbr.rel (%p613) target = $region72
        $region71: #{tpu_custom_call.1} parent=67 // pred_region
          %s616 = sand.u32 %s70, 1
          %s617 = scalar_lea.sflag [#allocation10], %s616
          %s618 = sand.u32 %s70, 1
          %s619 = smul.addr %s618, 32
          %s620 = scalar_lea.vmem [#allocation9], %s619
          %s621 = smul.u32 2, %s54
          %s623 = ssub.s32 512, 512
          %624 = vsyncadd %s617, %s623
          %s625 = smul.addr %s621, 2
          %s626 = smul.addr %s53, 8
          %s627 = sadd.s32 %s625, %s626
          %s628 = smul.addr %s627, 128
          %s629 = scalar_lea.hbm %s2, %s628
          %s630 = sshll.u32 %s620, 4
          %s631 = int_to_ptr.vmem [resolvable:$true] %s630
          %636 = dma.hbm_to_vmem [thread:$0]  %s629, 512, %s631, %s617, 256, 256, 16
        $region72: #{tpu_custom_call.1} parent=67 // pred_fallthru
          _
        // Predicated region
        $region73: #{tpu_custom_call.1} parent=67 // pred_check
          %p637 = pneg %p106
        $region74: #{tpu_custom_call.1} parent=67 // pred_check_branch
          %639 = sbr.rel (%p637) target = $region76
        $region75: #{tpu_custom_call.1} parent=67 // pred_region
          %s640 = sand.u32 %s46, 1
          %s641 = scalar_lea.sflag [#allocation13], %s640
          %s642 = sand.u32 %s96, 1
          %s643 = smul.addr %s642, 32
          %s644 = scalar_lea.vmem [#allocation12], %s643
          %s646 = ssub.s32 512, 512
          %647 = vsyncadd %s641, %s646
          %s648 = smul.addr %s53, 4
          %s649 = smul.addr %s648, 128
          %s650 = scalar_lea.hbm %s3, %s649
          %s651 = sshll.u32 %s644, 4
          %s652 = int_to_ptr.vmem [resolvable:$true] %s651
          %657 = dma.hbm_to_vmem [thread:$0]  %s650, 512, %s652, %s641, 256, 256, 16
        $region76: #{tpu_custom_call.1} parent=67 // pred_fallthru
          _
        // Predicated region
        $region77: #{tpu_custom_call.1} parent=67 // pred_check
          %p658 = pneg %p132
        $region78: #{tpu_custom_call.1} parent=67 // pred_check_branch
          %660 = sbr.rel (%p658) target = $region80
        $region79: #{tpu_custom_call.1} parent=67 // pred_region
          %s661 = sand.u32 %s46, 1
          %s662 = scalar_lea.sflag [#allocation13], %s661
          %s663 = sand.u32 %s122, 1
          %s664 = smul.addr %s663, 8
          %s665 = scalar_lea.vmem [#allocation14], %s664
          %s667 = ssub.s32 128, 128
          %668 = vsyncadd %s662, %s667
          %s669 = smul.addr %s53, 2
          %s670 = smul.addr %s669, 64
          %s671 = scalar_lea.hbm %s4, %s670
          %s673 = sshll.u32 %s665, 4
          %s674 = int_to_ptr.vmem [resolvable:$true] %s673
          %676 = dma.hbm_to_vmem [thread:$0]  %s671, 128, %s674, %s662
        $region80: #{tpu_custom_call.1} parent=67 // pred_fallthru
          _
      $region68: #{tpu_custom_call.1} parent=5 // pred_fallthru
        _
      %p677 = scmp.le.s32.totalorder 1, %s46
      %p678 = scmp.lt.s32.totalorder %s46, 5
      %p679 = pnand %p677, %p678
      %p680 = pneg %p679
      // Predicated region
      $region81: #{tpu_custom_call.1} parent=5 // pred_check
        _
      $region82: #{tpu_custom_call.1} parent=5 // pred_check_branch
        %682 = sbr.rel (%p679) target = $region84
      $region83: #{tpu_custom_call.1} parent=5 // pred_region
        %s683 = ssub.s32 %s46, 1
        %s684 = sand.u32 %s73, 1
        %s685 = scalar_lea.sflag [#allocation10], %s684
        %s686 = sand.u32 %s73, 1
        %s687 = smul.addr %s686, 32
        %s688 = scalar_lea.vmem [#allocation9], %s687
        // Predicated region
        $region85: #{tpu_custom_call.1} parent=83 // pred_check
          %p689 = pneg %p86
        $region86: #{tpu_custom_call.1} parent=83 // pred_check_branch
          %691 = sbr.rel (%p689) target = $region88
        $region87: #{tpu_custom_call.1} parent=83 // pred_region
          %692 = dma.done %s685, 512
        $region88: #{tpu_custom_call.1} parent=83 // pred_fallthru
          _
        %s693 = sand.u32 %s51, 1
        %s694 = scalar_lea.sflag [#allocation13], %s693
        %s695 = sand.u32 %s99, 1
        %s696 = smul.addr %s695, 32
        %s697 = scalar_lea.vmem [#allocation12], %s696
        // Predicated region
        $region89: #{tpu_custom_call.1} parent=83 // pred_check
          %p698 = pneg %p112
        $region90: #{tpu_custom_call.1} parent=83 // pred_check_branch
          %700 = sbr.rel (%p698) target = $region92
        $region91: #{tpu_custom_call.1} parent=83 // pred_region
          %701 = dma.done %s694, 512
        $region92: #{tpu_custom_call.1} parent=83 // pred_fallthru
          _
        %s702 = sand.u32 %s51, 1
        %s703 = scalar_lea.sflag [#allocation13], %s702
        %s704 = sand.u32 %s125, 1
        %s705 = smul.addr %s704, 8
        %s706 = scalar_lea.vmem [#allocation14], %s705
        // Predicated region
        $region93: #{tpu_custom_call.1} parent=83 // pred_check
          %p707 = pneg %p138
        $region94: #{tpu_custom_call.1} parent=83 // pred_check_branch
          %709 = sbr.rel (%p707) target = $region96
        $region95: #{tpu_custom_call.1} parent=83 // pred_region
          %710 = dma.done %s703, 128
        $region96: #{tpu_custom_call.1} parent=83 // pred_fallthru
          _
        // Predicated region
        $region97: #{tpu_custom_call.1} parent=83 // pred_check
          %p711 = pneg %p159
        $region98: #{tpu_custom_call.1} parent=83 // pred_check_branch
          %713 = sbr.rel (%p711) target = $region100
        $region99: #{tpu_custom_call.1} parent=83 // pred_region
          %714 = dma.done [#allocation16], 32
        $region100: #{tpu_custom_call.1} parent=83 // pred_fallthru
          _
        // Predicated region
        $region101: #{tpu_custom_call.1} parent=83 // pred_check
          %p715 = pneg %p180
        $region102: #{tpu_custom_call.1} parent=83 // pred_check_branch
          %717 = sbr.rel (%p715) target = $region104
        $region103: #{tpu_custom_call.1} parent=83 // pred_region
          %718 = dma.done [#allocation16], 32
        $region104: #{tpu_custom_call.1} parent=83 // pred_fallthru
          _
        // Predicated region
        $region105: #{tpu_custom_call.1} parent=83 // pred_check
          %p719 = pneg %p201
        $region106: #{tpu_custom_call.1} parent=83 // pred_check_branch
          %721 = sbr.rel (%p719) target = $region108
        $region107: #{tpu_custom_call.1} parent=83 // pred_region
          %722 = dma.done [#allocation19], 32
        $region108: #{tpu_custom_call.1} parent=83 // pred_fallthru
          _
        // Predicated region
        $region109: #{tpu_custom_call.1} parent=83 // pred_check
          %p723 = pneg %p222
        $region110: #{tpu_custom_call.1} parent=83 // pred_check_branch
          %725 = sbr.rel (%p723) target = $region112
        $region111: #{tpu_custom_call.1} parent=83 // pred_region
          %726 = dma.done [#allocation19], 32
        $region112: #{tpu_custom_call.1} parent=83 // pred_fallthru
          _
        // Predicated region
        $region113: #{tpu_custom_call.1} parent=83 // pred_check
          %p727 = pneg %p243
        $region114: #{tpu_custom_call.1} parent=83 // pred_check_branch
          %729 = sbr.rel (%p727) target = $region116
        $region115: #{tpu_custom_call.1} parent=83 // pred_region
          %730 = dma.done [#allocation22], 4096
        $region116: #{tpu_custom_call.1} parent=83 // pred_fallthru
          _
        // Predicated region
        $region117: #{tpu_custom_call.1} parent=83 // pred_check
          %p731 = pneg %p264
        $region118: #{tpu_custom_call.1} parent=83 // pred_check_branch
          %733 = sbr.rel (%p731) target = $region120
        $region119: #{tpu_custom_call.1} parent=83 // pred_region
          %734 = dma.done [#allocation22], 32
        $region120: #{tpu_custom_call.1} parent=83 // pred_fallthru
          _
        // Predicated region
        $region121: #{tpu_custom_call.1} parent=83 // pred_check
          %p735 = pneg %p285
        $region122: #{tpu_custom_call.1} parent=83 // pred_check_branch
          %737 = sbr.rel (%p735) target = $region124
        $region123: #{tpu_custom_call.1} parent=83 // pred_region
          %738 = dma.done [#allocation25], 4096
        $region124: #{tpu_custom_call.1} parent=83 // pred_fallthru
          _
        // Predicated region
        $region125: #{tpu_custom_call.1} parent=83 // pred_check
          %p739 = pneg %p306
        $region126: #{tpu_custom_call.1} parent=83 // pred_check_branch
          %741 = sbr.rel (%p739) target = $region128
        $region127: #{tpu_custom_call.1} parent=83 // pred_region
          %742 = dma.done [#allocation25], 32
        $region128: #{tpu_custom_call.1} parent=83 // pred_fallthru
          _
        // Predicated region
        $region129: #{tpu_custom_call.1} parent=83 // pred_check
          %p743 = pneg %p327
        $region130: #{tpu_custom_call.1} parent=83 // pred_check_branch
          %745 = sbr.rel (%p743) target = $region132
        $region131: #{tpu_custom_call.1} parent=83 // pred_region
          %746 = dma.done [#allocation28], 4096
        $region132: #{tpu_custom_call.1} parent=83 // pred_fallthru
          _
        // Predicated region
        $region133: #{tpu_custom_call.1} parent=83 // pred_check
          %p747 = pneg %p348
        $region134: #{tpu_custom_call.1} parent=83 // pred_check_branch
          %749 = sbr.rel (%p747) target = $region136
        $region135: #{tpu_custom_call.1} parent=83 // pred_region
          %750 = dma.done [#allocation28], 32
        $region136: #{tpu_custom_call.1} parent=83 // pred_fallthru
          _
        // Predicated region
        $region137: #{tpu_custom_call.1} parent=83 // pred_check
          %p751 = pneg %p369
        $region138: #{tpu_custom_call.1} parent=83 // pred_check_branch
          %753 = sbr.rel (%p751) target = $region140
        $region139: #{tpu_custom_call.1} parent=83 // pred_region
          %754 = dma.done [#allocation31], 4096
        $region140: #{tpu_custom_call.1} parent=83 // pred_fallthru
          _
        // Predicated region
        $region141: #{tpu_custom_call.1} parent=83 // pred_check
          %p755 = pneg %p390
        $region142: #{tpu_custom_call.1} parent=83 // pred_check_branch
          %757 = sbr.rel (%p755) target = $region144
        $region143: #{tpu_custom_call.1} parent=83 // pred_region
          %758 = dma.done [#allocation31], 32
        $region144: #{tpu_custom_call.1} parent=83 // pred_fallthru
          _
        // Predicated region
        $region145: #{tpu_custom_call.1} parent=83 // pred_check
          %p759 = pneg %p411
        $region146: #{tpu_custom_call.1} parent=83 // pred_check_branch
          %761 = sbr.rel (%p759) target = $region148
        $region147: #{tpu_custom_call.1} parent=83 // pred_region
          %762 = dma.done [#allocation34], 128
        $region148: #{tpu_custom_call.1} parent=83 // pred_fallthru
          _
        %s763 = sand.u32 %s73, 1
        %s764 = scalar_lea.sflag [#allocation10], %s763
        %s765 = sand.u32 %s73, 1
        %s766 = smul.addr %s765, 32
        %s767 = scalar_lea.vmem [#allocation9], %s766
        %p768 = pneg %p86
        %p769 = pneg %p83
        %s770 = sand.u32 %s51, 1
        %s771 = scalar_lea.sflag [#allocation13], %s770
        %s772 = sand.u32 %s99, 1
        %s773 = smul.addr %s772, 32
        %s774 = scalar_lea.vmem [#allocation12], %s773
        %p775 = pneg %p112
        %p776 = pneg %p109
        %s777 = sand.u32 %s51, 1
        %s778 = scalar_lea.sflag [#allocation13], %s777
        %s779 = sand.u32 %s125, 1
        %s780 = smul.addr %s779, 8
        %s781 = scalar_lea.vmem [#allocation14], %s780
        %p782 = pneg %p138
        %p783 = pneg %p135
        %p784 = pneg %p159
        %p785 = pneg %p156
        %p786 = pneg %p180
        %p787 = pneg %p177
        %p788 = pneg %p201
        %p789 = pneg %p198
        %p790 = pneg %p222
        %p791 = pneg %p219
        %p792 = pneg %p243
        %p793 = pneg %p240
        %p794 = pneg %p264
        %p795 = pneg %p261
        %p796 = pneg %p285
        %p797 = pneg %p282
        %p798 = pneg %p306
        %p799 = pneg %p303
        %p800 = pneg %p327
        %p801 = pneg %p324
        %p802 = pneg %p348
        %p803 = pneg %p345
        %p804 = pneg %p369
        %p805 = pneg %p366
        %p806 = pneg %p390
        %p807 = pneg %p387
        %p808 = pneg %p411
        %p809 = pneg %p408
        %p810 = pneg %p437
        %p811 = pneg %p434
        %s812 = sand.u32 %s424, 1
        %s813 = scalar_lea.sflag [#allocation11], %s812
        %s814 = sand.u32 %s424, 1
        %s815 = smul.addr %s814, 32
        %s816 = scalar_lea.vmem [#allocation35], %s815
        %s817 = smul.u32 2, %s56
        %s819 = sld [smem:[#allocation7 + %s55]]
        %s820 = sld [smem:[#allocation8 + %s55]]
        %p821 = scmp.eq.s32.totalorder %s56, 0
        // Predicated region
        $region149: #{tpu_custom_call.1} parent=83 // pred_check
          %p822 = pneg %p821
        $region150: #{tpu_custom_call.1} parent=83 // pred_check_branch
          %824 = sbr.rel (%p822) target = $region152
        $region151: #{tpu_custom_call.1} parent=83 // pred_region
          %vm825 = vcmask 7168
          %826 = vst.msk [vmem:[#allocation3] sm:$0xff] %vm825, -1e+30
          %827 = vst.msk [vmem:[#allocation3 + $0x8] sm:$0xff] %vm825, -1e+30
          %828 = vst.msk [vmem:[#allocation3 + $0x10] sm:$0xff] %vm825, -1e+30
          %829 = vst.msk [vmem:[#allocation3 + $0x18] sm:$0xff] %vm825, -1e+30
          %830 = vst.msk [vmem:[#allocation4] sm:$0xff] %vm825, 0.0
          %831 = vst.msk [vmem:[#allocation4 + $0x8] sm:$0xff] %vm825, 0.0
          %832 = vst.msk [vmem:[#allocation4 + $0x10] sm:$0xff] %vm825, 0.0
          %833 = vst.msk [vmem:[#allocation4 + $0x18] sm:$0xff] %vm825, 0.0
          %834 = vst [vmem:[#allocation5] sm:$0xff] 0.0
          %835 = vst [vmem:[#allocation5 + $0x8] sm:$0xff] 0.0
          %836 = vst [vmem:[#allocation5 + $0x10] sm:$0xff] 0.0
          %837 = vst [vmem:[#allocation5 + $0x18] sm:$0xff] 0.0
          %v838 = vld [vmem:[%s706] sm:$0x77]
          %v839 = vld [vmem:[#allocation33] sm:$0x77]
          %v840 = vadd.f32 %v838, %v839
          %v841 = vld [vmem:[%s697] sm:$0xff]
          %v842 = vld [vmem:[%s697 + $0x8] sm:$0xff]
          %v843 = vld [vmem:[%s697 + $0x10] sm:$0xff]
          %v844 = vld [vmem:[%s697 + $0x18] sm:$0xff]
          %v845 = vld [vmem:[#allocation18] sm:$0x3]
          %v846 = vld [vmem:[#allocation20] sm:$0x3]
          %v847 = vadd.f32 %v841, %v842
          %848 = vadd.xlane.f32.xlu0 %v847
          %v849 = vpop.xlane.xlu0 %848
          %v850 = vadd.f32 %v843, %v844
          %851 = vadd.xlane.f32.xlu0 %v850
          %v852 = vpop.xlane.xlu0 %851
          %v853 = vrcp.pop 256.0
          %v854 = vmul.f32 %v849, %v853
          %v855 = vmul.f32 %v852, %v853
          %v856 = vsub.f32 %v841, %v854
          %v857 = vsub.f32 %v842, %v854
          %v858 = vsub.f32 %v843, %v855
          %v859 = vsub.f32 %v844, %v855
          %v860 = vmul.f32 %v856, %v856
          %v861 = vmul.f32 %v857, %v857
          %v862 = vmul.f32 %v858, %v858
          %v863 = vmul.f32 %v859, %v859
          %v864 = vadd.f32 %v860, %v861
          %865 = vadd.xlane.f32.xlu0 %v864
          %v866 = vpop.xlane.xlu0 %865
          %v867 = vadd.f32 %v862, %v863
          %868 = vadd.xlane.f32.xlu0 %v867
          %v869 = vpop.xlane.xlu0 %868
          %v870 = vmul.f32 %v866, %v853
          %v871 = vmul.f32 %v869, %v853
          %v872 = vadd.f32 %v870, 1e-05
          %v873 = vadd.f32 %v871, 1e-05
          %v874 = vrsqrt.pop %v872
          %v875 = vrsqrt.pop %v873
          %v876 = vmul.f32 %v856, %v874
          %v877 = vmul.f32 %v857, %v874
          %v878 = vmul.f32 %v858, %v875
          %v879 = vmul.f32 %v859, %v875
          %v881 = vlaneseq
          %v882 = vshrl.u32 %v881, 7
          %v883 = vsub.s32 0, %v882
          %v884 = vrot.slane %v845, %v883
          %v885 = vlaneseq
          %v886 = vshrl.u32 %v885, 7
          %v887 = vsub.s32 1, %v886
          %v888 = vrot.slane %v845, %v887
          %v891 = vmul.f32 %v876, %v884
          %v892 = vmul.f32 %v877, %v888
          %v893 = vmul.f32 %v878, %v884
          %v894 = vmul.f32 %v879, %v888
          %v896 = vlaneseq
          %v897 = vshrl.u32 %v896, 7
          %v898 = vsub.s32 0, %v897
          %v899 = vrot.slane %v846, %v898
          %v900 = vlaneseq
          %v901 = vshrl.u32 %v900, 7
          %v902 = vsub.s32 1, %v901
          %v903 = vrot.slane %v846, %v902
          %v906 = vadd.f32 %v891, %v899
          %v907 = vadd.f32 %v892, %v903
          %v908 = vadd.f32 %v893, %v899
          %v909 = vadd.f32 %v894, %v903
          %v910 = vadd.f32 %v840, 1.0
          %v912 = vlaneseq
          %v913 = vshrl.u32 %v912, 7
          %v914 = vsub.s32 1, %v913
          %v915 = vrot.slane %v910, %v914
          %v916 = vlaneseq
          %v917 = vshrl.u32 %v916, 7
          %v918 = vsub.s32 5, %v917
          %v919 = vrot.slane %v910, %v918
          %v922 = vlaneseq
          %v923 = vshrl.u32 %v922, 7
          %v924 = vsub.s32 1, %v923
          %v925 = vrot.slane %v915, %v924
          %v926 = vlaneseq
          %v927 = vshrl.u32 %v926, 7
          %v928 = vsub.s32 1, %v927
          %v929 = vrot.slane %v919, %v928
          %v930 = vmul.f32 %v906, %v925
          %v931 = vmul.f32 %v907, %v929
          %v932 = vmul.f32 %v908, %v925
          %v933 = vmul.f32 %v909, %v929
          %v935 = vlaneseq
          %v936 = vshrl.u32 %v935, 7
          %v937 = vsub.s32 0, %v936
          %v938 = vrot.slane %v840, %v937
          %v939 = vlaneseq
          %v940 = vshrl.u32 %v939, 7
          %v941 = vsub.s32 4, %v940
          %v942 = vrot.slane %v840, %v941
          %v945 = vlaneseq
          %v946 = vshrl.u32 %v945, 7
          %v947 = vsub.s32 0, %v946
          %v948 = vrot.slane %v938, %v947
          %v949 = vlaneseq
          %v950 = vshrl.u32 %v949, 7
          %v951 = vsub.s32 0, %v950
          %v952 = vrot.slane %v942, %v951
          %v953 = vadd.f32 %v930, %v948
          %v954 = vadd.f32 %v931, %v952
          %v955 = vadd.f32 %v932, %v948
          %v956 = vadd.f32 %v933, %v952
          %v957 = vpack.c.bf16 %v955, %v953
          %v958 = vpack.c.bf16 %v956, %v954
          %v959 = vld [vmem:[#allocation21] sm:$0xf]
          %v960 = vld [vmem:[#allocation21 + $0x4] sm:$0xf]
          %v961 = vld [vmem:[#allocation21 + $0x8] sm:$0xf]
          %v962 = vld [vmem:[#allocation21 + $0xc] sm:$0xf]
          %v963 = vld [vmem:[#allocation21 + $0x10] sm:$0xf]
          %v964 = vld [vmem:[#allocation21 + $0x14] sm:$0xf]
          %v965 = vld [vmem:[#allocation21 + $0x18] sm:$0xf]
          %v966 = vld [vmem:[#allocation21 + $0x1c] sm:$0xf]
          %v967 = vld [vmem:[#allocation21 + $0x20] sm:$0xf]
          %v968 = vld [vmem:[#allocation21 + $0x24] sm:$0xf]
          %v969 = vld [vmem:[#allocation21 + $0x28] sm:$0xf]
          %v970 = vld [vmem:[#allocation21 + $0x2c] sm:$0xf]
          %v971 = vld [vmem:[#allocation21 + $0x30] sm:$0xf]
          %v972 = vld [vmem:[#allocation21 + $0x34] sm:$0xf]
          %v973 = vld [vmem:[#allocation21 + $0x38] sm:$0xf]
          %v974 = vld [vmem:[#allocation21 + $0x3c] sm:$0xf]
          %v975 = vld [vmem:[#allocation21 + $0x40] sm:$0xf]
          %v976 = vld [vmem:[#allocation21 + $0x44] sm:$0xf]
          %v977 = vld [vmem:[#allocation21 + $0x48] sm:$0xf]
          %v978 = vld [vmem:[#allocation21 + $0x4c] sm:$0xf]
          %v979 = vld [vmem:[#allocation21 + $0x50] sm:$0xf]
          %v980 = vld [vmem:[#allocation21 + $0x54] sm:$0xf]
          %v981 = vld [vmem:[#allocation21 + $0x58] sm:$0xf]
          %v982 = vld [vmem:[#allocation21 + $0x5c] sm:$0xf]
          %v983 = vld [vmem:[#allocation21 + $0x60] sm:$0xf]
          %v984 = vld [vmem:[#allocation21 + $0x64] sm:$0xf]
          %v985 = vld [vmem:[#allocation21 + $0x68] sm:$0xf]
          %v986 = vld [vmem:[#allocation21 + $0x6c] sm:$0xf]
          %v987 = vld [vmem:[#allocation21 + $0x70] sm:$0xf]
          %v988 = vld [vmem:[#allocation21 + $0x74] sm:$0xf]
          %v989 = vld [vmem:[#allocation21 + $0x78] sm:$0xf]
          %v990 = vld [vmem:[#allocation21 + $0x7c] sm:$0xf]
          %v991 = vld [vmem:[#allocation23] sm:$0x1]
          %v993 = vlaneseq
          %v994 = vshrl.u32 %v993, 7
          %v995 = vsub.s32 0, %v994
          %v996 = vrot.slane %v991, %v995
          %v1030 = vunpack.c.l.b16 %v959
          %v1031 = vunpack.c.l.b16 %v960
          %v1032 = vunpack.c.l.b16 %v961
          %v1033 = vunpack.c.l.b16 %v962
          %v1034 = vunpack.c.l.b16 %v963
          %v1035 = vunpack.c.l.b16 %v964
          %v1036 = vunpack.c.l.b16 %v965
          %v1037 = vunpack.c.l.b16 %v966
          %v1038 = vunpack.c.l.b16 %v967
          %v1039 = vunpack.c.l.b16 %v968
          %v1040 = vunpack.c.l.b16 %v969
          %v1041 = vunpack.c.l.b16 %v970
          %v1042 = vunpack.c.l.b16 %v971
          %v1043 = vunpack.c.l.b16 %v972
          %v1044 = vunpack.c.l.b16 %v973
          %v1045 = vunpack.c.l.b16 %v974
          %v1046 = vunpack.c.l.b16 %v975
          %v1047 = vunpack.c.l.b16 %v976
          %v1048 = vunpack.c.l.b16 %v977
          %v1049 = vunpack.c.l.b16 %v978
          %v1050 = vunpack.c.l.b16 %v979
          %v1051 = vunpack.c.l.b16 %v980
          %v1052 = vunpack.c.l.b16 %v981
          %v1053 = vunpack.c.l.b16 %v982
          %v1054 = vunpack.c.l.b16 %v983
          %v1055 = vunpack.c.l.b16 %v984
          %v1056 = vunpack.c.l.b16 %v985
          %v1057 = vunpack.c.l.b16 %v986
          %v1058 = vunpack.c.l.b16 %v987
          %v1059 = vunpack.c.l.b16 %v988
          %v1060 = vunpack.c.l.b16 %v989
          %v1061 = vunpack.c.l.b16 %v990
          %v1062 = vpack.c.b16 %v1031, %v1030
          %v1063 = vpack.c.b16 %v1033, %v1032
          %v1064 = vpack.c.b16 %v1035, %v1034
          %v1065 = vpack.c.b16 %v1037, %v1036
          %v1066 = vpack.c.b16 %v1039, %v1038
          %v1067 = vpack.c.b16 %v1041, %v1040
          %v1068 = vpack.c.b16 %v1043, %v1042
          %v1069 = vpack.c.b16 %v1045, %v1044
          %v1070 = vpack.c.b16 %v1047, %v1046
          %v1071 = vpack.c.b16 %v1049, %v1048
          %v1072 = vpack.c.b16 %v1051, %v1050
          %v1073 = vpack.c.b16 %v1053, %v1052
          %v1074 = vpack.c.b16 %v1055, %v1054
          %v1075 = vpack.c.b16 %v1057, %v1056
          %v1076 = vpack.c.b16 %v1059, %v1058
          %v1077 = vpack.c.b16 %v1061, %v1060
          %1094 = vmatprep.subr.bf16.mxu0 0
          %1095 = vmatpush1.bf16.msra.mxu0 %v1062
          %1096 = vmatprep.subr.bf16.mxu0 0
          %1097 = vmatpush1.bf16.msra.mxu0 %v1063
          %1098 = vmatprep.subr.bf16.mxu0 0
          %1099 = vmatpush1.bf16.msra.mxu0 %v1064
          %1100 = vmatprep.subr.bf16.mxu0 0
          %1101 = vmatpush1.bf16.msra.mxu0 %v1065
          %1102 = vmatprep.subr.bf16.mxu0 0
          %1103 = vmatpush1.bf16.msra.mxu0 %v1066
          %1104 = vmatprep.subr.bf16.mxu0 0
          %1105 = vmatpush1.bf16.msra.mxu0 %v1067
          %1106 = vmatprep.subr.bf16.mxu0 0
          %1107 = vmatpush1.bf16.msra.mxu0 %v1068
          %1108 = vmatprep.subr.bf16.mxu0 0
          %1109 = vmatpush1.bf16.msra.mxu0 %v1069
          %1110 = vmatprep.subr.bf16.mxu0 0
          %1111 = vmatpush1.bf16.msra.mxu0 %v1070
          %1112 = vmatprep.subr.bf16.mxu0 0
          %1113 = vmatpush1.bf16.msra.mxu0 %v1071
          %1114 = vmatprep.subr.bf16.mxu0 0
          %1115 = vmatpush1.bf16.msra.mxu0 %v1072
          %1116 = vmatprep.subr.bf16.mxu0 0
          %1117 = vmatpush1.bf16.msra.mxu0 %v1073
          %1118 = vmatprep.subr.bf16.mxu0 0
          %1119 = vmatpush1.bf16.msra.mxu0 %v1074
          %1120 = vmatprep.subr.bf16.mxu0 0
          %1121 = vmatpush1.bf16.msra.mxu0 %v1075
          %1122 = vmatprep.subr.bf16.mxu0 0
          %1123 = vmatpush1.bf16.msra.mxu0 %v1076
          %1124 = vmatprep.subr.bf16.mxu0 0
          %1125 = vmatpush1.bf16.msra.mxu0 %v1077
          %1126 = vmatprep.mubr.bf16.mxu0 %v958
          %1127 = vmatmul.mubr.bf16.gmra.mrb[0].mxu0 %v957
          %v1128 = vpop.f32.mrb[0].mxu0
          %v1129 = vadd.f32 %v996, %v1128
          %v1130 = vpop.f32.mrb[0].mxu0
          %v1131 = vpop.f32.mrb[0].mxu0
          %v1132 = vadd.f32 %v996, %v1131
          %v1133 = vpop.f32.mrb[0].mxu0
          %1134 = vdwg.mxu0
          %v1135 = vmul.f32 %v1129, 0.088388346
          %v1136 = vmul.f32 %v1132, 0.088388346
          %v1137 = vpack.c.bf16 %v1136, %v1135
          %1138 = vst [vmem:[#allocation2] sm:$0xff] %v1137
          %s1139 = scalar_lea.vmem [#allocation21], 128
          %v1140 = vld [vmem:[%s1139] sm:$0xf]
          %v1141 = vld [vmem:[%s1139 + $0x4] sm:$0xf]
          %v1142 = vld [vmem:[%s1139 + $0x8] sm:$0xf]
          %v1143 = vld [vmem:[%s1139 + $0xc] sm:$0xf]
          %v1144 = vld [vmem:[%s1139 + $0x10] sm:$0xf]
          %v1145 = vld [vmem:[%s1139 + $0x14] sm:$0xf]
          %v1146 = vld [vmem:[%s1139 + $0x18] sm:$0xf]
          %v1147 = vld [vmem:[%s1139 + $0x1c] sm:$0xf]
          %v1148 = vld [vmem:[%s1139 + $0x20] sm:$0xf]
          %v1149 = vld [vmem:[%s1139 + $0x24] sm:$0xf]
          %v1150 = vld [vmem:[%s1139 + $0x28] sm:$0xf]
          %v1151 = vld [vmem:[%s1139 + $0x2c] sm:$0xf]
          %v1152 = vld [vmem:[%s1139 + $0x30] sm:$0xf]
          %v1153 = vld [vmem:[%s1139 + $0x34] sm:$0xf]
          %v1154 = vld [vmem:[%s1139 + $0x38] sm:$0xf]
          %v1155 = vld [vmem:[%s1139 + $0x3c] sm:$0xf]
          %v1156 = vld [vmem:[%s1139 + $0x40] sm:$0xf]
          %v1157 = vld [vmem:[%s1139 + $0x44] sm:$0xf]
          %v1158 = vld [vmem:[%s1139 + $0x48] sm:$0xf]
          %v1159 = vld [vmem:[%s1139 + $0x4c] sm:$0xf]
          %v1160 = vld [vmem:[%s1139 + $0x50] sm:$0xf]
          %v1161 = vld [vmem:[%s1139 + $0x54] sm:$0xf]
          %v1162 = vld [vmem:[%s1139 + $0x58] sm:$0xf]
          %v1163 = vld [vmem:[%s1139 + $0x5c] sm:$0xf]
          %v1164 = vld [vmem:[%s1139 + $0x60] sm:$0xf]
          %v1165 = vld [vmem:[%s1139 + $0x64] sm:$0xf]
          %v1166 = vld [vmem:[%s1139 + $0x68] sm:$0xf]
          %v1167 = vld [vmem:[%s1139 + $0x6c] sm:$0xf]
          %v1168 = vld [vmem:[%s1139 + $0x70] sm:$0xf]
          %v1169 = vld [vmem:[%s1139 + $0x74] sm:$0xf]
          %v1170 = vld [vmem:[%s1139 + $0x78] sm:$0xf]
          %v1171 = vld [vmem:[%s1139 + $0x7c] sm:$0xf]
          %s1172 = scalar_lea.vmem [#allocation23], 1
          %v1173 = vld [vmem:[%s1172] sm:$0x1]
          %v1175 = vlaneseq
          %v1176 = vshrl.u32 %v1175, 7
          %v1177 = vsub.s32 0, %v1176
          %v1178 = vrot.slane %v1173, %v1177
          %v1212 = vunpack.c.l.b16 %v1140
          %v1213 = vunpack.c.l.b16 %v1141
          %v1214 = vunpack.c.l.b16 %v1142
          %v1215 = vunpack.c.l.b16 %v1143
          %v1216 = vunpack.c.l.b16 %v1144
          %v1217 = vunpack.c.l.b16 %v1145
          %v1218 = vunpack.c.l.b16 %v1146
          %v1219 = vunpack.c.l.b16 %v1147
          %v1220 = vunpack.c.l.b16 %v1148
          %v1221 = vunpack.c.l.b16 %v1149
          %v1222 = vunpack.c.l.b16 %v1150
          %v1223 = vunpack.c.l.b16 %v1151
          %v1224 = vunpack.c.l.b16 %v1152
          %v1225 = vunpack.c.l.b16 %v1153
          %v1226 = vunpack.c.l.b16 %v1154
          %v1227 = vunpack.c.l.b16 %v1155
          %v1228 = vunpack.c.l.b16 %v1156
          %v1229 = vunpack.c.l.b16 %v1157
          %v1230 = vunpack.c.l.b16 %v1158
          %v1231 = vunpack.c.l.b16 %v1159
          %v1232 = vunpack.c.l.b16 %v1160
          %v1233 = vunpack.c.l.b16 %v1161
          %v1234 = vunpack.c.l.b16 %v1162
          %v1235 = vunpack.c.l.b16 %v1163
          %v1236 = vunpack.c.l.b16 %v1164
          %v1237 = vunpack.c.l.b16 %v1165
          %v1238 = vunpack.c.l.b16 %v1166
          %v1239 = vunpack.c.l.b16 %v1167
          %v1240 = vunpack.c.l.b16 %v1168
          %v1241 = vunpack.c.l.b16 %v1169
          %v1242 = vunpack.c.l.b16 %v1170
          %v1243 = vunpack.c.l.b16 %v1171
          %v1244 = vpack.c.b16 %v1213, %v1212
          %v1245 = vpack.c.b16 %v1215, %v1214
          %v1246 = vpack.c.b16 %v1217, %v1216
          %v1247 = vpack.c.b16 %v1219, %v1218
          %v1248 = vpack.c.b16 %v1221, %v1220
          %v1249 = vpack.c.b16 %v1223, %v1222
          %v1250 = vpack.c.b16 %v1225, %v1224
          %v1251 = vpack.c.b16 %v1227, %v1226
          %v1252 = vpack.c.b16 %v1229, %v1228
          %v1253 = vpack.c.b16 %v1231, %v1230
          %v1254 = vpack.c.b16 %v1233, %v1232
          %v1255 = vpack.c.b16 %v1235, %v1234
          %v1256 = vpack.c.b16 %v1237, %v1236
          %v1257 = vpack.c.b16 %v1239, %v1238
          %v1258 = vpack.c.b16 %v1241, %v1240
          %v1259 = vpack.c.b16 %v1243, %v1242
          %1276 = vmatprep.subr.bf16.mxu0 0
          %1277 = vmatpush1.bf16.msra.mxu0 %v1244
          %1278 = vmatprep.subr.bf16.mxu0 0
          %1279 = vmatpush1.bf16.msra.mxu0 %v1245
          %1280 = vmatprep.subr.bf16.mxu0 0
          %1281 = vmatpush1.bf16.msra.mxu0 %v1246
          %1282 = vmatprep.subr.bf16.mxu0 0
          %1283 = vmatpush1.bf16.msra.mxu0 %v1247
          %1284 = vmatprep.subr.bf16.mxu0 0
          %1285 = vmatpush1.bf16.msra.mxu0 %v1248
          %1286 = vmatprep.subr.bf16.mxu0 0
          %1287 = vmatpush1.bf16.msra.mxu0 %v1249
          %1288 = vmatprep.subr.bf16.mxu0 0
          %1289 = vmatpush1.bf16.msra.mxu0 %v1250
          %1290 = vmatprep.subr.bf16.mxu0 0
          %1291 = vmatpush1.bf16.msra.mxu0 %v1251
          %1292 = vmatprep.subr.bf16.mxu0 0
          %1293 = vmatpush1.bf16.msra.mxu0 %v1252
          %1294 = vmatprep.subr.bf16.mxu0 0
          %1295 = vmatpush1.bf16.msra.mxu0 %v1253
          %1296 = vmatprep.subr.bf16.mxu0 0
          %1297 = vmatpush1.bf16.msra.mxu0 %v1254
          %1298 = vmatprep.subr.bf16.mxu0 0
          %1299 = vmatpush1.bf16.msra.mxu0 %v1255
          %1300 = vmatprep.subr.bf16.mxu0 0
          %1301 = vmatpush1.bf16.msra.mxu0 %v1256
          %1302 = vmatprep.subr.bf16.mxu0 0
          %1303 = vmatpush1.bf16.msra.mxu0 %v1257
          %1304 = vmatprep.subr.bf16.mxu0 0
          %1305 = vmatpush1.bf16.msra.mxu0 %v1258
          %1306 = vmatprep.subr.bf16.mxu0 0
          %1307 = vmatpush1.bf16.msra.mxu0 %v1259
          %1308 = vmatprep.mubr.bf16.mxu0 %v958
          %1309 = vmatmul.mubr.bf16.gmra.mrb[0].mxu0 %v957
          %v1310 = vpop.f32.mrb[0].mxu0
          %v1311 = vadd.f32 %v1178, %v1310
          %v1312 = vpop.f32.mrb[0].mxu0
          %v1313 = vpop.f32.mrb[0].mxu0
          %v1314 = vadd.f32 %v1178, %v1313
          %v1315 = vpop.f32.mrb[0].mxu0
          %1316 = vdwg.mxu0
          %v1317 = vmul.f32 %v1311, 0.088388346
          %v1318 = vmul.f32 %v1314, 0.088388346
          %v1319 = vpack.c.bf16 %v1318, %v1317
          %s1320 = scalar_lea.vmem [#allocation2], 8
          %1321 = vst [vmem:[%s1320] sm:$0xff] %v1319
        $region152: #{tpu_custom_call.1} parent=83 // pred_fallthru
          _
        %v1322 = vld [vmem:[%s688] sm:$0xff]
        %v1323 = vld [vmem:[%s688 + $0x8] sm:$0xff]
        %v1324 = vld [vmem:[%s688 + $0x10] sm:$0xff]
        %v1325 = vld [vmem:[%s688 + $0x18] sm:$0xff]
        %v1326 = vld [vmem:[#allocation15] sm:$0x3]
        %v1327 = vld [vmem:[#allocation17] sm:$0x3]
        %v1328 = vadd.f32 %v1322, %v1323
        %1329 = vadd.xlane.f32.xlu0 %v1328
        %v1330 = vpop.xlane.xlu0 %1329
        %v1331 = vadd.f32 %v1324, %v1325
        %1332 = vadd.xlane.f32.xlu0 %v1331
        %v1333 = vpop.xlane.xlu0 %1332
        %v1334 = vrcp.pop 256.0
        %v1335 = vmul.f32 %v1330, %v1334
        %v1336 = vmul.f32 %v1333, %v1334
        %v1337 = vsub.f32 %v1322, %v1335
        %v1338 = vsub.f32 %v1323, %v1335
        %v1339 = vsub.f32 %v1324, %v1336
        %v1340 = vsub.f32 %v1325, %v1336
        %v1341 = vmul.f32 %v1337, %v1337
        %v1342 = vmul.f32 %v1338, %v1338
        %v1343 = vmul.f32 %v1339, %v1339
        %v1344 = vmul.f32 %v1340, %v1340
        %v1345 = vadd.f32 %v1341, %v1342
        %1346 = vadd.xlane.f32.xlu0 %v1345
        %v1347 = vpop.xlane.xlu0 %1346
        %v1348 = vadd.f32 %v1343, %v1344
        %1349 = vadd.xlane.f32.xlu0 %v1348
        %v1350 = vpop.xlane.xlu0 %1349
        %v1351 = vmul.f32 %v1347, %v1334
        %v1352 = vmul.f32 %v1350, %v1334
        %v1353 = vadd.f32 %v1351, 1e-05
        %v1354 = vadd.f32 %v1352, 1e-05
        %v1355 = vrsqrt.pop %v1353
        %v1356 = vrsqrt.pop %v1354
        %v1357 = vmul.f32 %v1337, %v1355
        %v1358 = vmul.f32 %v1338, %v1355
        %v1359 = vmul.f32 %v1339, %v1356
        %v1360 = vmul.f32 %v1340, %v1356
        %v1362 = vlaneseq
        %v1363 = vshrl.u32 %v1362, 7
        %v1364 = vsub.s32 0, %v1363
        %v1365 = vrot.slane %v1326, %v1364
        %v1366 = vlaneseq
        %v1367 = vshrl.u32 %v1366, 7
        %v1368 = vsub.s32 1, %v1367
        %v1369 = vrot.slane %v1326, %v1368
        %v1372 = vmul.f32 %v1357, %v1365
        %v1373 = vmul.f32 %v1358, %v1369
        %v1374 = vmul.f32 %v1359, %v1365
        %v1375 = vmul.f32 %v1360, %v1369
        %v1377 = vlaneseq
        %v1378 = vshrl.u32 %v1377, 7
        %v1379 = vsub.s32 0, %v1378
        %v1380 = vrot.slane %v1327, %v1379
        %v1381 = vlaneseq
        %v1382 = vshrl.u32 %v1381, 7
        %v1383 = vsub.s32 1, %v1382
        %v1384 = vrot.slane %v1327, %v1383
        %v1387 = vadd.f32 %v1372, %v1380
        %v1388 = vadd.f32 %v1373, %v1384
        %v1389 = vadd.f32 %v1374, %v1380
        %v1390 = vadd.f32 %v1375, %v1384
        %v1391 = vpack.c.bf16 %v1389, %v1387
        %v1392 = vpack.c.bf16 %v1390, %v1388
        %s1393 = smul.u32 %s56, 16
        %v1394 = vlaneseq
        %v1395 = vand.u32 %v1394, 127
        %v1396 = vstv %s1393
        %v1397 = vadd.s32 %v1396, %v1395
        %v1398 = vstv %s820
        %vm1399 = vcmp.lt.s32.totalorder %v1397, %v1398
        %v1400 = vld [vmem:[#allocation24] sm:$0xf]
        %v1401 = vld [vmem:[#allocation24 + $0x4] sm:$0xf]
        %v1402 = vld [vmem:[#allocation24 + $0x8] sm:$0xf]
        %v1403 = vld [vmem:[#allocation24 + $0xc] sm:$0xf]
        %v1404 = vld [vmem:[#allocation24 + $0x10] sm:$0xf]
        %v1405 = vld [vmem:[#allocation24 + $0x14] sm:$0xf]
        %v1406 = vld [vmem:[#allocation24 + $0x18] sm:$0xf]
        %v1407 = vld [vmem:[#allocation24 + $0x1c] sm:$0xf]
        %v1408 = vld [vmem:[#allocation24 + $0x20] sm:$0xf]
        %v1409 = vld [vmem:[#allocation24 + $0x24] sm:$0xf]
        %v1410 = vld [vmem:[#allocation24 + $0x28] sm:$0xf]
        %v1411 = vld [vmem:[#allocation24 + $0x2c] sm:$0xf]
        %v1412 = vld [vmem:[#allocation24 + $0x30] sm:$0xf]
        %v1413 = vld [vmem:[#allocation24 + $0x34] sm:$0xf]
        %v1414 = vld [vmem:[#allocation24 + $0x38] sm:$0xf]
        %v1415 = vld [vmem:[#allocation24 + $0x3c] sm:$0xf]
        %v1416 = vld [vmem:[#allocation24 + $0x40] sm:$0xf]
        %v1417 = vld [vmem:[#allocation24 + $0x44] sm:$0xf]
        %v1418 = vld [vmem:[#allocation24 + $0x48] sm:$0xf]
        %v1419 = vld [vmem:[#allocation24 + $0x4c] sm:$0xf]
        %v1420 = vld [vmem:[#allocation24 + $0x50] sm:$0xf]
        %v1421 = vld [vmem:[#allocation24 + $0x54] sm:$0xf]
        %v1422 = vld [vmem:[#allocation24 + $0x58] sm:$0xf]
        %v1423 = vld [vmem:[#allocation24 + $0x5c] sm:$0xf]
        %v1424 = vld [vmem:[#allocation24 + $0x60] sm:$0xf]
        %v1425 = vld [vmem:[#allocation24 + $0x64] sm:$0xf]
        %v1426 = vld [vmem:[#allocation24 + $0x68] sm:$0xf]
        %v1427 = vld [vmem:[#allocation24 + $0x6c] sm:$0xf]
        %v1428 = vld [vmem:[#allocation24 + $0x70] sm:$0xf]
        %v1429 = vld [vmem:[#allocation24 + $0x74] sm:$0xf]
        %v1430 = vld [vmem:[#allocation24 + $0x78] sm:$0xf]
        %v1431 = vld [vmem:[#allocation24 + $0x7c] sm:$0xf]
        %v1432 = vld [vmem:[#allocation26] sm:$0x1]
        %v1434 = vlaneseq
        %v1435 = vshrl.u32 %v1434, 7
        %v1436 = vsub.s32 0, %v1435
        %v1437 = vrot.slane %v1432, %v1436
        %v1471 = vunpack.c.l.b16 %v1400
        %v1472 = vunpack.c.l.b16 %v1401
        %v1473 = vunpack.c.l.b16 %v1402
        %v1474 = vunpack.c.l.b16 %v1403
        %v1475 = vunpack.c.l.b16 %v1404
        %v1476 = vunpack.c.l.b16 %v1405
        %v1477 = vunpack.c.l.b16 %v1406
        %v1478 = vunpack.c.l.b16 %v1407
        %v1479 = vunpack.c.l.b16 %v1408
        %v1480 = vunpack.c.l.b16 %v1409
        %v1481 = vunpack.c.l.b16 %v1410
        %v1482 = vunpack.c.l.b16 %v1411
        %v1483 = vunpack.c.l.b16 %v1412
        %v1484 = vunpack.c.l.b16 %v1413
        %v1485 = vunpack.c.l.b16 %v1414
        %v1486 = vunpack.c.l.b16 %v1415
        %v1487 = vunpack.c.l.b16 %v1416
        %v1488 = vunpack.c.l.b16 %v1417
        %v1489 = vunpack.c.l.b16 %v1418
        %v1490 = vunpack.c.l.b16 %v1419
        %v1491 = vunpack.c.l.b16 %v1420
        %v1492 = vunpack.c.l.b16 %v1421
        %v1493 = vunpack.c.l.b16 %v1422
        %v1494 = vunpack.c.l.b16 %v1423
        %v1495 = vunpack.c.l.b16 %v1424
        %v1496 = vunpack.c.l.b16 %v1425
        %v1497 = vunpack.c.l.b16 %v1426
        %v1498 = vunpack.c.l.b16 %v1427
        %v1499 = vunpack.c.l.b16 %v1428
        %v1500 = vunpack.c.l.b16 %v1429
        %v1501 = vunpack.c.l.b16 %v1430
        %v1502 = vunpack.c.l.b16 %v1431
        %v1503 = vpack.c.b16 %v1472, %v1471
        %v1504 = vpack.c.b16 %v1474, %v1473
        %v1505 = vpack.c.b16 %v1476, %v1475
        %v1506 = vpack.c.b16 %v1478, %v1477
        %v1507 = vpack.c.b16 %v1480, %v1479
        %v1508 = vpack.c.b16 %v1482, %v1481
        %v1509 = vpack.c.b16 %v1484, %v1483
        %v1510 = vpack.c.b16 %v1486, %v1485
        %v1511 = vpack.c.b16 %v1488, %v1487
        %v1512 = vpack.c.b16 %v1490, %v1489
        %v1513 = vpack.c.b16 %v1492, %v1491
        %v1514 = vpack.c.b16 %v1494, %v1493
        %v1515 = vpack.c.b16 %v1496, %v1495
        %v1516 = vpack.c.b16 %v1498, %v1497
        %v1517 = vpack.c.b16 %v1500, %v1499
        %v1518 = vpack.c.b16 %v1502, %v1501
        %1535 = vmatprep.subr.bf16.mxu0 0
        %1536 = vmatpush1.bf16.msra.mxu0 %v1503
        %1537 = vmatprep.subr.bf16.mxu0 0
        %1538 = vmatpush1.bf16.msra.mxu0 %v1504
        %1539 = vmatprep.subr.bf16.mxu0 0
        %1540 = vmatpush1.bf16.msra.mxu0 %v1505
        %1541 = vmatprep.subr.bf16.mxu0 0
        %1542 = vmatpush1.bf16.msra.mxu0 %v1506
        %1543 = vmatprep.subr.bf16.mxu0 0
        %1544 = vmatpush1.bf16.msra.mxu0 %v1507
        %1545 = vmatprep.subr.bf16.mxu0 0
        %1546 = vmatpush1.bf16.msra.mxu0 %v1508
        %1547 = vmatprep.subr.bf16.mxu0 0
        %1548 = vmatpush1.bf16.msra.mxu0 %v1509
        %1549 = vmatprep.subr.bf16.mxu0 0
        %1550 = vmatpush1.bf16.msra.mxu0 %v1510
        %1551 = vmatprep.subr.bf16.mxu0 0
        %1552 = vmatpush1.bf16.msra.mxu0 %v1511
        %1553 = vmatprep.subr.bf16.mxu0 0
        %1554 = vmatpush1.bf16.msra.mxu0 %v1512
        %1555 = vmatprep.subr.bf16.mxu0 0
        %1556 = vmatpush1.bf16.msra.mxu0 %v1513
        %1557 = vmatprep.subr.bf16.mxu0 0
        %1558 = vmatpush1.bf16.msra.mxu0 %v1514
        %1559 = vmatprep.subr.bf16.mxu0 0
        %1560 = vmatpush1.bf16.msra.mxu0 %v1515
        %1561 = vmatprep.subr.bf16.mxu0 0
        %1562 = vmatpush1.bf16.msra.mxu0 %v1516
        %1563 = vmatprep.subr.bf16.mxu0 0
        %1564 = vmatpush1.bf16.msra.mxu0 %v1517
        %1565 = vmatprep.subr.bf16.mxu0 0
        %1566 = vmatpush1.bf16.msra.mxu0 %v1518
        %1567 = vmatprep.mubr.bf16.mxu0 %v1392
        %1568 = vmatmul.mubr.bf16.gmra.mrb[0].mxu0 %v1391
        %v1569 = vpop.f32.mrb[0].mxu0
        %v1570 = vadd.f32 %v1437, %v1569
        %v1571 = vpop.f32.mrb[0].mxu0
        %v1572 = vpop.f32.mrb[0].mxu0
        %v1573 = vadd.f32 %v1437, %v1572
        %v1574 = vpop.f32.mrb[0].mxu0
        %1575 = vdwg.mxu0
        %v1576 = vld [vmem:[#allocation27] sm:$0xf]
        %v1577 = vld [vmem:[#allocation27 + $0x4] sm:$0xf]
        %v1578 = vld [vmem:[#allocation27 + $0x8] sm:$0xf]
        %v1579 = vld [vmem:[#allocation27 + $0xc] sm:$0xf]
        %v1580 = vld [vmem:[#allocation27 + $0x10] sm:$0xf]
        %v1581 = vld [vmem:[#allocation27 + $0x14] sm:$0xf]
        %v1582 = vld [vmem:[#allocation27 + $0x18] sm:$0xf]
        %v1583 = vld [vmem:[#allocation27 + $0x1c] sm:$0xf]
        %v1584 = vld [vmem:[#allocation27 + $0x20] sm:$0xf]
        %v1585 = vld [vmem:[#allocation27 + $0x24] sm:$0xf]
        %v1586 = vld [vmem:[#allocation27 + $0x28] sm:$0xf]
        %v1587 = vld [vmem:[#allocation27 + $0x2c] sm:$0xf]
        %v1588 = vld [vmem:[#allocation27 + $0x30] sm:$0xf]
        %v1589 = vld [vmem:[#allocation27 + $0x34] sm:$0xf]
        %v1590 = vld [vmem:[#allocation27 + $0x38] sm:$0xf]
        %v1591 = vld [vmem:[#allocation27 + $0x3c] sm:$0xf]
        %v1592 = vld [vmem:[#allocation27 + $0x40] sm:$0xf]
        %v1593 = vld [vmem:[#allocation27 + $0x44] sm:$0xf]
        %v1594 = vld [vmem:[#allocation27 + $0x48] sm:$0xf]
        %v1595 = vld [vmem:[#allocation27 + $0x4c] sm:$0xf]
        %v1596 = vld [vmem:[#allocation27 + $0x50] sm:$0xf]
        %v1597 = vld [vmem:[#allocation27 + $0x54] sm:$0xf]
        %v1598 = vld [vmem:[#allocation27 + $0x58] sm:$0xf]
        %v1599 = vld [vmem:[#allocation27 + $0x5c] sm:$0xf]
        %v1600 = vld [vmem:[#allocation27 + $0x60] sm:$0xf]
        %v1601 = vld [vmem:[#allocation27 + $0x64] sm:$0xf]
        %v1602 = vld [vmem:[#allocation27 + $0x68] sm:$0xf]
        %v1603 = vld [vmem:[#allocation27 + $0x6c] sm:$0xf]
        %v1604 = vld [vmem:[#allocation27 + $0x70] sm:$0xf]
        %v1605 = vld [vmem:[#allocation27 + $0x74] sm:$0xf]
        %v1606 = vld [vmem:[#allocation27 + $0x78] sm:$0xf]
        %v1607 = vld [vmem:[#allocation27 + $0x7c] sm:$0xf]
        %v1608 = vld [vmem:[#allocation29] sm:$0x1]
        %v1610 = vlaneseq
        %v1611 = vshrl.u32 %v1610, 7
        %v1612 = vsub.s32 0, %v1611
        %v1613 = vrot.slane %v1608, %v1612
        %v1647 = vunpack.c.l.b16 %v1576
        %v1648 = vunpack.c.l.b16 %v1577
        %v1649 = vunpack.c.l.b16 %v1578
        %v1650 = vunpack.c.l.b16 %v1579
        %v1651 = vunpack.c.l.b16 %v1580
        %v1652 = vunpack.c.l.b16 %v1581
        %v1653 = vunpack.c.l.b16 %v1582
        %v1654 = vunpack.c.l.b16 %v1583
        %v1655 = vunpack.c.l.b16 %v1584
        %v1656 = vunpack.c.l.b16 %v1585
        %v1657 = vunpack.c.l.b16 %v1586
        %v1658 = vunpack.c.l.b16 %v1587
        %v1659 = vunpack.c.l.b16 %v1588
        %v1660 = vunpack.c.l.b16 %v1589
        %v1661 = vunpack.c.l.b16 %v1590
        %v1662 = vunpack.c.l.b16 %v1591
        %v1663 = vunpack.c.l.b16 %v1592
        %v1664 = vunpack.c.l.b16 %v1593
        %v1665 = vunpack.c.l.b16 %v1594
        %v1666 = vunpack.c.l.b16 %v1595
        %v1667 = vunpack.c.l.b16 %v1596
        %v1668 = vunpack.c.l.b16 %v1597
        %v1669 = vunpack.c.l.b16 %v1598
        %v1670 = vunpack.c.l.b16 %v1599
        %v1671 = vunpack.c.l.b16 %v1600
        %v1672 = vunpack.c.l.b16 %v1601
        %v1673 = vunpack.c.l.b16 %v1602
        %v1674 = vunpack.c.l.b16 %v1603
        %v1675 = vunpack.c.l.b16 %v1604
        %v1676 = vunpack.c.l.b16 %v1605
        %v1677 = vunpack.c.l.b16 %v1606
        %v1678 = vunpack.c.l.b16 %v1607
        %v1679 = vpack.c.b16 %v1648, %v1647
        %v1680 = vpack.c.b16 %v1650, %v1649
        %v1681 = vpack.c.b16 %v1652, %v1651
        %v1682 = vpack.c.b16 %v1654, %v1653
        %v1683 = vpack.c.b16 %v1656, %v1655
        %v1684 = vpack.c.b16 %v1658, %v1657
        %v1685 = vpack.c.b16 %v1660, %v1659
        %v1686 = vpack.c.b16 %v1662, %v1661
        %v1687 = vpack.c.b16 %v1664, %v1663
        %v1688 = vpack.c.b16 %v1666, %v1665
        %v1689 = vpack.c.b16 %v1668, %v1667
        %v1690 = vpack.c.b16 %v1670, %v1669
        %v1691 = vpack.c.b16 %v1672, %v1671
        %v1692 = vpack.c.b16 %v1674, %v1673
        %v1693 = vpack.c.b16 %v1676, %v1675
        %v1694 = vpack.c.b16 %v1678, %v1677
        %1711 = vmatprep.subr.bf16.mxu0 0
        %1712 = vmatpush1.bf16.msra.mxu0 %v1679
        %1713 = vmatprep.subr.bf16.mxu0 0
        %1714 = vmatpush1.bf16.msra.mxu0 %v1680
        %1715 = vmatprep.subr.bf16.mxu0 0
        %1716 = vmatpush1.bf16.msra.mxu0 %v1681
        %1717 = vmatprep.subr.bf16.mxu0 0
        %1718 = vmatpush1.bf16.msra.mxu0 %v1682
        %1719 = vmatprep.subr.bf16.mxu0 0
        %1720 = vmatpush1.bf16.msra.mxu0 %v1683
        %1721 = vmatprep.subr.bf16.mxu0 0
        %1722 = vmatpush1.bf16.msra.mxu0 %v1684
        %1723 = vmatprep.subr.bf16.mxu0 0
        %1724 = vmatpush1.bf16.msra.mxu0 %v1685
        %1725 = vmatprep.subr.bf16.mxu0 0
        %1726 = vmatpush1.bf16.msra.mxu0 %v1686
        %1727 = vmatprep.subr.bf16.mxu0 0
        %1728 = vmatpush1.bf16.msra.mxu0 %v1687
        %1729 = vmatprep.subr.bf16.mxu0 0
        %1730 = vmatpush1.bf16.msra.mxu0 %v1688
        %1731 = vmatprep.subr.bf16.mxu0 0
        %1732 = vmatpush1.bf16.msra.mxu0 %v1689
        %1733 = vmatprep.subr.bf16.mxu0 0
        %1734 = vmatpush1.bf16.msra.mxu0 %v1690
        %1735 = vmatprep.subr.bf16.mxu0 0
        %1736 = vmatpush1.bf16.msra.mxu0 %v1691
        %1737 = vmatprep.subr.bf16.mxu0 0
        %1738 = vmatpush1.bf16.msra.mxu0 %v1692
        %1739 = vmatprep.subr.bf16.mxu0 0
        %1740 = vmatpush1.bf16.msra.mxu0 %v1693
        %1741 = vmatprep.subr.bf16.mxu0 0
        %1742 = vmatpush1.bf16.msra.mxu0 %v1694
        %1743 = vmatprep.mubr.bf16.mxu0 %v1392
        %1744 = vmatmul.mubr.bf16.gmra.mrb[0].mxu0 %v1391
        %v1745 = vpop.f32.mrb[0].mxu0
        %v1746 = vadd.f32 %v1613, %v1745
        %v1747 = vpop.f32.mrb[0].mxu0
        %v1748 = vpop.f32.mrb[0].mxu0
        %v1749 = vadd.f32 %v1613, %v1748
        %v1750 = vpop.f32.mrb[0].mxu0
        %1751 = vdwg.mxu0
        %v1752 = vld [vmem:[#allocation2] sm:$0xff]
        %v1753 = vpack.c.bf16 %v1573, %v1570
        %1754 = vmatprep.subr.bf16.mxu0 0
        %1755 = vmatpush1.bf16.xpose.msra.mxu0 %v1753
        %1756 = vmatprep.subr.bf16.mxu0 0
        %1757 = vmatpush1.bf16.xpose.msra.mxu0 0
        %1758 = vmatprep.subr.bf16.mxu0 0
        %1759 = vmatpush1.bf16.xpose.msra.mxu0 0
        %1760 = vmatprep.subr.bf16.mxu0 0
        %1761 = vmatpush1.bf16.xpose.msra.mxu0 0
        %1762 = vmatprep.subr.bf16.mxu0 0
        %1763 = vmatpush1.bf16.xpose.msra.mxu0 0
        %1764 = vmatprep.subr.bf16.mxu0 0
        %1765 = vmatpush1.bf16.xpose.msra.mxu0 0
        %1766 = vmatprep.subr.bf16.mxu0 0
        %1767 = vmatpush1.bf16.xpose.msra.mxu0 0
        %1768 = vmatprep.subr.bf16.mxu0 0
        %1769 = vmatpush1.bf16.xpose.msra.mxu0 0
        %1770 = vmatprep.subr.bf16.mxu0 0
        %1771 = vmatpush1.bf16.xpose.msra.mxu0 0
        %1772 = vmatprep.subr.bf16.mxu0 0
        %1773 = vmatpush1.bf16.xpose.msra.mxu0 0
        %1774 = vmatprep.subr.bf16.mxu0 0
        %1775 = vmatpush1.bf16.xpose.msra.mxu0 0
        %1776 = vmatprep.subr.bf16.mxu0 0
        %1777 = vmatpush1.bf16.xpose.msra.mxu0 0
        %1778 = vmatprep.subr.bf16.mxu0 0
        %1779 = vmatpush1.bf16.xpose.msra.mxu0 0
        %1780 = vmatprep.subr.bf16.mxu0 0
        %1781 = vmatpush1.bf16.xpose.msra.mxu0 0
        %1782 = vmatprep.subr.bf16.mxu0 0
        %1783 = vmatpush1.bf16.xpose.msra.mxu0 0
        %1784 = vmatprep.subr.bf16.mxu0 0
        %1785 = vmatpush1.bf16.xpose.msra.mxu0 0
        %1786 = vmatprep.mubr.bf16.mxu0 0
        %1787 = vmatmul.mubr.bf16.gmra.mrb[0].mxu0 %v1752
        %v1788 = vpop.f32.mrb[0].mxu0
        %v1789 = vadd.f32 0.0, %v1788
        %v1790 = vpop.f32.mrb[0].mxu0
        %v1791 = vpop.f32.mrb[0].mxu0
        %v1792 = vadd.f32 0.0, %v1791
        %v1793 = vpop.f32.mrb[0].mxu0
        %1794 = vdwg.mxu0
        %v1795 = vsel %vm1399, 1, 0
        %vm1796 = vcmp.eq.s32.totalorder %v1795, 1
        %v1797 = vsel %vm1796, %v1789, -1e+30
        %v1798 = vsel %vm1796, %v1792, -1e+30
        %v1799 = vld [vmem:[#allocation3] sm:$0xff]
        %v1800 = vld [vmem:[#allocation3 + $0x8] sm:$0xff]
        %vm1801 = vcmask 130048
        %v1802 = vsel %vm1801, %v1797, -inf
        %1803 = vmax.xlane.f32.xlu0 %v1802
        %v1804 = vpop.xlane.xlu0 %1803
        %v1805 = vsel %vm1801, %v1798, -inf
        %1806 = vmax.xlane.f32.xlu0 %v1805
        %v1807 = vpop.xlane.xlu0 %1806
        %v1808 = vmax.f32 %v1799, %v1804
        %v1809 = vmax.f32 %v1800, %v1807
        %v1810 = vsub.f32 %v1799, %v1808
        %v1811 = vsub.f32 %v1800, %v1809
        %v1812 = vmul.f32 %v1810, 1.442695
        %v1813 = vpow.pop %v1812
        %v1814 = vmul.f32 %v1811, 1.442695
        %v1815 = vpow.pop %v1814
        %1817 = vset.pattern.permute.xlu0 0
        %1818 = vperm.xlu0 %1817, %v1808
        %v1819 = vpop.permute.xlu0 %1818
        %1822 = vset.pattern.permute.xlu0 0
        %1823 = vperm.xlu0 %1822, %v1809
        %v1824 = vpop.permute.xlu0 %1823
        %v1826 = vsub.f32 %v1797, %v1819
        %v1827 = vsub.f32 %v1798, %v1824
        %v1828 = vmul.f32 %v1826, 1.442695
        %v1829 = vpow.pop %v1828
        %v1830 = vmul.f32 %v1827, 1.442695
        %v1831 = vpow.pop %v1830
        %v1832 = vld [vmem:[#allocation4] sm:$0xff]
        %v1833 = vld [vmem:[#allocation4 + $0x8] sm:$0xff]
        %v1834 = vmul.f32 %v1813, %v1832
        %v1835 = vmul.f32 %v1815, %v1833
        %v1836 = vsel %vm1801, %v1829, 0.0
        %1837 = vadd.xlane.f32.xlu0 %v1836
        %v1838 = vpop.xlane.xlu0 %1837
        %v1839 = vsel %vm1801, %v1831, 0.0
        %1840 = vadd.xlane.f32.xlu0 %v1839
        %v1841 = vpop.xlane.xlu0 %1840
        %v1842 = vadd.f32 %v1834, %v1838
        %v1843 = vadd.f32 %v1835, %v1841
        %vm1844 = vcmask 7168
        %1845 = vst.msk [vmem:[#allocation4] sm:$0xff] %vm1844, %v1842
        %1846 = vst.msk [vmem:[#allocation4 + $0x8] sm:$0xff] %vm1844, %v1843
        %v1847 = vld [vmem:[#allocation5] sm:$0xff]
        %v1848 = vld [vmem:[#allocation5 + $0x8] sm:$0xff]
        %1850 = vset.pattern.permute.xlu0 0
        %1851 = vperm.xlu0 %1850, %v1813
        %v1852 = vpop.permute.xlu0 %1851
        %1855 = vset.pattern.permute.xlu0 0
        %1856 = vperm.xlu0 %1855, %v1815
        %v1857 = vpop.permute.xlu0 %1856
        %v1859 = vmul.f32 %v1852, %v1847
        %v1860 = vmul.f32 %v1857, %v1848
        %v1861 = vpack.c.bf16 %v1831, %v1829
        %v1862 = vpack.c.bf16 %v1749, %v1746
        %v1864 = vsel %vm1801, %v1861, 0
        %1866 = vmatprep.subr.bf16.mxu0 0
        %1867 = vmatpush1.bf16.msra.mxu0 %v1862
        %1868 = vmatprep.subr.bf16.mxu0 0
        %1869 = vmatpush1.bf16.msra.mxu0 0
        %1870 = vmatprep.subr.bf16.mxu0 0
        %1871 = vmatpush1.bf16.msra.mxu0 0
        %1872 = vmatprep.subr.bf16.mxu0 0
        %1873 = vmatpush1.bf16.msra.mxu0 0
        %1874 = vmatprep.subr.bf16.mxu0 0
        %1875 = vmatpush1.bf16.msra.mxu0 0
        %1876 = vmatprep.subr.bf16.mxu0 0
        %1877 = vmatpush1.bf16.msra.mxu0 0
        %1878 = vmatprep.subr.bf16.mxu0 0
        %1879 = vmatpush1.bf16.msra.mxu0 0
        %1880 = vmatprep.subr.bf16.mxu0 0
        %1881 = vmatpush1.bf16.msra.mxu0 0
        %1882 = vmatprep.subr.bf16.mxu0 0
        %1883 = vmatpush1.bf16.msra.mxu0 0
        %1884 = vmatprep.subr.bf16.mxu0 0
        %1885 = vmatpush1.bf16.msra.mxu0 0
        %1886 = vmatprep.subr.bf16.mxu0 0
        %1887 = vmatpush1.bf16.msra.mxu0 0
        %1888 = vmatprep.subr.bf16.mxu0 0
        %1889 = vmatpush1.bf16.msra.mxu0 0
        %1890 = vmatprep.subr.bf16.mxu0 0
        %1891 = vmatpush1.bf16.msra.mxu0 0
        %1892 = vmatprep.subr.bf16.mxu0 0
        %1893 = vmatpush1.bf16.msra.mxu0 0
        %1894 = vmatprep.subr.bf16.mxu0 0
        %1895 = vmatpush1.bf16.msra.mxu0 0
        %1896 = vmatprep.subr.bf16.mxu0 0
        %1897 = vmatpush1.bf16.msra.mxu0 0
        %1898 = vmatprep.mubr.bf16.mxu0 0
        %1899 = vmatmul.mubr.bf16.gmra.mrb[0].mxu0 %v1864
        %v1900 = vpop.f32.mrb[0].mxu0
        %v1901 = vadd.f32 0.0, %v1900
        %v1902 = vpop.f32.mrb[0].mxu0
        %v1903 = vpop.f32.mrb[0].mxu0
        %v1904 = vadd.f32 0.0, %v1903
        %v1905 = vpop.f32.mrb[0].mxu0
        %1906 = vdwg.mxu0
        %v1907 = vadd.f32 %v1859, %v1901
        %v1908 = vadd.f32 %v1860, %v1904
        %1909 = vst [vmem:[#allocation5] sm:$0xff] %v1907
        %1910 = vst [vmem:[#allocation5 + $0x8] sm:$0xff] %v1908
        %1911 = vst.msk [vmem:[#allocation3] sm:$0xff] %vm1844, %v1808
        %1912 = vst.msk [vmem:[#allocation3 + $0x8] sm:$0xff] %vm1844, %v1809
        %s1913 = scalar_lea.vmem [#allocation24], 128
        %v1914 = vld [vmem:[%s1913] sm:$0xf]
        %v1915 = vld [vmem:[%s1913 + $0x4] sm:$0xf]
        %v1916 = vld [vmem:[%s1913 + $0x8] sm:$0xf]
        %v1917 = vld [vmem:[%s1913 + $0xc] sm:$0xf]
        %v1918 = vld [vmem:[%s1913 + $0x10] sm:$0xf]
        %v1919 = vld [vmem:[%s1913 + $0x14] sm:$0xf]
        %v1920 = vld [vmem:[%s1913 + $0x18] sm:$0xf]
        %v1921 = vld [vmem:[%s1913 + $0x1c] sm:$0xf]
        %v1922 = vld [vmem:[%s1913 + $0x20] sm:$0xf]
        %v1923 = vld [vmem:[%s1913 + $0x24] sm:$0xf]
        %v1924 = vld [vmem:[%s1913 + $0x28] sm:$0xf]
        %v1925 = vld [vmem:[%s1913 + $0x2c] sm:$0xf]
        %v1926 = vld [vmem:[%s1913 + $0x30] sm:$0xf]
        %v1927 = vld [vmem:[%s1913 + $0x34] sm:$0xf]
        %v1928 = vld [vmem:[%s1913 + $0x38] sm:$0xf]
        %v1929 = vld [vmem:[%s1913 + $0x3c] sm:$0xf]
        %v1930 = vld [vmem:[%s1913 + $0x40] sm:$0xf]
        %v1931 = vld [vmem:[%s1913 + $0x44] sm:$0xf]
        %v1932 = vld [vmem:[%s1913 + $0x48] sm:$0xf]
        %v1933 = vld [vmem:[%s1913 + $0x4c] sm:$0xf]
        %v1934 = vld [vmem:[%s1913 + $0x50] sm:$0xf]
        %v1935 = vld [vmem:[%s1913 + $0x54] sm:$0xf]
        %v1936 = vld [vmem:[%s1913 + $0x58] sm:$0xf]
        %v1937 = vld [vmem:[%s1913 + $0x5c] sm:$0xf]
        %v1938 = vld [vmem:[%s1913 + $0x60] sm:$0xf]
        %v1939 = vld [vmem:[%s1913 + $0x64] sm:$0xf]
        %v1940 = vld [vmem:[%s1913 + $0x68] sm:$0xf]
        %v1941 = vld [vmem:[%s1913 + $0x6c] sm:$0xf]
        %v1942 = vld [vmem:[%s1913 + $0x70] sm:$0xf]
        %v1943 = vld [vmem:[%s1913 + $0x74] sm:$0xf]
        %v1944 = vld [vmem:[%s1913 + $0x78] sm:$0xf]
        %v1945 = vld [vmem:[%s1913 + $0x7c] sm:$0xf]
        %s1946 = scalar_lea.vmem [#allocation26], 1
        %v1947 = vld [vmem:[%s1946] sm:$0x1]
        %v1949 = vlaneseq
        %v1950 = vshrl.u32 %v1949, 7
        %v1951 = vsub.s32 0, %v1950
        %v1952 = vrot.slane %v1947, %v1951
        %v1986 = vunpack.c.l.b16 %v1914
        %v1987 = vunpack.c.l.b16 %v1915
        %v1988 = vunpack.c.l.b16 %v1916
        %v1989 = vunpack.c.l.b16 %v1917
        %v1990 = vunpack.c.l.b16 %v1918
        %v1991 = vunpack.c.l.b16 %v1919
        %v1992 = vunpack.c.l.b16 %v1920
        %v1993 = vunpack.c.l.b16 %v1921
        %v1994 = vunpack.c.l.b16 %v1922
        %v1995 = vunpack.c.l.b16 %v1923
        %v1996 = vunpack.c.l.b16 %v1924
        %v1997 = vunpack.c.l.b16 %v1925
        %v1998 = vunpack.c.l.b16 %v1926
        %v1999 = vunpack.c.l.b16 %v1927
        %v2000 = vunpack.c.l.b16 %v1928
        %v2001 = vunpack.c.l.b16 %v1929
        %v2002 = vunpack.c.l.b16 %v1930
        %v2003 = vunpack.c.l.b16 %v1931
        %v2004 = vunpack.c.l.b16 %v1932
        %v2005 = vunpack.c.l.b16 %v1933
        %v2006 = vunpack.c.l.b16 %v1934
        %v2007 = vunpack.c.l.b16 %v1935
        %v2008 = vunpack.c.l.b16 %v1936
        %v2009 = vunpack.c.l.b16 %v1937
        %v2010 = vunpack.c.l.b16 %v1938
        %v2011 = vunpack.c.l.b16 %v1939
        %v2012 = vunpack.c.l.b16 %v1940
        %v2013 = vunpack.c.l.b16 %v1941
        %v2014 = vunpack.c.l.b16 %v1942
        %v2015 = vunpack.c.l.b16 %v1943
        %v2016 = vunpack.c.l.b16 %v1944
        %v2017 = vunpack.c.l.b16 %v1945
        %v2018 = vpack.c.b16 %v1987, %v1986
        %v2019 = vpack.c.b16 %v1989, %v1988
        %v2020 = vpack.c.b16 %v1991, %v1990
        %v2021 = vpack.c.b16 %v1993, %v1992
        %v2022 = vpack.c.b16 %v1995, %v1994
        %v2023 = vpack.c.b16 %v1997, %v1996
        %v2024 = vpack.c.b16 %v1999, %v1998
        %v2025 = vpack.c.b16 %v2001, %v2000
        %v2026 = vpack.c.b16 %v2003, %v2002
        %v2027 = vpack.c.b16 %v2005, %v2004
        %v2028 = vpack.c.b16 %v2007, %v2006
        %v2029 = vpack.c.b16 %v2009, %v2008
        %v2030 = vpack.c.b16 %v2011, %v2010
        %v2031 = vpack.c.b16 %v2013, %v2012
        %v2032 = vpack.c.b16 %v2015, %v2014
        %v2033 = vpack.c.b16 %v2017, %v2016
        %2050 = vmatprep.subr.bf16.mxu0 0
        %2051 = vmatpush1.bf16.msra.mxu0 %v2018
        %2052 = vmatprep.subr.bf16.mxu0 0
        %2053 = vmatpush1.bf16.msra.mxu0 %v2019
        %2054 = vmatprep.subr.bf16.mxu0 0
        %2055 = vmatpush1.bf16.msra.mxu0 %v2020
        %2056 = vmatprep.subr.bf16.mxu0 0
        %2057 = vmatpush1.bf16.msra.mxu0 %v2021
        %2058 = vmatprep.subr.bf16.mxu0 0
        %2059 = vmatpush1.bf16.msra.mxu0 %v2022
        %2060 = vmatprep.subr.bf16.mxu0 0
        %2061 = vmatpush1.bf16.msra.mxu0 %v2023
        %2062 = vmatprep.subr.bf16.mxu0 0
        %2063 = vmatpush1.bf16.msra.mxu0 %v2024
        %2064 = vmatprep.subr.bf16.mxu0 0
        %2065 = vmatpush1.bf16.msra.mxu0 %v2025
        %2066 = vmatprep.subr.bf16.mxu0 0
        %2067 = vmatpush1.bf16.msra.mxu0 %v2026
        %2068 = vmatprep.subr.bf16.mxu0 0
        %2069 = vmatpush1.bf16.msra.mxu0 %v2027
        %2070 = vmatprep.subr.bf16.mxu0 0
        %2071 = vmatpush1.bf16.msra.mxu0 %v2028
        %2072 = vmatprep.subr.bf16.mxu0 0
        %2073 = vmatpush1.bf16.msra.mxu0 %v2029
        %2074 = vmatprep.subr.bf16.mxu0 0
        %2075 = vmatpush1.bf16.msra.mxu0 %v2030
        %2076 = vmatprep.subr.bf16.mxu0 0
        %2077 = vmatpush1.bf16.msra.mxu0 %v2031
        %2078 = vmatprep.subr.bf16.mxu0 0
        %2079 = vmatpush1.bf16.msra.mxu0 %v2032
        %2080 = vmatprep.subr.bf16.mxu0 0
        %2081 = vmatpush1.bf16.msra.mxu0 %v2033
        %2082 = vmatprep.mubr.bf16.mxu0 %v1392
        %2083 = vmatmul.mubr.bf16.gmra.mrb[0].mxu0 %v1391
        %v2084 = vpop.f32.mrb[0].mxu0
        %v2085 = vadd.f32 %v1952, %v2084
        %v2086 = vpop.f32.mrb[0].mxu0
        %v2087 = vpop.f32.mrb[0].mxu0
        %v2088 = vadd.f32 %v1952, %v2087
        %v2089 = vpop.f32.mrb[0].mxu0
        %2090 = vdwg.mxu0
        %s2091 = scalar_lea.vmem [#allocation27], 128
        %v2092 = vld [vmem:[%s2091] sm:$0xf]
        %v2093 = vld [vmem:[%s2091 + $0x4] sm:$0xf]
        %v2094 = vld [vmem:[%s2091 + $0x8] sm:$0xf]
        %v2095 = vld [vmem:[%s2091 + $0xc] sm:$0xf]
        %v2096 = vld [vmem:[%s2091 + $0x10] sm:$0xf]
        %v2097 = vld [vmem:[%s2091 + $0x14] sm:$0xf]
        %v2098 = vld [vmem:[%s2091 + $0x18] sm:$0xf]
        %v2099 = vld [vmem:[%s2091 + $0x1c] sm:$0xf]
        %v2100 = vld [vmem:[%s2091 + $0x20] sm:$0xf]
        %v2101 = vld [vmem:[%s2091 + $0x24] sm:$0xf]
        %v2102 = vld [vmem:[%s2091 + $0x28] sm:$0xf]
        %v2103 = vld [vmem:[%s2091 + $0x2c] sm:$0xf]
        %v2104 = vld [vmem:[%s2091 + $0x30] sm:$0xf]
        %v2105 = vld [vmem:[%s2091 + $0x34] sm:$0xf]
        %v2106 = vld [vmem:[%s2091 + $0x38] sm:$0xf]
        %v2107 = vld [vmem:[%s2091 + $0x3c] sm:$0xf]
        %v2108 = vld [vmem:[%s2091 + $0x40] sm:$0xf]
        %v2109 = vld [vmem:[%s2091 + $0x44] sm:$0xf]
        %v2110 = vld [vmem:[%s2091 + $0x48] sm:$0xf]
        %v2111 = vld [vmem:[%s2091 + $0x4c] sm:$0xf]
        %v2112 = vld [vmem:[%s2091 + $0x50] sm:$0xf]
        %v2113 = vld [vmem:[%s2091 + $0x54] sm:$0xf]
        %v2114 = vld [vmem:[%s2091 + $0x58] sm:$0xf]
        %v2115 = vld [vmem:[%s2091 + $0x5c] sm:$0xf]
        %v2116 = vld [vmem:[%s2091 + $0x60] sm:$0xf]
        %v2117 = vld [vmem:[%s2091 + $0x64] sm:$0xf]
        %v2118 = vld [vmem:[%s2091 + $0x68] sm:$0xf]
        %v2119 = vld [vmem:[%s2091 + $0x6c] sm:$0xf]
        %v2120 = vld [vmem:[%s2091 + $0x70] sm:$0xf]
        %v2121 = vld [vmem:[%s2091 + $0x74] sm:$0xf]
        %v2122 = vld [vmem:[%s2091 + $0x78] sm:$0xf]
        %v2123 = vld [vmem:[%s2091 + $0x7c] sm:$0xf]
        %s2124 = scalar_lea.vmem [#allocation29], 1
        %v2125 = vld [vmem:[%s2124] sm:$0x1]
        %v2127 = vlaneseq
        %v2128 = vshrl.u32 %v2127, 7
        %v2129 = vsub.s32 0, %v2128
        %v2130 = vrot.slane %v2125, %v2129
        %v2164 = vunpack.c.l.b16 %v2092
        %v2165 = vunpack.c.l.b16 %v2093
        %v2166 = vunpack.c.l.b16 %v2094
        %v2167 = vunpack.c.l.b16 %v2095
        %v2168 = vunpack.c.l.b16 %v2096
        %v2169 = vunpack.c.l.b16 %v2097
        %v2170 = vunpack.c.l.b16 %v2098
        %v2171 = vunpack.c.l.b16 %v2099
        %v2172 = vunpack.c.l.b16 %v2100
        %v2173 = vunpack.c.l.b16 %v2101
        %v2174 = vunpack.c.l.b16 %v2102
        %v2175 = vunpack.c.l.b16 %v2103
        %v2176 = vunpack.c.l.b16 %v2104
        %v2177 = vunpack.c.l.b16 %v2105
        %v2178 = vunpack.c.l.b16 %v2106
        %v2179 = vunpack.c.l.b16 %v2107
        %v2180 = vunpack.c.l.b16 %v2108
        %v2181 = vunpack.c.l.b16 %v2109
        %v2182 = vunpack.c.l.b16 %v2110
        %v2183 = vunpack.c.l.b16 %v2111
        %v2184 = vunpack.c.l.b16 %v2112
        %v2185 = vunpack.c.l.b16 %v2113
        %v2186 = vunpack.c.l.b16 %v2114
        %v2187 = vunpack.c.l.b16 %v2115
        %v2188 = vunpack.c.l.b16 %v2116
        %v2189 = vunpack.c.l.b16 %v2117
        %v2190 = vunpack.c.l.b16 %v2118
        %v2191 = vunpack.c.l.b16 %v2119
        %v2192 = vunpack.c.l.b16 %v2120
        %v2193 = vunpack.c.l.b16 %v2121
        %v2194 = vunpack.c.l.b16 %v2122
        %v2195 = vunpack.c.l.b16 %v2123
        %v2196 = vpack.c.b16 %v2165, %v2164
        %v2197 = vpack.c.b16 %v2167, %v2166
        %v2198 = vpack.c.b16 %v2169, %v2168
        %v2199 = vpack.c.b16 %v2171, %v2170
        %v2200 = vpack.c.b16 %v2173, %v2172
        %v2201 = vpack.c.b16 %v2175, %v2174
        %v2202 = vpack.c.b16 %v2177, %v2176
        %v2203 = vpack.c.b16 %v2179, %v2178
        %v2204 = vpack.c.b16 %v2181, %v2180
        %v2205 = vpack.c.b16 %v2183, %v2182
        %v2206 = vpack.c.b16 %v2185, %v2184
        %v2207 = vpack.c.b16 %v2187, %v2186
        %v2208 = vpack.c.b16 %v2189, %v2188
        %v2209 = vpack.c.b16 %v2191, %v2190
        %v2210 = vpack.c.b16 %v2193, %v2192
        %v2211 = vpack.c.b16 %v2195, %v2194
        %2228 = vmatprep.subr.bf16.mxu0 0
        %2229 = vmatpush1.bf16.msra.mxu0 %v2196
        %2230 = vmatprep.subr.bf16.mxu0 0
        %2231 = vmatpush1.bf16.msra.mxu0 %v2197
        %2232 = vmatprep.subr.bf16.mxu0 0
        %2233 = vmatpush1.bf16.msra.mxu0 %v2198
        %2234 = vmatprep.subr.bf16.mxu0 0
        %2235 = vmatpush1.bf16.msra.mxu0 %v2199
        %2236 = vmatprep.subr.bf16.mxu0 0
        %2237 = vmatpush1.bf16.msra.mxu0 %v2200
        %2238 = vmatprep.subr.bf16.mxu0 0
        %2239 = vmatpush1.bf16.msra.mxu0 %v2201
        %2240 = vmatprep.subr.bf16.mxu0 0
        %2241 = vmatpush1.bf16.msra.mxu0 %v2202
        %2242 = vmatprep.subr.bf16.mxu0 0
        %2243 = vmatpush1.bf16.msra.mxu0 %v2203
        %2244 = vmatprep.subr.bf16.mxu0 0
        %2245 = vmatpush1.bf16.msra.mxu0 %v2204
        %2246 = vmatprep.subr.bf16.mxu0 0
        %2247 = vmatpush1.bf16.msra.mxu0 %v2205
        %2248 = vmatprep.subr.bf16.mxu0 0
        %2249 = vmatpush1.bf16.msra.mxu0 %v2206
        %2250 = vmatprep.subr.bf16.mxu0 0
        %2251 = vmatpush1.bf16.msra.mxu0 %v2207
        %2252 = vmatprep.subr.bf16.mxu0 0
        %2253 = vmatpush1.bf16.msra.mxu0 %v2208
        %2254 = vmatprep.subr.bf16.mxu0 0
        %2255 = vmatpush1.bf16.msra.mxu0 %v2209
        %2256 = vmatprep.subr.bf16.mxu0 0
        %2257 = vmatpush1.bf16.msra.mxu0 %v2210
        %2258 = vmatprep.subr.bf16.mxu0 0
        %2259 = vmatpush1.bf16.msra.mxu0 %v2211
        %2260 = vmatprep.mubr.bf16.mxu0 %v1392
        %2261 = vmatmul.mubr.bf16.gmra.mrb[0].mxu0 %v1391
        %v2262 = vpop.f32.mrb[0].mxu0
        %v2263 = vadd.f32 %v2130, %v2262
        %v2264 = vpop.f32.mrb[0].mxu0
        %v2265 = vpop.f32.mrb[0].mxu0
        %v2266 = vadd.f32 %v2130, %v2265
        %v2267 = vpop.f32.mrb[0].mxu0
        %2268 = vdwg.mxu0
        %s2269 = scalar_lea.vmem [#allocation2], 8
        %v2270 = vld [vmem:[%s2269] sm:$0xff]
        %v2271 = vpack.c.bf16 %v2088, %v2085
        %2272 = vmatprep.subr.bf16.mxu0 0
        %2273 = vmatpush1.bf16.xpose.msra.mxu0 %v2271
        %2274 = vmatprep.subr.bf16.mxu0 0
        %2275 = vmatpush1.bf16.xpose.msra.mxu0 0
        %2276 = vmatprep.subr.bf16.mxu0 0
        %2277 = vmatpush1.bf16.xpose.msra.mxu0 0
        %2278 = vmatprep.subr.bf16.mxu0 0
        %2279 = vmatpush1.bf16.xpose.msra.mxu0 0
        %2280 = vmatprep.subr.bf16.mxu0 0
        %2281 = vmatpush1.bf16.xpose.msra.mxu0 0
        %2282 = vmatprep.subr.bf16.mxu0 0
        %2283 = vmatpush1.bf16.xpose.msra.mxu0 0
        %2284 = vmatprep.subr.bf16.mxu0 0
        %2285 = vmatpush1.bf16.xpose.msra.mxu0 0
        %2286 = vmatprep.subr.bf16.mxu0 0
        %2287 = vmatpush1.bf16.xpose.msra.mxu0 0
        %2288 = vmatprep.subr.bf16.mxu0 0
        %2289 = vmatpush1.bf16.xpose.msra.mxu0 0
        %2290 = vmatprep.subr.bf16.mxu0 0
        %2291 = vmatpush1.bf16.xpose.msra.mxu0 0
        %2292 = vmatprep.subr.bf16.mxu0 0
        %2293 = vmatpush1.bf16.xpose.msra.mxu0 0
        %2294 = vmatprep.subr.bf16.mxu0 0
        %2295 = vmatpush1.bf16.xpose.msra.mxu0 0
        %2296 = vmatprep.subr.bf16.mxu0 0
        %2297 = vmatpush1.bf16.xpose.msra.mxu0 0
        %2298 = vmatprep.subr.bf16.mxu0 0
        %2299 = vmatpush1.bf16.xpose.msra.mxu0 0
        %2300 = vmatprep.subr.bf16.mxu0 0
        %2301 = vmatpush1.bf16.xpose.msra.mxu0 0
        %2302 = vmatprep.subr.bf16.mxu0 0
        %2303 = vmatpush1.bf16.xpose.msra.mxu0 0
        %2304 = vmatprep.mubr.bf16.mxu0 0
        %2305 = vmatmul.mubr.bf16.gmra.mrb[0].mxu0 %v2270
        %v2306 = vpop.f32.mrb[0].mxu0
        %v2307 = vadd.f32 0.0, %v2306
        %v2308 = vpop.f32.mrb[0].mxu0
        %v2309 = vpop.f32.mrb[0].mxu0
        %v2310 = vadd.f32 0.0, %v2309
        %v2311 = vpop.f32.mrb[0].mxu0
        %2312 = vdwg.mxu0
        %v2313 = vsel %vm1796, %v2307, -1e+30
        %v2314 = vsel %vm1796, %v2310, -1e+30
        %s2315 = scalar_lea.vmem [#allocation3], 16
        %v2316 = vld [vmem:[%s2315] sm:$0xff]
        %v2317 = vld [vmem:[%s2315 + $0x8] sm:$0xff]
        %v2318 = vsel %vm1801, %v2313, -inf
        %2319 = vmax.xlane.f32.xlu0 %v2318
        %v2320 = vpop.xlane.xlu0 %2319
        %v2321 = vsel %vm1801, %v2314, -inf
        %2322 = vmax.xlane.f32.xlu0 %v2321
        %v2323 = vpop.xlane.xlu0 %2322
        %v2324 = vmax.f32 %v2316, %v2320
        %v2325 = vmax.f32 %v2317, %v2323
        %v2326 = vsub.f32 %v2316, %v2324
        %v2327 = vsub.f32 %v2317, %v2325
        %v2328 = vmul.f32 %v2326, 1.442695
        %v2329 = vpow.pop %v2328
        %v2330 = vmul.f32 %v2327, 1.442695
        %v2331 = vpow.pop %v2330
        %2333 = vset.pattern.permute.xlu0 0
        %2334 = vperm.xlu0 %2333, %v2324
        %v2335 = vpop.permute.xlu0 %2334
        %2338 = vset.pattern.permute.xlu0 0
        %2339 = vperm.xlu0 %2338, %v2325
        %v2340 = vpop.permute.xlu0 %2339
        %v2342 = vsub.f32 %v2313, %v2335
        %v2343 = vsub.f32 %v2314, %v2340
        %v2344 = vmul.f32 %v2342, 1.442695
        %v2345 = vpow.pop %v2344
        %v2346 = vmul.f32 %v2343, 1.442695
        %v2347 = vpow.pop %v2346
        %s2348 = scalar_lea.vmem [#allocation4], 16
        %v2349 = vld [vmem:[%s2348] sm:$0xff]
        %v2350 = vld [vmem:[%s2348 + $0x8] sm:$0xff]
        %v2351 = vmul.f32 %v2329, %v2349
        %v2352 = vmul.f32 %v2331, %v2350
        %v2353 = vsel %vm1801, %v2345, 0.0
        %2354 = vadd.xlane.f32.xlu0 %v2353
        %v2355 = vpop.xlane.xlu0 %2354
        %v2356 = vsel %vm1801, %v2347, 0.0
        %2357 = vadd.xlane.f32.xlu0 %v2356
        %v2358 = vpop.xlane.xlu0 %2357
        %v2359 = vadd.f32 %v2351, %v2355
        %v2360 = vadd.f32 %v2352, %v2358
        %2361 = vst.msk [vmem:[%s2348] sm:$0xff] %vm1844, %v2359
        %2362 = vst.msk [vmem:[%s2348 + $0x8] sm:$0xff] %vm1844, %v2360
        %s2363 = scalar_lea.vmem [#allocation5], 16
        %v2364 = vld [vmem:[%s2363] sm:$0xff]
        %v2365 = vld [vmem:[%s2363 + $0x8] sm:$0xff]
        %2367 = vset.pattern.permute.xlu0 0
        %2368 = vperm.xlu0 %2367, %v2329
        %v2369 = vpop.permute.xlu0 %2368
        %2372 = vset.pattern.permute.xlu0 0
        %2373 = vperm.xlu0 %2372, %v2331
        %v2374 = vpop.permute.xlu0 %2373
        %v2376 = vmul.f32 %v2369, %v2364
        %v2377 = vmul.f32 %v2374, %v2365
        %v2378 = vpack.c.bf16 %v2347, %v2345
        %v2379 = vpack.c.bf16 %v2266, %v2263
        %v2381 = vsel %vm1801, %v2378, 0
        %2383 = vmatprep.subr.bf16.mxu0 0
        %2384 = vmatpush1.bf16.msra.mxu0 %v2379
        %2385 = vmatprep.subr.bf16.mxu0 0
        %2386 = vmatpush1.bf16.msra.mxu0 0
        %2387 = vmatprep.subr.bf16.mxu0 0
        %2388 = vmatpush1.bf16.msra.mxu0 0
        %2389 = vmatprep.subr.bf16.mxu0 0
        %2390 = vmatpush1.bf16.msra.mxu0 0
        %2391 = vmatprep.subr.bf16.mxu0 0
        %2392 = vmatpush1.bf16.msra.mxu0 0
        %2393 = vmatprep.subr.bf16.mxu0 0
        %2394 = vmatpush1.bf16.msra.mxu0 0
        %2395 = vmatprep.subr.bf16.mxu0 0
        %2396 = vmatpush1.bf16.msra.mxu0 0
        %2397 = vmatprep.subr.bf16.mxu0 0
        %2398 = vmatpush1.bf16.msra.mxu0 0
        %2399 = vmatprep.subr.bf16.mxu0 0
        %2400 = vmatpush1.bf16.msra.mxu0 0
        %2401 = vmatprep.subr.bf16.mxu0 0
        %2402 = vmatpush1.bf16.msra.mxu0 0
        %2403 = vmatprep.subr.bf16.mxu0 0
        %2404 = vmatpush1.bf16.msra.mxu0 0
        %2405 = vmatprep.subr.bf16.mxu0 0
        %2406 = vmatpush1.bf16.msra.mxu0 0
        %2407 = vmatprep.subr.bf16.mxu0 0
        %2408 = vmatpush1.bf16.msra.mxu0 0
        %2409 = vmatprep.subr.bf16.mxu0 0
        %2410 = vmatpush1.bf16.msra.mxu0 0
        %2411 = vmatprep.subr.bf16.mxu0 0
        %2412 = vmatpush1.bf16.msra.mxu0 0
        %2413 = vmatprep.subr.bf16.mxu0 0
        %2414 = vmatpush1.bf16.msra.mxu0 0
        %2415 = vmatprep.mubr.bf16.mxu0 0
        %2416 = vmatmul.mubr.bf16.gmra.mrb[0].mxu0 %v2381
        %v2417 = vpop.f32.mrb[0].mxu0
        %v2418 = vadd.f32 0.0, %v2417
        %v2419 = vpop.f32.mrb[0].mxu0
        %v2420 = vpop.f32.mrb[0].mxu0
        %v2421 = vadd.f32 0.0, %v2420
        %v2422 = vpop.f32.mrb[0].mxu0
        %2423 = vdwg.mxu0
        %v2424 = vadd.f32 %v2376, %v2418
        %v2425 = vadd.f32 %v2377, %v2421
        %2426 = vst [vmem:[%s2363] sm:$0xff] %v2424
        %2427 = vst [vmem:[%s2363 + $0x8] sm:$0xff] %v2425
        %2428 = vst.msk [vmem:[%s2315] sm:$0xff] %vm1844, %v2324
        %2429 = vst.msk [vmem:[%s2315 + $0x8] sm:$0xff] %vm1844, %v2325
        %p2430 = scmp.eq.s32.totalorder %s56, 1
        // Predicated region
        $region153: #{tpu_custom_call.1} parent=83 // pred_check
          %p2431 = pneg %p2430
        $region154: #{tpu_custom_call.1} parent=83 // pred_check_branch
          %2433 = sbr.rel (%p2431) target = $region156
        $region155: #{tpu_custom_call.1} parent=83 // pred_region
          %2434 = vst [vmem:[%s816] sm:$0xff] 0.0
          %2435 = vst [vmem:[%s816 + $0x8] sm:$0xff] 0.0
          %2436 = vst [vmem:[%s816 + $0x10] sm:$0xff] 0.0
          %2437 = vst [vmem:[%s816 + $0x18] sm:$0xff] 0.0
          %v2438 = vld [vmem:[#allocation4] sm:$0xff]
          %v2439 = vld [vmem:[#allocation4 + $0x8] sm:$0xff]
          %v2440 = vrcp.pop %v2438
          %v2441 = vrcp.pop %v2439
          %v2442 = vld [vmem:[#allocation5] sm:$0xff]
          %v2443 = vld [vmem:[#allocation5 + $0x8] sm:$0xff]
          %2445 = vset.pattern.permute.xlu0 0
          %2446 = vperm.xlu0 %2445, %v2440
          %v2447 = vpop.permute.xlu0 %2446
          %2450 = vset.pattern.permute.xlu0 0
          %2451 = vperm.xlu0 %2450, %v2441
          %v2452 = vpop.permute.xlu0 %2451
          %v2454 = vmul.f32 %v2442, %v2447
          %v2455 = vmul.f32 %v2443, %v2452
          %v2456 = vpack.c.bf16 %v2455, %v2454
          %v2457 = vld [vmem:[%s816] sm:$0xff]
          %v2458 = vld [vmem:[%s816 + $0x8] sm:$0xff]
          %v2459 = vld [vmem:[%s816 + $0x10] sm:$0xff]
          %v2460 = vld [vmem:[%s816 + $0x18] sm:$0xff]
          %v2461 = vld [vmem:[#allocation30] sm:$0xff]
          %v2462 = vld [vmem:[#allocation30 + $0x8] sm:$0xff]
          %v2463 = vld [vmem:[#allocation30 + $0x10] sm:$0xff]
          %v2464 = vld [vmem:[#allocation30 + $0x18] sm:$0xff]
          %v2465 = vld [vmem:[#allocation30 + $0x20] sm:$0xff]
          %v2466 = vld [vmem:[#allocation30 + $0x28] sm:$0xff]
          %v2467 = vld [vmem:[#allocation30 + $0x30] sm:$0xff]
          %v2468 = vld [vmem:[#allocation30 + $0x38] sm:$0xff]
          %v2469 = vld [vmem:[#allocation30 + $0x40] sm:$0xff]
          %v2470 = vld [vmem:[#allocation30 + $0x48] sm:$0xff]
          %v2471 = vld [vmem:[#allocation30 + $0x50] sm:$0xff]
          %v2472 = vld [vmem:[#allocation30 + $0x58] sm:$0xff]
          %v2473 = vld [vmem:[#allocation30 + $0x60] sm:$0xff]
          %v2474 = vld [vmem:[#allocation30 + $0x68] sm:$0xff]
          %v2475 = vld [vmem:[#allocation30 + $0x70] sm:$0xff]
          %v2476 = vld [vmem:[#allocation30 + $0x78] sm:$0xff]
          %v2493 = vunpack.c.l.b16 %v2461
          %v2494 = vunpack.c.h.b16 %v2461
          %v2495 = vunpack.c.l.b16 %v2462
          %v2496 = vunpack.c.h.b16 %v2462
          %v2497 = vunpack.c.l.b16 %v2463
          %v2498 = vunpack.c.h.b16 %v2463
          %v2499 = vunpack.c.l.b16 %v2464
          %v2500 = vunpack.c.h.b16 %v2464
          %v2501 = vunpack.c.l.b16 %v2465
          %v2502 = vunpack.c.h.b16 %v2465
          %v2503 = vunpack.c.l.b16 %v2466
          %v2504 = vunpack.c.h.b16 %v2466
          %v2505 = vunpack.c.l.b16 %v2467
          %v2506 = vunpack.c.h.b16 %v2467
          %v2507 = vunpack.c.l.b16 %v2468
          %v2508 = vunpack.c.h.b16 %v2468
          %v2509 = vunpack.c.l.b16 %v2469
          %v2510 = vunpack.c.h.b16 %v2469
          %v2511 = vunpack.c.l.b16 %v2470
          %v2512 = vunpack.c.h.b16 %v2470
          %v2513 = vunpack.c.l.b16 %v2471
          %v2514 = vunpack.c.h.b16 %v2471
          %v2515 = vunpack.c.l.b16 %v2472
          %v2516 = vunpack.c.h.b16 %v2472
          %v2517 = vunpack.c.l.b16 %v2473
          %v2518 = vunpack.c.h.b16 %v2473
          %v2519 = vunpack.c.l.b16 %v2474
          %v2520 = vunpack.c.h.b16 %v2474
          %v2521 = vunpack.c.l.b16 %v2475
          %v2522 = vunpack.c.h.b16 %v2475
          %v2523 = vunpack.c.l.b16 %v2476
          %v2524 = vunpack.c.h.b16 %v2476
          %v2525 = vpack.c.b16 %v2495, %v2493
          %v2526 = vpack.c.b16 %v2496, %v2494
          %v2527 = vpack.c.b16 %v2499, %v2497
          %v2528 = vpack.c.b16 %v2500, %v2498
          %v2529 = vpack.c.b16 %v2503, %v2501
          %v2530 = vpack.c.b16 %v2504, %v2502
          %v2531 = vpack.c.b16 %v2507, %v2505
          %v2532 = vpack.c.b16 %v2508, %v2506
          %v2533 = vpack.c.b16 %v2511, %v2509
          %v2534 = vpack.c.b16 %v2512, %v2510
          %v2535 = vpack.c.b16 %v2515, %v2513
          %v2536 = vpack.c.b16 %v2516, %v2514
          %v2537 = vpack.c.b16 %v2519, %v2517
          %v2538 = vpack.c.b16 %v2520, %v2518
          %v2539 = vpack.c.b16 %v2523, %v2521
          %v2540 = vpack.c.b16 %v2524, %v2522
          %2557 = vmatprep.subr.bf16.mxu0 %v2526
          %2558 = vmatpush1.bf16.msra.mxu0 %v2525
          %2559 = vmatprep.subr.bf16.mxu0 %v2528
          %2560 = vmatpush1.bf16.msra.mxu0 %v2527
          %2561 = vmatprep.subr.bf16.mxu0 %v2530
          %2562 = vmatpush1.bf16.msra.mxu0 %v2529
          %2563 = vmatprep.subr.bf16.mxu0 %v2532
          %2564 = vmatpush1.bf16.msra.mxu0 %v2531
          %2565 = vmatprep.subr.bf16.mxu0 %v2534
          %2566 = vmatpush1.bf16.msra.mxu0 %v2533
          %2567 = vmatprep.subr.bf16.mxu0 %v2536
          %2568 = vmatpush1.bf16.msra.mxu0 %v2535
          %2569 = vmatprep.subr.bf16.mxu0 %v2538
          %2570 = vmatpush1.bf16.msra.mxu0 %v2537
          %2571 = vmatprep.subr.bf16.mxu0 %v2540
          %2572 = vmatpush1.bf16.msra.mxu0 %v2539
          %2573 = vmatprep.subr.bf16.mxu0 0
          %2574 = vmatpush1.bf16.msra.mxu0 0
          %2575 = vmatprep.subr.bf16.mxu0 0
          %2576 = vmatpush1.bf16.msra.mxu0 0
          %2577 = vmatprep.subr.bf16.mxu0 0
          %2578 = vmatpush1.bf16.msra.mxu0 0
          %2579 = vmatprep.subr.bf16.mxu0 0
          %2580 = vmatpush1.bf16.msra.mxu0 0
          %2581 = vmatprep.subr.bf16.mxu0 0
          %2582 = vmatpush1.bf16.msra.mxu0 0
          %2583 = vmatprep.subr.bf16.mxu0 0
          %2584 = vmatpush1.bf16.msra.mxu0 0
          %2585 = vmatprep.subr.bf16.mxu0 0
          %2586 = vmatpush1.bf16.msra.mxu0 0
          %2587 = vmatprep.subr.bf16.mxu0 0
          %2588 = vmatpush1.bf16.msra.mxu0 0
          %2589 = vmatprep.mubr.bf16.mxu0 0
          %2590 = vmatmul.mubr.bf16.gmra.mrb[0].mxu0 %v2456
          %v2591 = vpop.f32.mrb[0].mxu0
          %v2592 = vadd.f32 0.0, %v2591
          %v2593 = vpop.f32.mrb[0].mxu0
          %v2594 = vadd.f32 0.0, %v2593
          %v2595 = vpop.f32.mrb[0].mxu0
          %v2596 = vadd.f32 0.0, %v2595
          %v2597 = vpop.f32.mrb[0].mxu0
          %v2598 = vadd.f32 0.0, %v2597
          %2599 = vdwg.mxu0
          %v2600 = vadd.f32 %v2457, %v2592
          %v2601 = vadd.f32 %v2458, %v2594
          %v2602 = vadd.f32 %v2459, %v2596
          %v2603 = vadd.f32 %v2460, %v2598
          %2604 = vst [vmem:[%s816] sm:$0xff] %v2600
          %2605 = vst [vmem:[%s816 + $0x8] sm:$0xff] %v2601
          %2606 = vst [vmem:[%s816 + $0x10] sm:$0xff] %v2602
          %2607 = vst [vmem:[%s816 + $0x18] sm:$0xff] %v2603
          %v2608 = vld [vmem:[%s2348] sm:$0xff]
          %v2609 = vld [vmem:[%s2348 + $0x8] sm:$0xff]
          %v2610 = vrcp.pop %v2608
          %v2611 = vrcp.pop %v2609
          %v2612 = vld [vmem:[%s2363] sm:$0xff]
          %v2613 = vld [vmem:[%s2363 + $0x8] sm:$0xff]
          %2615 = vset.pattern.permute.xlu0 0
          %2616 = vperm.xlu0 %2615, %v2610
          %v2617 = vpop.permute.xlu0 %2616
          %2620 = vset.pattern.permute.xlu0 0
          %2621 = vperm.xlu0 %2620, %v2611
          %v2622 = vpop.permute.xlu0 %2621
          %v2624 = vmul.f32 %v2612, %v2617
          %v2625 = vmul.f32 %v2613, %v2622
          %v2626 = vpack.c.bf16 %v2625, %v2624
          %v2627 = vld [vmem:[%s816] sm:$0xff]
          %v2628 = vld [vmem:[%s816 + $0x8] sm:$0xff]
          %v2629 = vld [vmem:[%s816 + $0x10] sm:$0xff]
          %v2630 = vld [vmem:[%s816 + $0x18] sm:$0xff]
          %s2631 = scalar_lea.vmem [#allocation30], 128
          %v2632 = vld [vmem:[%s2631] sm:$0xff]
          %v2633 = vld [vmem:[%s2631 + $0x8] sm:$0xff]
          %v2634 = vld [vmem:[%s2631 + $0x10] sm:$0xff]
          %v2635 = vld [vmem:[%s2631 + $0x18] sm:$0xff]
          %v2636 = vld [vmem:[%s2631 + $0x20] sm:$0xff]
          %v2637 = vld [vmem:[%s2631 + $0x28] sm:$0xff]
          %v2638 = vld [vmem:[%s2631 + $0x30] sm:$0xff]
          %v2639 = vld [vmem:[%s2631 + $0x38] sm:$0xff]
          %v2640 = vld [vmem:[%s2631 + $0x40] sm:$0xff]
          %v2641 = vld [vmem:[%s2631 + $0x48] sm:$0xff]
          %v2642 = vld [vmem:[%s2631 + $0x50] sm:$0xff]
          %v2643 = vld [vmem:[%s2631 + $0x58] sm:$0xff]
          %v2644 = vld [vmem:[%s2631 + $0x60] sm:$0xff]
          %v2645 = vld [vmem:[%s2631 + $0x68] sm:$0xff]
          %v2646 = vld [vmem:[%s2631 + $0x70] sm:$0xff]
          %v2647 = vld [vmem:[%s2631 + $0x78] sm:$0xff]
          %v2664 = vunpack.c.l.b16 %v2632
          %v2665 = vunpack.c.h.b16 %v2632
          %v2666 = vunpack.c.l.b16 %v2633
          %v2667 = vunpack.c.h.b16 %v2633
          %v2668 = vunpack.c.l.b16 %v2634
          %v2669 = vunpack.c.h.b16 %v2634
          %v2670 = vunpack.c.l.b16 %v2635
          %v2671 = vunpack.c.h.b16 %v2635
          %v2672 = vunpack.c.l.b16 %v2636
          %v2673 = vunpack.c.h.b16 %v2636
          %v2674 = vunpack.c.l.b16 %v2637
          %v2675 = vunpack.c.h.b16 %v2637
          %v2676 = vunpack.c.l.b16 %v2638
          %v2677 = vunpack.c.h.b16 %v2638
          %v2678 = vunpack.c.l.b16 %v2639
          %v2679 = vunpack.c.h.b16 %v2639
          %v2680 = vunpack.c.l.b16 %v2640
          %v2681 = vunpack.c.h.b16 %v2640
          %v2682 = vunpack.c.l.b16 %v2641
          %v2683 = vunpack.c.h.b16 %v2641
          %v2684 = vunpack.c.l.b16 %v2642
          %v2685 = vunpack.c.h.b16 %v2642
          %v2686 = vunpack.c.l.b16 %v2643
          %v2687 = vunpack.c.h.b16 %v2643
          %v2688 = vunpack.c.l.b16 %v2644
          %v2689 = vunpack.c.h.b16 %v2644
          %v2690 = vunpack.c.l.b16 %v2645
          %v2691 = vunpack.c.h.b16 %v2645
          %v2692 = vunpack.c.l.b16 %v2646
          %v2693 = vunpack.c.h.b16 %v2646
          %v2694 = vunpack.c.l.b16 %v2647
          %v2695 = vunpack.c.h.b16 %v2647
          %v2696 = vpack.c.b16 %v2666, %v2664
          %v2697 = vpack.c.b16 %v2667, %v2665
          %v2698 = vpack.c.b16 %v2670, %v2668
          %v2699 = vpack.c.b16 %v2671, %v2669
          %v2700 = vpack.c.b16 %v2674, %v2672
          %v2701 = vpack.c.b16 %v2675, %v2673
          %v2702 = vpack.c.b16 %v2678, %v2676
          %v2703 = vpack.c.b16 %v2679, %v2677
          %v2704 = vpack.c.b16 %v2682, %v2680
          %v2705 = vpack.c.b16 %v2683, %v2681
          %v2706 = vpack.c.b16 %v2686, %v2684
          %v2707 = vpack.c.b16 %v2687, %v2685
          %v2708 = vpack.c.b16 %v2690, %v2688
          %v2709 = vpack.c.b16 %v2691, %v2689
          %v2710 = vpack.c.b16 %v2694, %v2692
          %v2711 = vpack.c.b16 %v2695, %v2693
          %2728 = vmatprep.subr.bf16.mxu0 %v2697
          %2729 = vmatpush1.bf16.msra.mxu0 %v2696
          %2730 = vmatprep.subr.bf16.mxu0 %v2699
          %2731 = vmatpush1.bf16.msra.mxu0 %v2698
          %2732 = vmatprep.subr.bf16.mxu0 %v2701
          %2733 = vmatpush1.bf16.msra.mxu0 %v2700
          %2734 = vmatprep.subr.bf16.mxu0 %v2703
          %2735 = vmatpush1.bf16.msra.mxu0 %v2702
          %2736 = vmatprep.subr.bf16.mxu0 %v2705
          %2737 = vmatpush1.bf16.msra.mxu0 %v2704
          %2738 = vmatprep.subr.bf16.mxu0 %v2707
          %2739 = vmatpush1.bf16.msra.mxu0 %v2706
          %2740 = vmatprep.subr.bf16.mxu0 %v2709
          %2741 = vmatpush1.bf16.msra.mxu0 %v2708
          %2742 = vmatprep.subr.bf16.mxu0 %v2711
          %2743 = vmatpush1.bf16.msra.mxu0 %v2710
          %2744 = vmatprep.subr.bf16.mxu0 0
          %2745 = vmatpush1.bf16.msra.mxu0 0
          %2746 = vmatprep.subr.bf16.mxu0 0
          %2747 = vmatpush1.bf16.msra.mxu0 0
          %2748 = vmatprep.subr.bf16.mxu0 0
          %2749 = vmatpush1.bf16.msra.mxu0 0
          %2750 = vmatprep.subr.bf16.mxu0 0
          %2751 = vmatpush1.bf16.msra.mxu0 0
          %2752 = vmatprep.subr.bf16.mxu0 0
          %2753 = vmatpush1.bf16.msra.mxu0 0
          %2754 = vmatprep.subr.bf16.mxu0 0
          %2755 = vmatpush1.bf16.msra.mxu0 0
          %2756 = vmatprep.subr.bf16.mxu0 0
          %2757 = vmatpush1.bf16.msra.mxu0 0
          %2758 = vmatprep.subr.bf16.mxu0 0
          %2759 = vmatpush1.bf16.msra.mxu0 0
          %2760 = vmatprep.mubr.bf16.mxu0 0
          %2761 = vmatmul.mubr.bf16.gmra.mrb[0].mxu0 %v2626
          %v2762 = vpop.f32.mrb[0].mxu0
          %v2763 = vadd.f32 0.0, %v2762
          %v2764 = vpop.f32.mrb[0].mxu0
          %v2765 = vadd.f32 0.0, %v2764
          %v2766 = vpop.f32.mrb[0].mxu0
          %v2767 = vadd.f32 0.0, %v2766
          %v2768 = vpop.f32.mrb[0].mxu0
          %v2769 = vadd.f32 0.0, %v2768
          %2770 = vdwg.mxu0
          %v2771 = vadd.f32 %v2627, %v2763
          %v2772 = vadd.f32 %v2628, %v2765
          %v2773 = vadd.f32 %v2629, %v2767
          %v2774 = vadd.f32 %v2630, %v2769
          %2775 = vst [vmem:[%s816] sm:$0xff] %v2771
          %2776 = vst [vmem:[%s816 + $0x8] sm:$0xff] %v2772
          %2777 = vst [vmem:[%s816 + $0x10] sm:$0xff] %v2773
          %2778 = vst [vmem:[%s816 + $0x18] sm:$0xff] %v2774
          %v2779 = vld [vmem:[%s706] sm:$0x77]
          %v2780 = vld [vmem:[#allocation33] sm:$0x77]
          %v2781 = vadd.f32 %v2779, %v2780
          %v2782 = vld [vmem:[%s816] sm:$0xff]
          %v2783 = vld [vmem:[%s816 + $0x8] sm:$0xff]
          %v2784 = vld [vmem:[%s816 + $0x10] sm:$0xff]
          %v2785 = vld [vmem:[%s816 + $0x18] sm:$0xff]
          %v2786 = vld [vmem:[#allocation32] sm:$0x3]
          %v2788 = vlaneseq
          %v2789 = vshrl.u32 %v2788, 7
          %v2790 = vsub.s32 0, %v2789
          %v2791 = vrot.slane %v2786, %v2790
          %v2792 = vlaneseq
          %v2793 = vshrl.u32 %v2792, 7
          %v2794 = vsub.s32 1, %v2793
          %v2795 = vrot.slane %v2786, %v2794
          %v2798 = vadd.f32 %v2782, %v2791
          %v2799 = vadd.f32 %v2783, %v2795
          %v2800 = vadd.f32 %v2784, %v2791
          %v2801 = vadd.f32 %v2785, %v2795
          %v2803 = vlaneseq
          %v2804 = vshrl.u32 %v2803, 7
          %v2805 = vsub.s32 2, %v2804
          %v2806 = vrot.slane %v2781, %v2805
          %v2807 = vlaneseq
          %v2808 = vshrl.u32 %v2807, 7
          %v2809 = vsub.s32 6, %v2808
          %v2810 = vrot.slane %v2781, %v2809
          %v2813 = vlaneseq
          %v2814 = vshrl.u32 %v2813, 7
          %v2815 = vsub.s32 2, %v2814
          %v2816 = vrot.slane %v2806, %v2815
          %v2817 = vlaneseq
          %v2818 = vshrl.u32 %v2817, 7
          %v2819 = vsub.s32 2, %v2818
          %v2820 = vrot.slane %v2810, %v2819
          %v2821 = vmul.f32 %v2798, %v2816
          %v2822 = vmul.f32 %v2799, %v2820
          %v2823 = vmul.f32 %v2800, %v2816
          %v2824 = vmul.f32 %v2801, %v2820
          %v2825 = vlaneseq
          %v2826 = vshrl.u32 %v2825, 7
          %v2827 = vadd.s32 %v2826, 8
          %v2828 = vstv %s819
          %vm2829 = vcmp.lt.s32.totalorder %v2826, %v2828
          %vm2830 = vcmp.lt.s32.totalorder %v2827, %v2828
          %v2831 = vsel %vm2829, 1, 0
          %v2832 = vsel %vm2830, 1, 0
          %vm2833 = vcmp.eq.s32.totalorder %v2831, 1
          %vm2834 = vcmp.eq.s32.totalorder %v2832, 1
          %v2835 = vsel %vm2833, %v2821, 0.0
          %v2836 = vsel %vm2833, %v2822, 0.0
          %v2837 = vsel %vm2834, %v2823, 0.0
          %v2838 = vsel %vm2834, %v2824, 0.0
          %2839 = vst [vmem:[%s816] sm:$0xff] %v2835
          %2840 = vst [vmem:[%s816 + $0x8] sm:$0xff] %v2836
          %2841 = vst [vmem:[%s816 + $0x10] sm:$0xff] %v2837
          %2842 = vst [vmem:[%s816 + $0x18] sm:$0xff] %v2838
        $region156: #{tpu_custom_call.1} parent=83 // pred_fallthru
          _
        %s2843 = sand.u32 %s424, 1
        %s2844 = scalar_lea.sflag [#allocation11], %s2843
        %s2845 = sand.u32 %s424, 1
        %s2846 = smul.addr %s2845, 32
        %s2847 = scalar_lea.vmem [#allocation35], %s2846
        // Predicated region
        $region157: #{tpu_custom_call.1} parent=83 // pred_check
          %p2848 = pneg %p434
        $region158: #{tpu_custom_call.1} parent=83 // pred_check_branch
          %2850 = sbr.rel (%p2848) target = $region160
        $region159: #{tpu_custom_call.1} parent=83 // pred_region
          %s2852 = ssub.s32 512, 512
          %2853 = vsyncadd %s2844, %s2852
          %s2854 = smul.addr %s55, 4
          %s2855 = smul.addr %s2854, 128
          %s2856 = scalar_lea.hbm %s18, %s2855
          %s2857 = sshll.u32 %s2847, 4
          %s2858 = int_to_ptr.vmem [resolvable:$true] %s2857
          %2863 = dma.vmem_to_hbm [thread:$0]  %s2858, 512, %s2856, %s2844, 256, 256, 16
        $region160: #{tpu_custom_call.1} parent=83 // pred_fallthru
          _
      $region84: #{tpu_custom_call.1} parent=5 // pred_fallthru
        _
      %p2864 = scmp.le.s32.totalorder 2, %s46
      // Predicated region
      $region161: #{tpu_custom_call.1} parent=5 // pred_check
        %p2865 = pneg %p2864
      $region162: #{tpu_custom_call.1} parent=5 // pred_check_branch
        %2867 = sbr.rel (%p2865) target = $region164
      $region163: #{tpu_custom_call.1} parent=5 // pred_region
        %s2868 = ssub.s32 %s46, 2
        // Predicated region
        $region165: #{tpu_custom_call.1} parent=163 // pred_check
          %p2869 = pneg %p440
        $region166: #{tpu_custom_call.1} parent=163 // pred_check_branch
          %2871 = sbr.rel (%p2869) target = $region168
        $region167: #{tpu_custom_call.1} parent=163 // pred_region
          %s2872 = sand.u32 %s425, 1
          %s2873 = scalar_lea.sflag [#allocation11], %s2872
          %s2874 = sand.u32 %s425, 1
          %s2875 = smul.addr %s2874, 32
          %s2876 = scalar_lea.vmem [#allocation35], %s2875
          %2877 = dma.done %s2873, 512
        $region168: #{tpu_custom_call.1} parent=163 // pred_fallthru
          _
      $region164: #{tpu_custom_call.1} parent=5 // pred_fallthru
        _
    $region6: #{tpu_custom_call.1} parent=1 // loop_footer
      %s50 = sadd.s32 1, %s46
    $region7: #{tpu_custom_call.1} parent=1 // loop_footer_branch
      %45 = sbr.rel target = $region3
    $region8: #{tpu_custom_call.1} parent=1 // loop_exit
      _
    %2878 = vsyncpa [#allocation10], 1
    %s2879 = scalar_lea.sflag [#allocation10], 1
    %2880 = vsyncpa %s2879, 1
    %2881 = vsyncpa [#allocation13], 1
    %s2882 = scalar_lea.sflag [#allocation13], 1
    %2883 = vsyncpa %s2882, 1
    %2884 = vsyncpa [#allocation16], 1
    %2885 = vsyncpa [#allocation19], 1
    %2886 = vsyncpa [#allocation22], 1
    %2887 = vsyncpa [#allocation25], 1
    %2888 = vsyncpa [#allocation28], 1
    %2889 = vsyncpa [#allocation31], 1
    %2890 = vsyncpa [#allocation34], 1
    %2891 = vsyncpa [#allocation11], 1
    %s2892 = scalar_lea.sflag [#allocation11], 1
    %2893 = vsyncpa %s2892, 1

</llo_original>
